<compile_context>
chip_gen: v7x
topology: tpu7x:2x2x1
jax: 0.10.0
libtpu: 0.0.40
codegen_flags: <defaults>
</compile_context>

<pallas_src>
import numpy as np
import jax
import jax.numpy as jnp
from jax.experimental import pallas as pl
from jax.experimental.pallas import tpu as pltpu


# ----------------------------- static network dims -----------------------------
K = 3                           # conv kernel size
H0 = W0 = 28                    # input spatial
H1 = W1 = 26                    # after conv1 (valid, stride 1)
H2 = W2 = 24                    # after conv2
HP = WP = 12                    # after 2x2/2 max pool
C1, C2 = 32, 64                 # conv channels
N_TAPS = (2 * K - 1) ** 2       # 25 extended conv1 taps (dh, dw) with dh, dw in [0, 5)
N_REP = K * K * C1              # 288 (kh, kw, c) columns of the replicated conv1 output
M2W = (H2 - 1) * W0 + W2        # 668 "wide" conv2 positions (flat index j = h2*28 + w2)
NPOOL = 2 * (HP - 1) * W0 + 2 * (WP - 1) + 1   # 639 pooling-max positions
N_FLAT = HP * WP * C2           # 9216
N_HID = 128
N_OUT = 10
N_OUT_PAD = 128                 # fc2 padded to a full 128-lane output
TK_FC1 = 2304                   # fc1 K tile (9216 = 4 * 2304)

# Extended-im2col tap offsets into the flat (784,) image: dh*28 + dw, dh/dw in [0,5).
_P_OFFSETS = tuple(dh * W0 + dw for dh in range(2 * K - 1) for dw in range(2 * K - 1))


def _largest_divisor(n, candidates):
    for c in candidates:
        if n % c == 0:
            return c
    return 1


def _pool_select():
    # selT[j, ph*12+pw] = 1  iff  j == 56*ph + 2*pw  (even-index extraction of the
    # 2x2 pooling maxima + (H, W) flatten), built host-side so no vector int
    # div/mod is needed in-kernel.
    j = np.arange(NPOOL)[:, None]
    r = np.arange(HP * WP)[None, :]
    tgt = (r // WP) * (2 * W0) + (r % WP) * 2
    return jnp.asarray(j == tgt, dtype=jnp.bfloat16)        # (639, 144)


_SEL_T = _pool_select()


# ----------------------------------------------------------------------------
# Kernel 1: fused conv stage (batch-blocked).
#   Per image: 2 matmuls (folded conv1+ReLU, conv2) + 3 vector maxes + 1
#   selection matmul for pool/flatten.  Output (B, 64, 144) bf16 in (C, H, W)
#   order so the later flatten is a free reshape.
# ----------------------------------------------------------------------------
def _conv_stage_kernel(p_ref, w1_ref, b1_ref, w2_ref, b2_ref, sel_ref, o_ref):
    w1t = w1_ref[...]            # (288, 25)  bf16  extended conv1 weight (transposed)
    b1e = b1_ref[...]            # (288, 1)   f32
    w2t = w2_ref[...]            # (64, 288)  bf16  conv2 weight (transposed)
    b2 = b2_ref[...]             # (64, 1)    f32
    sel = sel_ref[...]           # (639, 144) bf16  pool/flatten selection

    def one_image(i, carry):
        pt = p_ref[i]                                                  # (25, 668) bf16
        a1 = jnp.dot(w1t, pt, preferred_element_type=jnp.float32)      # (288, 668) f32
        a1 = jnp.maximum(a1 + b1e, 0.0).astype(jnp.bfloat16)           # replicated relu(conv1)
        y2 = jnp.dot(w2t, a1, preferred_element_type=jnp.float32)      # (64, 668) conv2 (wide)
        am = jnp.maximum(
            jnp.maximum(y2[:, 0:NPOOL], y2[:, 1:NPOOL + 1]),
            jnp.maximum(y2[:, W0:W0 + NPOOL], y2[:, W0 + 1:W0 + 1 + NPOOL]),
        )                                                              # (64, 639) 2x2 maxima
        pooled = jnp.dot(am.astype(jnp.bfloat16), sel,
                         preferred_element_type=jnp.float32) + b2      # (64, 144)
        o_ref[i] = pooled.astype(o_ref.dtype)
        return carry

    jax.lax.fori_loop(0, p_ref.shape[0], one_image, 0)


def conv_stage(pt, w1e_t, b1e, w2m_t, b2):
    B = pt.shape[0]
    blk = _largest_divisor(B, (8, 4, 2, 1))
    return pl.pallas_call(
        _conv_stage_kernel,
        out_shape=jax.ShapeDtypeStruct((B, C2, HP * WP), jnp.bfloat16),
        grid=(B // blk,),
        in_specs=[
            pl.BlockSpec((blk, N_TAPS, M2W), lambda b: (b, 0, 0)),
            pl.BlockSpec((N_REP, N_TAPS), lambda b: (0, 0)),
            pl.BlockSpec((N_REP, 1), lambda b: (0, 0)),
            pl.BlockSpec((C2, N_REP), lambda b: (0, 0)),
            pl.BlockSpec((C2, 1), lambda b: (0, 0)),
            pl.BlockSpec((NPOOL, HP * WP), lambda b: (0, 0)),
        ],
        out_specs=pl.BlockSpec((blk, C2, HP * WP), lambda b: (b, 0, 0)),
        compiler_params=pltpu.CompilerParams(dimension_semantics=("parallel",)),
    )(pt, w1e_t, b1e, w2m_t, b2, _SEL_T)


# ----------------------------------------------------------------------------
# Kernel 2: fused MLP head.  grid = (M_tiles, K_tiles); fc1 is K-tiled so the
# fc1 weight DMA overlaps the MXU, M-tiled ("parallel") over the batch.  fc2 is
# padded to 128 output lanes; log_softmax runs on the last K step.
# ----------------------------------------------------------------------------
def _head_kernel(x_ref, w1_ref, b1_ref, w2_ref, b2_ref, o_ref, acc_ref):
    k = pl.program_id(1)

    @pl.when(k == 0)
    def _():
        acc_ref[...] = jnp.zeros_like(acc_ref)

    acc_ref[...] += jnp.dot(x_ref[...], w1_ref[...],
                            preferred_element_type=jnp.float32)

    @pl.when(k == pl.num_programs(1) - 1)
    def _():
        h = jnp.maximum(acc_ref[...] + b1_ref[...], 0.0)
        # TODO(synk): dropout2 (p=0.5) is eval-mode identity; train-mode RNG masking not implemented.
        logits = jnp.dot(h.astype(jnp.bfloat16), w2_ref[...],
                         preferred_element_type=jnp.float32) + b2_ref[...]
        mx = jnp.max(logits, axis=-1, keepdims=True)
        s = logits - mx
        lse = jnp.log(jnp.sum(jnp.exp(s), axis=-1, keepdims=True))
        o_ref[...] = (s - lse).astype(o_ref.dtype)


def mlp_head(x, w1, b1, w2, b2, *, tk=TK_FC1):
    B, D = x.shape
    assert D % tk == 0
    if B <= 256:
        tm = B
    else:
        tm = _largest_divisor(B, (256, 128, 64, 32, 16, 8))
        if tm == 1:
            tm = B
    return pl.pallas_call(
        _head_kernel,
        out_shape=jax.ShapeDtypeStruct((B, N_OUT_PAD), jnp.float32),
        grid=(B // tm, D // tk),
        in_specs=[
            pl.BlockSpec((tm, tk), lambda m, k: (m, k)),
            pl.BlockSpec((tk, N_HID), lambda m, k: (k, 0)),
            pl.BlockSpec((1, N_HID), lambda m, k: (0, 0)),
            pl.BlockSpec((N_HID, N_OUT_PAD), lambda m, k: (0, 0)),
            pl.BlockSpec((1, N_OUT_PAD), lambda m, k: (0, 0)),
        ],
        out_specs=pl.BlockSpec((tm, N_OUT_PAD), lambda m, k: (m, 0)),
        scratch_shapes=[pltpu.VMEM((tm, N_HID), jnp.float32)],
        compiler_params=pltpu.CompilerParams(
            dimension_semantics=("parallel", "arbitrary")),
    )(x, w1, b1, w2, b2)


# ----------------------------------------------------------------------------
# Full forward pass.
# ----------------------------------------------------------------------------
def net_forward(x_nchw, params):
    B = x_nchw.shape[0]
    xf = x_nchw.reshape(B, H0 * W0).astype(jnp.bfloat16)                # (B, 784)
    # Extended im2col: 25 shifted flat views (taps in sublanes, spatial in lanes).
    pt = jnp.stack([xf[:, o:o + M2W] for o in _P_OFFSETS], axis=1)      # (B, 25, 668)

    pooled = conv_stage(pt, params["conv1_w"], params["conv1_b"],
                        params["conv2_w"], params["conv2_b"])           # (B, 64, 144) bf16

    # TODO(synk): dropout1 (Dropout2d p=0.25) is eval-mode identity.
    # (C, H, W) flatten == torch.flatten order; fc1_w rows use the same order.
    flat = pooled.reshape(B, N_FLAT)

    out = mlp_head(flat, params["fc1_w"], params["fc1_b"],
                   params["fc2_w"], params["fc2_b"])                    # (B, 128) f32
    return out[:, :N_OUT]


# ----------------------------------------------------------------------------
# Deterministic parameter init (shapes from Net.__init__) + one-time "offline"
# conversion to kernel layouts (extended/folded conv weights, bf16, padding).
# ----------------------------------------------------------------------------
def init_params(key):
    ks = jax.random.split(key, 8)

    def u(k, shape, fan_in):
        bound = 1.0 / jnp.sqrt(jnp.float32(fan_in))
        return jax.random.uniform(k, shape, jnp.float32, -bound, bound)

    return {
        "conv1_w": u(ks[0], (K, K, 1, C1), K * K),          # (KH, KW, Cin, Cout)
        "conv1_b": u(ks[1], (C1,), K * K),
        "conv2_w": u(ks[2], (K, K, C1, C2), K * K * C1),
        "conv2_b": u(ks[3], (C2,), K * K * C1),
        # fc1_w rows are in (C, H, W)-flatten order (== torch.flatten order);
        # importing torch weights only needs the Linear (out,in)->(in,out) transpose.
        "fc1_w":   u(ks[4], (N_FLAT, N_HID), N_FLAT),
        "fc1_b":   u(ks[5], (N_HID,), N_FLAT),
        "fc2_w":   u(ks[6], (N_HID, N_OUT), N_HID),
        "fc2_b":   u(ks[7], (N_OUT,), N_HID),
    }


def prepare_params(p):
    # Fold the 3x3 conv2 tap shifts into an "extended" conv1 weight so the conv
    # stage is exactly two matmuls per image:
    #   W1e[(dh, dw), (kh, kw, c)] = conv1_w[dh-kh, dw-kw, 0, c]  (0 if out of range)
    w1 = p["conv1_w"][:, :, 0, :]                                       # (3, 3, 32)
    e = jnp.zeros((2 * K - 1, 2 * K - 1, K, K, C1), jnp.float32)
    for kh in range(K):
        for kw in range(K):
            e = e.at[kh:kh + K, kw:kw + K, kh, kw, :].set(w1)
    w1e_t = e.reshape(N_TAPS, N_REP).T.astype(jnp.bfloat16)             # (288, 25)
    b1e = jnp.tile(p["conv1_b"], K * K).reshape(N_REP, 1).astype(jnp.float32)
    w2m_t = p["conv2_w"].reshape(N_REP, C2).T.astype(jnp.bfloat16)      # (64, 288)
    b2 = p["conv2_b"].reshape(C2, 1).astype(jnp.float32)

    # fc2 padded to a full 128-lane output; padded bias = -1e30 so the padded
    # logits vanish under log_softmax (wrapper slices back to 10 classes).
    fc2_w = jnp.zeros((N_HID, N_OUT_PAD), jnp.float32).at[:, :N_OUT].set(p["fc2_w"])
    fc2_b = jnp.full((N_OUT_PAD,), -1e30, jnp.float32).at[:N_OUT].set(p["fc2_b"])

    return {
        "conv1_w": w1e_t,
        "conv1_b": b1e,
        "conv2_w": w2m_t,
        "conv2_b": b2,
        "fc1_w":   p["fc1_w"].astype(jnp.bfloat16),                     # (9216, 128)
        "fc1_b":   p["fc1_b"].reshape(1, N_HID).astype(jnp.float32),
        "fc2_w":   fc2_w.astype(jnp.bfloat16),                          # (128, 128)
        "fc2_b":   fc2_b.reshape(1, N_OUT_PAD),
    }


# ----------------------------------------------------------------------------
# Pure-JAX f32 reference (same eval-mode semantics as the torch module).
# ----------------------------------------------------------------------------
def ref_forward(x_nchw, p):
    B = x_nchw.shape[0]
    xs = jnp.transpose(x_nchw, (0, 2, 3, 1))                            # (B, 28, 28, 1)
    y1 = sum(xs[:, kh:kh + H1, kw:kw + W1, :] * p["conv1_w"][kh, kw, 0]
             for kh in range(K) for kw in range(K)) + p["conv1_b"]
    y1 = jnp.maximum(y1, 0.0)                                           # (B, 26, 26, 32)
    y2 = sum(jnp.einsum("bhwc,cd->bhwd",
                        y1[:, kh:kh + H2, kw:kw + W2, :], p["conv2_w"][kh, kw])
             for kh in range(K) for kw in range(K)) + p["conv2_b"]      # (B, 24, 24, 64)
    pooled = y2.reshape(B, HP, 2, WP, 2, C2).max(axis=(2, 4))           # (B, 12, 12, 64)
    flat = jnp.transpose(pooled, (0, 3, 1, 2)).reshape(B, N_FLAT)       # (C, H, W) order
    h = jnp.maximum(flat @ p["fc1_w"] + p["fc1_b"], 0.0)
    logits = h @ p["fc2_w"] + p["fc2_b"]
    return jax.nn.log_softmax(logits, axis=-1)


if __name__ == "__main__":
    root = jax.random.PRNGKey(0)
    k_x, k_p = jax.random.split(root)

    # Input: batch=2, MNIST-shaped (1, 28, 28) — required by fc1's 9216 input dim.
    x = jax.random.normal(k_x, (2, 1, 28, 28), dtype=jnp.float32)
    raw = init_params(k_p)
    params = prepare_params(raw)          # one-time, outside the jitted forward

    fwd = jax.jit(net_forward)
    out = jax.block_until_ready(fwd(x, params))

    assert out.shape == (2, N_OUT), out.shape
    assert bool(jnp.all(jnp.isfinite(out)))
    # log_softmax rows should (approximately) sum to 1 after exp
    assert bool(jnp.allclose(jnp.sum(jnp.exp(out), axis=1), 1.0, atol=1e-4))

    # Tolerance-asserted comparison against a pure-JAX f32 reference
    # (kernel path uses bf16 operands with f32 accumulation).
    ref = ref_forward(x, raw)
    max_err = float(jnp.max(jnp.abs(out - ref)))
    assert max_err < 0.1, max_err

    print("KERNEL_OK")
</pallas_src>

<mosaic_0001>
module attributes {stable_mosaic.version = 11 : i64} {
  func.func @_conv_stage_kernel(%arg0: i32, %arg1: memref<2x25x668xbf16, #tpu.memory_space<vmem>>, %arg2: memref<288x25xbf16, #tpu.memory_space<vmem>>, %arg3: memref<288x1xf32, #tpu.memory_space<vmem>>, %arg4: memref<64x288xbf16, #tpu.memory_space<vmem>>, %arg5: memref<64x1xf32, #tpu.memory_space<vmem>>, %arg6: memref<639x144xbf16, #tpu.memory_space<vmem>>, %arg7: memref<2x64x144xbf16, #tpu.memory_space<vmem>>) attributes {dimension_semantics = [#tpu.dimension_semantics<parallel>], iteration_bounds = array<i64: 1>, scalar_prefetch = 0 : i64, scratch_operands = 0 : i64, tpu.core_type = #tpu.core_type<tc>, window_params = [{transform_indices = @transform_0, window_bounds = array<i64: 2, 25, 668>}, {pipeline_mode = #tpu.pipeline_mode<synchronous>, transform_indices = @transform_1, window_bounds = array<i64: 288, 25>}, {pipeline_mode = #tpu.pipeline_mode<synchronous>, transform_indices = @transform_2, window_bounds = array<i64: 288, 1>}, {pipeline_mode = #tpu.pipeline_mode<synchronous>, transform_indices = @transform_3, window_bounds = array<i64: 64, 288>}, {pipeline_mode = #tpu.pipeline_mode<synchronous>, transform_indices = @transform_4, window_bounds = array<i64: 64, 1>}, {pipeline_mode = #tpu.pipeline_mode<synchronous>, transform_indices = @transform_5, window_bounds = array<i64: 639, 144>}, {transform_indices = @transform_6, window_bounds = array<i64: 2, 64, 144>}]} {
    %c0 = arith.constant 0 : index
    %c0_0 = arith.constant 0 : index
    %0 = vector.load %arg2[%c0, %c0_0] : memref<288x25xbf16, #tpu.memory_space<vmem>>, vector<288x25xbf16>
    %c0_1 = arith.constant 0 : index
    %c0_2 = arith.constant 0 : index
    %1 = vector.load %arg3[%c0_1, %c0_2] : memref<288x1xf32, #tpu.memory_space<vmem>>, vector<288x1xf32>
    %c0_3 = arith.constant 0 : index
    %c0_4 = arith.constant 0 : index
    %2 = vector.load %arg4[%c0_3, %c0_4] : memref<64x288xbf16, #tpu.memory_space<vmem>>, vector<64x288xbf16>
    %c0_5 = arith.constant 0 : index
    %c0_6 = arith.constant 0 : index
    %3 = vector.load %arg5[%c0_5, %c0_6] : memref<64x1xf32, #tpu.memory_space<vmem>>, vector<64x1xf32>
    %c0_7 = arith.constant 0 : index
    %c0_8 = arith.constant 0 : index
    %4 = vector.load %arg6[%c0_7, %c0_8] : memref<639x144xbf16, #tpu.memory_space<vmem>>, vector<639x144xbf16>
    %c0_i32 = arith.constant 0 : i32
    %c2_i32 = arith.constant 2 : i32
    %5 = arith.addi %c0_i32, %c2_i32 : i32
    %c1_i32 = arith.constant 1 : i32
    scf.for %arg8 = %c0_i32 to %5 step %c1_i32  : i32 {
      %6 = arith.index_cast %arg8 : i32 to index
      %c0_10 = arith.constant 0 : index
      %c0_11 = arith.constant 0 : index
      %7 = vector.load %arg1[%6, %c0_10, %c0_11] : memref<2x25x668xbf16, #tpu.memory_space<vmem>>, vector<1x25x668xbf16>
      %8 = vector.shape_cast %7 : vector<1x25x668xbf16> to vector<25x668xbf16>
      %cst = arith.constant dense<0.000000e+00> : vector<288x668xf32>
      %9 = tpu.matmul %0, %8, %cst {dimension_numbers = #tpu.dot_dimension_numbers<[1], [0], [0], [1], [0, 0, 1, 1], [], []>} : vector<288x25xbf16>, vector<25x668xbf16>, vector<288x668xf32> -> vector<288x668xf32>
      %10 = vector.broadcast %1 : vector<288x1xf32> to vector<288x668xf32>
      %11 = arith.addf %9, %10 : vector<288x668xf32>
      %cst_12 = arith.constant 0.000000e+00 : f32
      %12 = vector.broadcast %cst_12 : f32 to vector<288x668xf32>
      %13 = arith.maximumf %11, %12 : vector<288x668xf32>
      %14 = arith.truncf %13 : vector<288x668xf32> to vector<288x668xbf16>
      %cst_13 = arith.constant dense<0.000000e+00> : vector<64x668xf32>
      %15 = tpu.matmul %2, %14, %cst_13 {dimension_numbers = #tpu.dot_dimension_numbers<[1], [0], [0], [1], [0, 0, 1, 1], [], []>} : vector<64x288xbf16>, vector<288x668xbf16>, vector<64x668xf32> -> vector<64x668xf32>
      %16 = vector.extract_strided_slice %15 {offsets = [0, 0], sizes = [64, 639], strides = [1, 1]} : vector<64x668xf32> to vector<64x639xf32>
      %17 = vector.extract_strided_slice %15 {offsets = [0, 1], sizes = [64, 639], strides = [1, 1]} : vector<64x668xf32> to vector<64x639xf32>
      %18 = arith.maximumf %16, %17 : vector<64x639xf32>
      %19 = vector.extract_strided_slice %15 {offsets = [0, 28], sizes = [64, 639], strides = [1, 1]} : vector<64x668xf32> to vector<64x639xf32>
      %20 = vector.extract_strided_slice %15 {offsets = [0, 29], sizes = [64, 639], strides = [1, 1]} : vector<64x668xf32> to vector<64x639xf32>
      %21 = arith.maximumf %19, %20 : vector<64x639xf32>
      %22 = arith.maximumf %18, %21 : vector<64x639xf32>
      %23 = arith.truncf %22 : vector<64x639xf32> to vector<64x639xbf16>
      %cst_14 = arith.constant dense<0.000000e+00> : vector<64x144xf32>
      %24 = tpu.matmul %23, %4, %cst_14 {dimension_numbers = #tpu.dot_dimension_numbers<[1], [0], [0], [1], [0, 0, 1, 1], [], []>} : vector<64x639xbf16>, vector<639x144xbf16>, vector<64x144xf32> -> vector<64x144xf32>
      %25 = vector.broadcast %3 : vector<64x1xf32> to vector<64x144xf32>
      %26 = arith.addf %24, %25 : vector<64x144xf32>
      %27 = arith.truncf %26 : vector<64x144xf32> to vector<64x144xbf16>
      %28 = arith.index_cast %arg8 : i32 to index
      %c0_15 = arith.constant 0 : index
      %c0_16 = arith.constant 0 : index
      %29 = vector.load %arg7[%28, %c0_15, %c0_16] : memref<2x64x144xbf16, #tpu.memory_space<vmem>>, vector<1x64x144xbf16>
      %30 = vector.shape_cast %29 : vector<1x64x144xbf16> to vector<64x144xbf16>
      %31 = vector.shape_cast %27 : vector<64x144xbf16> to vector<1x64x144xbf16>
      tpu.vector_store %arg7[%28, %c0_15, %c0_16], %31 {strides = array<i32>} : memref<2x64x144xbf16, #tpu.memory_space<vmem>>, vector<1x64x144xbf16>,
    }
    %c2_i32_9 = arith.constant 2 : i32
    return
  }
  func.func @transform_0(%arg0: i32) -> (i32, i32, i32) {
    %c0_i32 = arith.constant 0 : i32
    %c0_i32_0 = arith.constant 0 : i32
    %c0_i32_1 = arith.constant 0 : i32
    return %arg0, %c0_i32, %c0_i32_0 : i32, i32, i32
  }
  func.func @transform_1(%arg0: i32) -> (i32, i32) {
    %c0_i32 = arith.constant 0 : i32
    %c0_i32_0 = arith.constant 0 : i32
    %c0_i32_1 = arith.constant 0 : i32
    return %c0_i32, %c0_i32_0 : i32, i32
  }
  func.func @transform_2(%arg0: i32) -> (i32, i32) {
    %c0_i32 = arith.constant 0 : i32
    %c0_i32_0 = arith.constant 0 : i32
    %c0_i32_1 = arith.constant 0 : i32
    return %c0_i32, %c0_i32_0 : i32, i32
  }
  func.func @transform_3(%arg0: i32) -> (i32, i32) {
    %c0_i32 = arith.constant 0 : i32
    %c0_i32_0 = arith.constant 0 : i32
    %c0_i32_1 = arith.constant 0 : i32
    return %c0_i32, %c0_i32_0 : i32, i32
  }
  func.func @transform_4(%arg0: i32) -> (i32, i32) {
    %c0_i32 = arith.constant 0 : i32
    %c0_i32_0 = arith.constant 0 : i32
    %c0_i32_1 = arith.constant 0 : i32
    return %c0_i32, %c0_i32_0 : i32, i32
  }
  func.func @transform_5(%arg0: i32) -> (i32, i32) {
    %c0_i32 = arith.constant 0 : i32
    %c0_i32_0 = arith.constant 0 : i32
    %c0_i32_1 = arith.constant 0 : i32
    return %c0_i32, %c0_i32_0 : i32, i32
  }
  func.func @transform_6(%arg0: i32) -> (i32, i32, i32) {
    %c0_i32 = arith.constant 0 : i32
    %c0_i32_0 = arith.constant 0 : i32
    %c0_i32_1 = arith.constant 0 : i32
    return %arg0, %c0_i32, %c0_i32_0 : i32, i32, i32
  }
}

module attributes {stable_mosaic.version = 11 : i64} {
  func.func @_head_kernel(%arg0: i32, %arg1: i32, %arg2: memref<2x2304xbf16, #tpu.memory_space<vmem>>, %arg3: memref<2304x128xbf16, #tpu.memory_space<vmem>>, %arg4: memref<1x128xf32, #tpu.memory_space<vmem>>, %arg5: memref<128x128xbf16, #tpu.memory_space<vmem>>, %arg6: memref<1x128xf32, #tpu.memory_space<vmem>>, %arg7: memref<2x128xf32, #tpu.memory_space<vmem>>, %arg8: memref<2x128xf32, #tpu.memory_space<vmem>>) attributes {dimension_semantics = [#tpu.dimension_semantics<parallel>, #tpu.dimension_semantics<arbitrary>], iteration_bounds = array<i64: 1, 4>, scalar_prefetch = 0 : i64, scratch_operands = 1 : i64, tpu.core_type = #tpu.core_type<tc>, window_params = [{transform_indices = @transform_0, window_bounds = array<i64: 2, 2304>}, {transform_indices = @transform_1, window_bounds = array<i64: 2304, 128>}, {pipeline_mode = #tpu.pipeline_mode<synchronous>, transform_indices = @transform_2, window_bounds = array<i64: 1, 128>}, {pipeline_mode = #tpu.pipeline_mode<synchronous>, transform_indices = @transform_3, window_bounds = array<i64: 128, 128>}, {pipeline_mode = #tpu.pipeline_mode<synchronous>, transform_indices = @transform_4, window_bounds = array<i64: 1, 128>}, {transform_indices = @transform_5, window_bounds = array<i64: 2, 128>}]} {
    %c0_i32 = arith.constant 0 : i32
    %0 = arith.cmpi eq, %arg1, %c0_i32 : i32
    %1 = arith.extui %0 : i1 to i32
    %c0_i32_0 = arith.constant 0 : i32
    %2 = arith.cmpi ne, %1, %c0_i32_0 : i32
    scf.if %2 {
      %cst_9 = arith.constant 0.000000e+00 : f32
      %12 = vector.broadcast %cst_9 : f32 to vector<2x128xf32>
      %c0_10 = arith.constant 0 : index
      %c0_11 = arith.constant 0 : index
      %13 = vector.load %arg8[%c0_10, %c0_11] : memref<2x128xf32, #tpu.memory_space<vmem>>, vector<2x128xf32>
      tpu.vector_store %arg8[%c0_10, %c0_11], %12 {strides = array<i32>} : memref<2x128xf32, #tpu.memory_space<vmem>>, vector<2x128xf32>,
    } else {
    }
    %c0 = arith.constant 0 : index
    %c0_1 = arith.constant 0 : index
    %3 = vector.load %arg8[%c0, %c0_1] : memref<2x128xf32, #tpu.memory_space<vmem>>, vector<2x128xf32>
    %c0_2 = arith.constant 0 : index
    %c0_3 = arith.constant 0 : index
    %4 = vector.load %arg2[%c0_2, %c0_3] : memref<2x2304xbf16, #tpu.memory_space<vmem>>, vector<2x2304xbf16>
    %c0_4 = arith.constant 0 : index
    %c0_5 = arith.constant 0 : index
    %5 = vector.load %arg3[%c0_4, %c0_5] : memref<2304x128xbf16, #tpu.memory_space<vmem>>, vector<2304x128xbf16>
    %cst = arith.constant dense<0.000000e+00> : vector<2x128xf32>
    %6 = tpu.matmul %4, %5, %cst {dimension_numbers = #tpu.dot_dimension_numbers<[1], [0], [0], [1], [0, 0, 1, 1], [], []>} : vector<2x2304xbf16>, vector<2304x128xbf16>, vector<2x128xf32> -> vector<2x128xf32>
    %7 = arith.addf %3, %6 : vector<2x128xf32>
    %c0_6 = arith.constant 0 : index
    %c0_7 = arith.constant 0 : index
    %8 = vector.load %arg8[%c0_6, %c0_7] : memref<2x128xf32, #tpu.memory_space<vmem>>, vector<2x128xf32>
    tpu.vector_store %arg8[%c0_6, %c0_7], %7 {strides = array<i32>} : memref<2x128xf32, #tpu.memory_space<vmem>>, vector<2x128xf32>,
    %c3_i32 = arith.constant 3 : i32
    %9 = arith.cmpi eq, %arg1, %c3_i32 : i32
    %10 = arith.extui %9 : i1 to i32
    %c0_i32_8 = arith.constant 0 : i32
    %11 = arith.cmpi ne, %10, %c0_i32_8 : i32
    scf.if %11 {
      %c0_9 = arith.constant 0 : index
      %c0_10 = arith.constant 0 : index
      %12 = vector.load %arg8[%c0_9, %c0_10] : memref<2x128xf32, #tpu.memory_space<vmem>>, vector<2x128xf32>
      %c0_11 = arith.constant 0 : index
      %c0_12 = arith.constant 0 : index
      %13 = vector.load %arg4[%c0_11, %c0_12] : memref<1x128xf32, #tpu.memory_space<vmem>>, vector<1x128xf32>
      %14 = vector.broadcast %13 : vector<1x128xf32> to vector<2x128xf32>
      %15 = arith.addf %12, %14 : vector<2x128xf32>
      %cst_13 = arith.constant 0.000000e+00 : f32
      %16 = vector.broadcast %cst_13 : f32 to vector<2x128xf32>
      %17 = arith.maximumf %15, %16 : vector<2x128xf32>
      %18 = arith.truncf %17 : vector<2x128xf32> to vector<2x128xbf16>
      %c0_14 = arith.constant 0 : index
      %c0_15 = arith.constant 0 : index
      %19 = vector.load %arg5[%c0_14, %c0_15] : memref<128x128xbf16, #tpu.memory_space<vmem>>, vector<128x128xbf16>
      %cst_16 = arith.constant dense<0.000000e+00> : vector<2x128xf32>
      %20 = tpu.matmul %18, %19, %cst_16 {dimension_numbers = #tpu.dot_dimension_numbers<[1], [0], [0], [1], [0, 0, 1, 1], [], []>} : vector<2x128xbf16>, vector<128x128xbf16>, vector<2x128xf32> -> vector<2x128xf32>
      %c0_17 = arith.constant 0 : index
      %c0_18 = arith.constant 0 : index
      %21 = vector.load %arg6[%c0_17, %c0_18] : memref<1x128xf32, #tpu.memory_space<vmem>>, vector<1x128xf32>
      %22 = vector.broadcast %21 : vector<1x128xf32> to vector<2x128xf32>
      %23 = arith.addf %20, %22 : vector<2x128xf32>
      %cst_19 = arith.constant dense<0xFF800000> : vector<2xf32>
      %24 = vector.multi_reduction <maximumf>, %23, %cst_19 [1] : vector<2x128xf32> to vector<2xf32>
      %25 = vector.shape_cast %24 : vector<2xf32> to vector<2x1xf32>
      %26 = vector.broadcast %25 : vector<2x1xf32> to vector<2x128xf32>
      %27 = arith.subf %23, %26 : vector<2x128xf32>
      %28 = math.exp %27 : vector<2x128xf32>
      %cst_20 = arith.constant dense<0.000000e+00> : vector<2xf32>
      %29 = vector.multi_reduction <add>, %28, %cst_20 [1] : vector<2x128xf32> to vector<2xf32>
      %30 = vector.shape_cast %29 : vector<2xf32> to vector<2x1xf32>
      %31 = math.log %30 : vector<2x1xf32>
      %32 = vector.broadcast %31 : vector<2x1xf32> to vector<2x128xf32>
      %33 = arith.subf %27, %32 : vector<2x128xf32>
      %c0_21 = arith.constant 0 : index
      %c0_22 = arith.constant 0 : index
      %34 = vector.load %arg7[%c0_21, %c0_22] : memref<2x128xf32, #tpu.memory_space<vmem>>, vector<2x128xf32>
      tpu.vector_store %arg7[%c0_21, %c0_22], %33 {strides = array<i32>} : memref<2x128xf32, #tpu.memory_space<vmem>>, vector<2x128xf32>,
    } else {
    }
    return
  }
  func.func @transform_0(%arg0: i32, %arg1: i32) -> (i32, i32) {
    %c0_i32 = arith.constant 0 : i32
    return %arg0, %arg1 : i32, i32
  }
  func.func @transform_1(%arg0: i32, %arg1: i32) -> (i32, i32) {
    %c0_i32 = arith.constant 0 : i32
    %c0_i32_0 = arith.constant 0 : i32
    return %arg1, %c0_i32 : i32, i32
  }
  func.func @transform_2(%arg0: i32, %arg1: i32) -> (i32, i32) {
    %c0_i32 = arith.constant 0 : i32
    %c0_i32_0 = arith.constant 0 : i32
    %c0_i32_1 = arith.constant 0 : i32
    return %c0_i32, %c0_i32_0 : i32, i32
  }
  func.func @transform_3(%arg0: i32, %arg1: i32) -> (i32, i32) {
    %c0_i32 = arith.constant 0 : i32
    %c0_i32_0 = arith.constant 0 : i32
    %c0_i32_1 = arith.constant 0 : i32
    return %c0_i32, %c0_i32_0 : i32, i32
  }
  func.func @transform_4(%arg0: i32, %arg1: i32) -> (i32, i32) {
    %c0_i32 = arith.constant 0 : i32
    %c0_i32_0 = arith.constant 0 : i32
    %c0_i32_1 = arith.constant 0 : i32
    return %c0_i32, %c0_i32_0 : i32, i32
  }
  func.func @transform_5(%arg0: i32, %arg1: i32) -> (i32, i32) {
    %c0_i32 = arith.constant 0 : i32
    %c0_i32_0 = arith.constant 0 : i32
    return %arg0, %c0_i32 : i32, i32
  }
}

</mosaic_0001>

<llo_original>
// kernel: net_forward.3
$region0: #{net_forward.3}
  #allocation0 [shape = 'u32[]', space=smem, size = 0x4, offset = 0x4, fixed_abs, tag = 'smem constant byte address 0x4 - core index']
  #allocation1 [shape = 'u32[144,128]{1,0:T(1,128)}', space=vmem, size = 0x12000, scoped, tag = 'internal scratch']
  #allocation2 [shape = 'f32[2,128]{1,0:T(2,128)}', space=vmem, size = 0x400, scoped, tag = 'scratch operand']
  %s0 = inlined_call_operand.vmem [shape: bf16[2,9216], index: 0, kind: input, shape index: {}]
  %s1 = inlined_call_operand.hbm [shape: bf16[9216,128], index: 1, kind: input, shape index: {}]
  %s2 = inlined_call_operand.hbm [shape: f32[1,128], index: 2, kind: input, shape index: {}]
  %s3 = inlined_call_operand.hbm [shape: bf16[128,128], index: 3, kind: input, shape index: {}]
  %s4 = inlined_call_operand.hbm [shape: f32[1,128], index: 4, kind: input, shape index: {}]
  %s5 = inlined_call_operand.hbm [shape: f32[2,128], index: 5, kind: output, shape index: {}]
  %s6 = sld [smem:[#allocation0]]
  $region77: #{net_forward.3} parent=0
    _
  %s8 = ssub.s32 1, %s6
  %s9 = scalar_select 0, %s8, %s6
  $region1: #{net_forward.3} parent=0
    #allocation3 [shape = 'u8[1179648]{0}', space=vmem, size = 0x120000, scoped, tag = 'input window, operand 1']
    #allocation4 [shape = 's32[2]{0}', space=sflag, size = 0x8, scoped, tag = 'scoped memory for net_forward.3']
    #allocation5 [shape = 's32[2]{0}', space=sflag, size = 0x8, scoped, tag = 'scoped memory for net_forward.3']
    #allocation6 [shape = 'u8[512]{0}', space=vmem, size = 0x400, scoped, tag = 'input window, operand 2, single buffered']
    #allocation7 [shape = 's32[1]{0}', space=sflag, size = 0x4, scoped, tag = 'scoped memory for net_forward.3']
    #allocation8 [shape = 'u8[32768]{0}', space=vmem, size = 0x8000, scoped, tag = 'input window, operand 3, single buffered']
    #allocation9 [shape = 'u8[512]{0}', space=vmem, size = 0x400, scoped, tag = 'input window, operand 4, single buffered']
    #allocation10 [shape = 's32[1]{0}', space=sflag, size = 0x4, scoped, tag = 'scoped memory for net_forward.3']
    #allocation11 [shape = 'u8[1024]{0}', space=vmem, size = 0x400, scoped, tag = 'output window, operand 0, single buffered']
    %10 = vsyncpa [#allocation4], 0
    %s11 = scalar_lea.sflag [#allocation4], 1
    %12 = vsyncpa %s11, 0
    %13 = vsyncpa [#allocation7], 0
    %14 = vsyncpa [#allocation10], 0
    %15 = vsyncpa [#allocation5], 0
    loop: start=0, step=1, limit=6
    $region2: #{net_forward.3} parent=1 // loop_pre_header
      _
    $region3: #{net_forward.3} parent=1 // loop_header
      %s17 = sphi 0, %s21
      %p18 = scmp.ge.s32.totalorder %s17, 6
      %s24 = sphi 0, %s36
      %s25 = sphi 0, %s32
      %s26 = sphi 0, %s24
      %s27 = sphi 0, %s25
      %s28 = sphi 0, %s26
      %s29 = sphi 0, %s27
      %s41 = sphi 0, %s43
      %s44 = sphi 0, %s41
      %s45 = sphi 0, %s44
      %s61 = sphi 0, %s45
      %s67 = sphi 0, %s69
      %s70 = sphi 0, %s67
      %s71 = sphi 0, %s70
      %s87 = sphi 0, %s71
      %s91 = sphi 0, %s91
      %s93 = sphi 0, %s91
      %s94 = sphi 0, %s93
      %s108 = sphi 0, %s94
      %s112 = sphi 0, %s112
      %s114 = sphi 0, %s112
      %s115 = sphi 0, %s114
      %s129 = sphi 0, %s115
      %s133 = sphi 0, %s133
      %s135 = sphi 0, %s133
      %s136 = sphi 0, %s135
      %s150 = sphi 0, %s136
      %s156 = sphi 0, %s158
      %s159 = sphi 0, %s156
      %s160 = sphi 0, %s159
      %s176 = sphi 0, %s160
    $region4: #{net_forward.3} parent=1 // loop_header_branch
      %20 = sbr.rel (%p18) target = $region8
    $region5: #{net_forward.3} parent=1 // loop_body
      %s22 = ssub.s32 %s17, 1
      %s23 = ssub.s32 %s17, 2
      %s30 = sadd.s32 1, %s25
      %p31 = scmp.ge.s32.totalorder %s30, 4
      %s32 = scalar_select %p31, 0, %s30
      %s33 = sadd.s32 1, %s24
      %s34 = scalar_select %p31, %s33, %s24
      %p35 = scmp.ge.s32.totalorder %s34, 1
      %s36 = scalar_select %p35, 0, %s34
      %s37 = ssub.s32 %s24, %s36
      %s38 = ssub.s32 %s25, %s32
      %s39 = sor.u32 %s37, %s38
      %p40 = scmp.eq.s32.totalorder %s39, 0
      %s42 = sadd.s32 %s41, 1
      %s43 = scalar_select %p40, %s41, %s42
      %p46 = pneg %p40
      %p47 = scmp.eq.s32.totalorder %s17, 3
      %p48 = por %p46, %p47
      %p49 = scmp.ne.s32.totalorder %s41, %s44
      %p50 = scmp.eq.s32.totalorder %s17, 0
      %p51 = por %p49, %p50
      %p52 = scmp.ne.s32.totalorder %s41, %s44
      %p53 = scmp.eq.s32.totalorder %s22, 3
      %p54 = por %p52, %p53
      %p55 = scmp.ne.s32.totalorder %s44, %s45
      %p56 = scmp.eq.s32.totalorder %s22, 0
      %p57 = por %p55, %p56
      %p58 = scmp.ne.s32.totalorder %s44, %s45
      %p59 = scmp.eq.s32.totalorder %s23, 3
      %p60 = por %p58, %p59
      %p62 = scmp.ne.s32.totalorder %s45, %s61
      %p63 = scmp.eq.s32.totalorder %s23, 0
      %p64 = por %p62, %p63
      %s65 = ssub.s32 %s25, %s32
      %p66 = scmp.eq.s32.totalorder %s65, 0
      %s68 = sadd.s32 %s67, 1
      %s69 = scalar_select %p66, %s67, %s68
      %p72 = pneg %p66
      %p73 = scmp.eq.s32.totalorder %s17, 3
      %p74 = por %p72, %p73
      %p75 = scmp.ne.s32.totalorder %s67, %s70
      %p76 = scmp.eq.s32.totalorder %s17, 0
      %p77 = por %p75, %p76
      %p78 = scmp.ne.s32.totalorder %s67, %s70
      %p79 = scmp.eq.s32.totalorder %s22, 3
      %p80 = por %p78, %p79
      %p81 = scmp.ne.s32.totalorder %s70, %s71
      %p82 = scmp.eq.s32.totalorder %s22, 0
      %p83 = por %p81, %p82
      %p84 = scmp.ne.s32.totalorder %s70, %s71
      %p85 = scmp.eq.s32.totalorder %s23, 3
      %p86 = por %p84, %p85
      %p88 = scmp.ne.s32.totalorder %s71, %s87
      %p89 = scmp.eq.s32.totalorder %s23, 0
      %p90 = por %p88, %p89
      %s92 = sadd.s32 %s91, 1
      %p95 = scmp.eq.s32.totalorder %s17, 3
      %p96 = scmp.ne.s32.totalorder %s91, %s93
      %p97 = scmp.eq.s32.totalorder %s17, 0
      %p98 = por %p96, %p97
      %p99 = scmp.ne.s32.totalorder %s91, %s93
      %p100 = scmp.eq.s32.totalorder %s22, 3
      %p101 = por %p99, %p100
      %p102 = scmp.ne.s32.totalorder %s93, %s94
      %p103 = scmp.eq.s32.totalorder %s22, 0
      %p104 = por %p102, %p103
      %p105 = scmp.ne.s32.totalorder %s93, %s94
      %p106 = scmp.eq.s32.totalorder %s23, 3
      %p107 = por %p105, %p106
      %p109 = scmp.ne.s32.totalorder %s94, %s108
      %p110 = scmp.eq.s32.totalorder %s23, 0
      %p111 = por %p109, %p110
      %s113 = sadd.s32 %s112, 1
      %p116 = scmp.eq.s32.totalorder %s17, 3
      %p117 = scmp.ne.s32.totalorder %s112, %s114
      %p118 = scmp.eq.s32.totalorder %s17, 0
      %p119 = por %p117, %p118
      %p120 = scmp.ne.s32.totalorder %s112, %s114
      %p121 = scmp.eq.s32.totalorder %s22, 3
      %p122 = por %p120, %p121
      %p123 = scmp.ne.s32.totalorder %s114, %s115
      %p124 = scmp.eq.s32.totalorder %s22, 0
      %p125 = por %p123, %p124
      %p126 = scmp.ne.s32.totalorder %s114, %s115
      %p127 = scmp.eq.s32.totalorder %s23, 3
      %p128 = por %p126, %p127
      %p130 = scmp.ne.s32.totalorder %s115, %s129
      %p131 = scmp.eq.s32.totalorder %s23, 0
      %p132 = por %p130, %p131
      %s134 = sadd.s32 %s133, 1
      %p137 = scmp.eq.s32.totalorder %s17, 3
      %p138 = scmp.ne.s32.totalorder %s133, %s135
      %p139 = scmp.eq.s32.totalorder %s17, 0
      %p140 = por %p138, %p139
      %p141 = scmp.ne.s32.totalorder %s133, %s135
      %p142 = scmp.eq.s32.totalorder %s22, 3
      %p143 = por %p141, %p142
      %p144 = scmp.ne.s32.totalorder %s135, %s136
      %p145 = scmp.eq.s32.totalorder %s22, 0
      %p146 = por %p144, %p145
      %p147 = scmp.ne.s32.totalorder %s135, %s136
      %p148 = scmp.eq.s32.totalorder %s23, 3
      %p149 = por %p147, %p148
      %p151 = scmp.ne.s32.totalorder %s136, %s150
      %p152 = scmp.eq.s32.totalorder %s23, 0
      %p153 = por %p151, %p152
      %s154 = ssub.s32 %s24, %s36
      %p155 = scmp.eq.s32.totalorder %s154, 0
      %s157 = sadd.s32 %s156, 1
      %s158 = scalar_select %p155, %s156, %s157
      %p161 = pneg %p155
      %p162 = scmp.eq.s32.totalorder %s17, 3
      %p163 = por %p161, %p162
      %p164 = scmp.ne.s32.totalorder %s156, %s159
      %p165 = scmp.eq.s32.totalorder %s17, 0
      %p166 = por %p164, %p165
      %p167 = scmp.ne.s32.totalorder %s156, %s159
      %p168 = scmp.eq.s32.totalorder %s22, 3
      %p169 = por %p167, %p168
      %p170 = scmp.ne.s32.totalorder %s159, %s160
      %p171 = scmp.eq.s32.totalorder %s22, 0
      %p172 = por %p170, %p171
      %p173 = scmp.ne.s32.totalorder %s159, %s160
      %p174 = scmp.eq.s32.totalorder %s23, 3
      %p175 = por %p173, %p174
      %p177 = scmp.ne.s32.totalorder %s160, %s176
      %p178 = scmp.eq.s32.totalorder %s23, 0
      %p179 = por %p177, %p178
      %p180 = scmp.le.s32.totalorder 1, %s17
      %p181 = scmp.lt.s32.totalorder %s17, 5
      %p182 = pnand %p180, %p181
      %p183 = pneg %p182
      // Predicated region
      $region9: #{net_forward.3} parent=5 // pred_check
        _
      $region10: #{net_forward.3} parent=5 // pred_check_branch
        %185 = sbr.rel (%p182) target = $region12
      $region11: #{net_forward.3} parent=5 // pred_region
        %s186 = ssub.s32 %s17, 1
        // Predicated region
        $region13: #{net_forward.3} parent=11 // pred_check
          %p187 = pneg %p104
        $region14: #{net_forward.3} parent=11 // pred_check_branch
          %189 = sbr.rel (%p187) target = $region16
        $region15: #{net_forward.3} parent=11 // pred_region
          %s191 = ssub.s32 16, 16
          %192 = vsyncadd [#allocation7], %s191
          %s194 = sshll.u32 [#allocation6], 4
          %s195 = int_to_ptr.vmem [resolvable:$true] %s194
          %197 = dma.hbm_to_vmem [thread:$0]  %s2, 16, %s195, [#allocation7]
        $region16: #{net_forward.3} parent=11 // pred_fallthru
          _
        // Predicated region
        $region17: #{net_forward.3} parent=11 // pred_check
          %p198 = pneg %p125
        $region18: #{net_forward.3} parent=11 // pred_check_branch
          %200 = sbr.rel (%p198) target = $region20
        $region19: #{net_forward.3} parent=11 // pred_region
          %s202 = ssub.s32 1024, 1024
          %203 = vsyncadd [#allocation7], %s202
          %s204 = sshll.u32 [#allocation8], 4
          %s205 = int_to_ptr.vmem [resolvable:$true] %s204
          %210 = dma.hbm_to_vmem [thread:$0]  %s3, 1024, %s205, [#allocation7], 64, 64, 4
        $region20: #{net_forward.3} parent=11 // pred_fallthru
          _
        // Predicated region
        $region21: #{net_forward.3} parent=11 // pred_check
          %p211 = pneg %p146
        $region22: #{net_forward.3} parent=11 // pred_check_branch
          %213 = sbr.rel (%p211) target = $region24
        $region23: #{net_forward.3} parent=11 // pred_region
          %s215 = ssub.s32 16, 16
          %216 = vsyncadd [#allocation10], %s215
          %s218 = sshll.u32 [#allocation9], 4
          %s219 = int_to_ptr.vmem [resolvable:$true] %s218
          %221 = dma.hbm_to_vmem [thread:$0]  %s4, 16, %s219, [#allocation10]
        $region24: #{net_forward.3} parent=11 // pred_fallthru
          _
      $region12: #{net_forward.3} parent=5 // pred_fallthru
        _
      %p222 = scmp.lt.s32.totalorder %s17, 4
      // Predicated region
      $region25: #{net_forward.3} parent=5 // pred_check
        %p223 = pneg %p222
      $region26: #{net_forward.3} parent=5 // pred_check_branch
        %225 = sbr.rel (%p223) target = $region28
      $region27: #{net_forward.3} parent=5 // pred_region
        // Predicated region
        $region29: #{net_forward.3} parent=27 // pred_check
          %p226 = pneg %p51
        $region30: #{net_forward.3} parent=27 // pred_check_branch
          %228 = sbr.rel (%p226) target = $region32
        $region31: #{net_forward.3} parent=27 // pred_region
          %s229 = smul.u32 18, %s25
          %p230 = scmp.lt.s32.totalorder %s24, 0
          %s231 = scalar_select %p230, %s24, 0
          %p232 = scmp.lt.s32.totalorder %s229, 71
          %s233 = scalar_select %p232, %s229, 71
          %s234 = smul.addr %s231, 72
          %s235 = sadd.s32 %s233, %s234
          %s236 = scalar_lea.vmem %s0, %s235
          %s237 = smul.u32 18, %s25
        $region32: #{net_forward.3} parent=27 // pred_fallthru
          _
        // Predicated region
        $region33: #{net_forward.3} parent=27 // pred_check
          %p238 = pneg %p77
        $region34: #{net_forward.3} parent=27 // pred_check_branch
          %240 = sbr.rel (%p238) target = $region36
        $region35: #{net_forward.3} parent=27 // pred_region
          %s241 = sand.u32 %s67, 1
          %s242 = scalar_lea.sflag [#allocation4], %s241
          %s243 = sand.u32 %s67, 1
          %s244 = smul.addr %s243, 1152
          %s245 = scalar_lea.vmem [#allocation3], %s244
          %s246 = smul.u32 288, %s25
          %s248 = ssub.s32 18432, 18432
          %249 = vsyncadd %s242, %s248
          %s250 = smul.addr %s246, 64
          %s251 = scalar_lea.hbm %s1, %s250
          %s252 = sshll.u32 %s245, 4
          %s253 = int_to_ptr.vmem [resolvable:$true] %s252
          %258 = dma.hbm_to_vmem [thread:$0]  %s251, 18432, %s253, %s242, 64, 64, 4
        $region36: #{net_forward.3} parent=27 // pred_fallthru
          _
      $region28: #{net_forward.3} parent=5 // pred_fallthru
        _
      %p259 = scmp.le.s32.totalorder 1, %s17
      %p260 = scmp.lt.s32.totalorder %s17, 5
      %p261 = pnand %p259, %p260
      %p262 = pneg %p261
      // Predicated region
      $region37: #{net_forward.3} parent=5 // pred_check
        _
      $region38: #{net_forward.3} parent=5 // pred_check_branch
        %264 = sbr.rel (%p261) target = $region40
      $region39: #{net_forward.3} parent=5 // pred_region
        %s265 = ssub.s32 %s17, 1
        %s266 = sand.u32 %s70, 1
        %s267 = scalar_lea.sflag [#allocation4], %s266
        %s268 = sand.u32 %s70, 1
        %s269 = smul.addr %s268, 1152
        %s270 = scalar_lea.vmem [#allocation3], %s269
        // Predicated region
        $region41: #{net_forward.3} parent=39 // pred_check
          %p271 = pneg %p83
        $region42: #{net_forward.3} parent=39 // pred_check_branch
          %273 = sbr.rel (%p271) target = $region44
        $region43: #{net_forward.3} parent=39 // pred_region
          %274 = dma.done %s267, 18432
        $region44: #{net_forward.3} parent=39 // pred_fallthru
          _
        // Predicated region
        $region45: #{net_forward.3} parent=39 // pred_check
          %p275 = pneg %p104
        $region46: #{net_forward.3} parent=39 // pred_check_branch
          %277 = sbr.rel (%p275) target = $region48
        $region47: #{net_forward.3} parent=39 // pred_region
          %278 = dma.done [#allocation7], 16
        $region48: #{net_forward.3} parent=39 // pred_fallthru
          _
        // Predicated region
        $region49: #{net_forward.3} parent=39 // pred_check
          %p279 = pneg %p125
        $region50: #{net_forward.3} parent=39 // pred_check_branch
          %281 = sbr.rel (%p279) target = $region52
        $region51: #{net_forward.3} parent=39 // pred_region
          %282 = dma.done [#allocation7], 1024
        $region52: #{net_forward.3} parent=39 // pred_fallthru
          _
        // Predicated region
        $region53: #{net_forward.3} parent=39 // pred_check
          %p283 = pneg %p146
        $region54: #{net_forward.3} parent=39 // pred_check_branch
          %285 = sbr.rel (%p283) target = $region56
        $region55: #{net_forward.3} parent=39 // pred_region
          %286 = dma.done [#allocation10], 16
        $region56: #{net_forward.3} parent=39 // pred_fallthru
          _
        %s287 = smul.u32 18, %s27
        %p288 = scmp.lt.s32.totalorder %s26, 0
        %s289 = scalar_select %p288, %s26, 0
        %p290 = scmp.lt.s32.totalorder %s287, 71
        %s291 = scalar_select %p290, %s287, 71
        %s292 = smul.addr %s289, 72
        %s293 = sadd.s32 %s291, %s292
        %s294 = scalar_lea.vmem %s0, %s293
        %p295 = pneg %p57
        %p296 = pneg %p54
        %s297 = sand.u32 %s70, 1
        %s298 = scalar_lea.sflag [#allocation4], %s297
        %s299 = sand.u32 %s70, 1
        %s300 = smul.addr %s299, 1152
        %s301 = scalar_lea.vmem [#allocation3], %s300
        %p302 = pneg %p83
        %p303 = pneg %p80
        %p304 = pneg %p104
        %p305 = pneg %p101
        %p306 = pneg %p125
        %p307 = pneg %p122
        %p308 = pneg %p146
        %p309 = pneg %p143
        %p310 = pneg %p172
        %p311 = pneg %p169
        %s312 = smul.u32 18, %s27
        %p313 = scmp.lt.s32.totalorder %s26, 0
        %s314 = scalar_select %p313, %s26, 0
        %p315 = scmp.lt.s32.totalorder %s312, 71
        %s316 = scalar_select %p315, %s312, 71
        %s317 = smul.addr %s314, 72
        %s318 = sadd.s32 %s316, %s317
        %s319 = scalar_lea.vmem %s0, %s318
        %s320 = smul.u32 18, %s27
        %s321 = smul.u32 288, %s27
        %p323 = scmp.eq.s32.totalorder %s27, 0
        // Predicated region
        $region57: #{net_forward.3} parent=39 // pred_check
          %p324 = pneg %p323
        $region58: #{net_forward.3} parent=39 // pred_check_branch
          %326 = sbr.rel (%p324) target = $region60
        $region59: #{net_forward.3} parent=39 // pred_region
          %327 = vst [vmem:[#allocation2] sm:$0x3] 0.0
        $region60: #{net_forward.3} parent=39 // pred_fallthru
          _
        %v328 = vld [vmem:[#allocation2] sm:$0x3]
        %v329 = vld [vmem:[%s319] sm:$0xff]
        %v330 = vld [vmem:[%s319 + $0x8] sm:$0xff]
        %v331 = vld [vmem:[%s319 + $0x10] sm:$0x3]
        %v332 = vld [vmem:[%s270] sm:$0xf]
        %v333 = vld [vmem:[%s270 + $0x4] sm:$0xf]
        %v334 = vld [vmem:[%s270 + $0x8] sm:$0xf]
        %v335 = vld [vmem:[%s270 + $0xc] sm:$0xf]
        %v336 = vld [vmem:[%s270 + $0x10] sm:$0xf]
        %v337 = vld [vmem:[%s270 + $0x14] sm:$0xf]
        %v338 = vld [vmem:[%s270 + $0x18] sm:$0xf]
        %v339 = vld [vmem:[%s270 + $0x1c] sm:$0xf]
        %v340 = vld [vmem:[%s270 + $0x20] sm:$0xf]
        %v341 = vld [vmem:[%s270 + $0x24] sm:$0xf]
        %v342 = vld [vmem:[%s270 + $0x28] sm:$0xf]
        %v343 = vld [vmem:[%s270 + $0x2c] sm:$0xf]
        %v344 = vld [vmem:[%s270 + $0x30] sm:$0xf]
        %v345 = vld [vmem:[%s270 + $0x34] sm:$0xf]
        %v346 = vld [vmem:[%s270 + $0x38] sm:$0xf]
        %v347 = vld [vmem:[%s270 + $0x3c] sm:$0xf]
        %v348 = vld [vmem:[%s270 + $0x40] sm:$0xf]
        %v349 = vld [vmem:[%s270 + $0x44] sm:$0xf]
        %v350 = vld [vmem:[%s270 + $0x48] sm:$0xf]
        %v351 = vld [vmem:[%s270 + $0x4c] sm:$0xf]
        %v352 = vld [vmem:[%s270 + $0x50] sm:$0xf]
        %v353 = vld [vmem:[%s270 + $0x54] sm:$0xf]
        %v354 = vld [vmem:[%s270 + $0x58] sm:$0xf]
        %v355 = vld [vmem:[%s270 + $0x5c] sm:$0xf]
        %v356 = vld [vmem:[%s270 + $0x60] sm:$0xf]
        %v357 = vld [vmem:[%s270 + $0x64] sm:$0xf]
        %v358 = vld [vmem:[%s270 + $0x68] sm:$0xf]
        %v359 = vld [vmem:[%s270 + $0x6c] sm:$0xf]
        %v360 = vld [vmem:[%s270 + $0x70] sm:$0xf]
        %v361 = vld [vmem:[%s270 + $0x74] sm:$0xf]
        %v362 = vld [vmem:[%s270 + $0x78] sm:$0xf]
        %v363 = vld [vmem:[%s270 + $0x7c] sm:$0xf]
        %v364 = vld [vmem:[%s270 + $0x80] sm:$0xf]
        %v365 = vld [vmem:[%s270 + $0x84] sm:$0xf]
        %v366 = vld [vmem:[%s270 + $0x88] sm:$0xf]
        %v367 = vld [vmem:[%s270 + $0x8c] sm:$0xf]
        %v368 = vld [vmem:[%s270 + $0x90] sm:$0xf]
        %v369 = vld [vmem:[%s270 + $0x94] sm:$0xf]
        %v370 = vld [vmem:[%s270 + $0x98] sm:$0xf]
        %v371 = vld [vmem:[%s270 + $0x9c] sm:$0xf]
        %v372 = vld [vmem:[%s270 + $0xa0] sm:$0xf]
        %v373 = vld [vmem:[%s270 + $0xa4] sm:$0xf]
        %v374 = vld [vmem:[%s270 + $0xa8] sm:$0xf]
        %v375 = vld [vmem:[%s270 + $0xac] sm:$0xf]
        %v376 = vld [vmem:[%s270 + $0xb0] sm:$0xf]
        %v377 = vld [vmem:[%s270 + $0xb4] sm:$0xf]
        %v378 = vld [vmem:[%s270 + $0xb8] sm:$0xf]
        %v379 = vld [vmem:[%s270 + $0xbc] sm:$0xf]
        %v380 = vld [vmem:[%s270 + $0xc0] sm:$0xf]
        %v381 = vld [vmem:[%s270 + $0xc4] sm:$0xf]
        %v382 = vld [vmem:[%s270 + $0xc8] sm:$0xf]
        %v383 = vld [vmem:[%s270 + $0xcc] sm:$0xf]
        %v384 = vld [vmem:[%s270 + $0xd0] sm:$0xf]
        %v385 = vld [vmem:[%s270 + $0xd4] sm:$0xf]
        %v386 = vld [vmem:[%s270 + $0xd8] sm:$0xf]
        %v387 = vld [vmem:[%s270 + $0xdc] sm:$0xf]
        %v388 = vld [vmem:[%s270 + $0xe0] sm:$0xf]
        %v389 = vld [vmem:[%s270 + $0xe4] sm:$0xf]
        %v390 = vld [vmem:[%s270 + $0xe8] sm:$0xf]
        %v391 = vld [vmem:[%s270 + $0xec] sm:$0xf]
        %v392 = vld [vmem:[%s270 + $0xf0] sm:$0xf]
        %v393 = vld [vmem:[%s270 + $0xf4] sm:$0xf]
        %v394 = vld [vmem:[%s270 + $0xf8] sm:$0xf]
        %v395 = vld [vmem:[%s270 + $0xfc] sm:$0xf]
        %v396 = vld [vmem:[%s270 + $0x100] sm:$0xf]
        %v397 = vld [vmem:[%s270 + $0x104] sm:$0xf]
        %v398 = vld [vmem:[%s270 + $0x108] sm:$0xf]
        %v399 = vld [vmem:[%s270 + $0x10c] sm:$0xf]
        %v400 = vld [vmem:[%s270 + $0x110] sm:$0xf]
        %v401 = vld [vmem:[%s270 + $0x114] sm:$0xf]
        %v402 = vld [vmem:[%s270 + $0x118] sm:$0xf]
        %v403 = vld [vmem:[%s270 + $0x11c] sm:$0xf]
        %v404 = vld [vmem:[%s270 + $0x120] sm:$0xf]
        %v405 = vld [vmem:[%s270 + $0x124] sm:$0xf]
        %v406 = vld [vmem:[%s270 + $0x128] sm:$0xf]
        %v407 = vld [vmem:[%s270 + $0x12c] sm:$0xf]
        %v408 = vld [vmem:[%s270 + $0x130] sm:$0xf]
        %v409 = vld [vmem:[%s270 + $0x134] sm:$0xf]
        %v410 = vld [vmem:[%s270 + $0x138] sm:$0xf]
        %v411 = vld [vmem:[%s270 + $0x13c] sm:$0xf]
        %v412 = vld [vmem:[%s270 + $0x140] sm:$0xf]
        %v413 = vld [vmem:[%s270 + $0x144] sm:$0xf]
        %v414 = vld [vmem:[%s270 + $0x148] sm:$0xf]
        %v415 = vld [vmem:[%s270 + $0x14c] sm:$0xf]
        %v416 = vld [vmem:[%s270 + $0x150] sm:$0xf]
        %v417 = vld [vmem:[%s270 + $0x154] sm:$0xf]
        %v418 = vld [vmem:[%s270 + $0x158] sm:$0xf]
        %v419 = vld [vmem:[%s270 + $0x15c] sm:$0xf]
        %v420 = vld [vmem:[%s270 + $0x160] sm:$0xf]
        %v421 = vld [vmem:[%s270 + $0x164] sm:$0xf]
        %v422 = vld [vmem:[%s270 + $0x168] sm:$0xf]
        %v423 = vld [vmem:[%s270 + $0x16c] sm:$0xf]
        %v424 = vld [vmem:[%s270 + $0x170] sm:$0xf]
        %v425 = vld [vmem:[%s270 + $0x174] sm:$0xf]
        %v426 = vld [vmem:[%s270 + $0x178] sm:$0xf]
        %v427 = vld [vmem:[%s270 + $0x17c] sm:$0xf]
        %v428 = vld [vmem:[%s270 + $0x180] sm:$0xf]
        %v429 = vld [vmem:[%s270 + $0x184] sm:$0xf]
        %v430 = vld [vmem:[%s270 + $0x188] sm:$0xf]
        %v431 = vld [vmem:[%s270 + $0x18c] sm:$0xf]
        %v432 = vld [vmem:[%s270 + $0x190] sm:$0xf]
        %v433 = vld [vmem:[%s270 + $0x194] sm:$0xf]
        %v434 = vld [vmem:[%s270 + $0x198] sm:$0xf]
        %v435 = vld [vmem:[%s270 + $0x19c] sm:$0xf]
        %v436 = vld [vmem:[%s270 + $0x1a0] sm:$0xf]
        %v437 = vld [vmem:[%s270 + $0x1a4] sm:$0xf]
        %v438 = vld [vmem:[%s270 + $0x1a8] sm:$0xf]
        %v439 = vld [vmem:[%s270 + $0x1ac] sm:$0xf]
        %v440 = vld [vmem:[%s270 + $0x1b0] sm:$0xf]
        %v441 = vld [vmem:[%s270 + $0x1b4] sm:$0xf]
        %v442 = vld [vmem:[%s270 + $0x1b8] sm:$0xf]
        %v443 = vld [vmem:[%s270 + $0x1bc] sm:$0xf]
        %v444 = vld [vmem:[%s270 + $0x1c0] sm:$0xf]
        %v445 = vld [vmem:[%s270 + $0x1c4] sm:$0xf]
        %v446 = vld [vmem:[%s270 + $0x1c8] sm:$0xf]
        %v447 = vld [vmem:[%s270 + $0x1cc] sm:$0xf]
        %v448 = vld [vmem:[%s270 + $0x1d0] sm:$0xf]
        %v449 = vld [vmem:[%s270 + $0x1d4] sm:$0xf]
        %v450 = vld [vmem:[%s270 + $0x1d8] sm:$0xf]
        %v451 = vld [vmem:[%s270 + $0x1dc] sm:$0xf]
        %v452 = vld [vmem:[%s270 + $0x1e0] sm:$0xf]
        %v453 = vld [vmem:[%s270 + $0x1e4] sm:$0xf]
        %v454 = vld [vmem:[%s270 + $0x1e8] sm:$0xf]
        %v455 = vld [vmem:[%s270 + $0x1ec] sm:$0xf]
        %v456 = vld [vmem:[%s270 + $0x1f0] sm:$0xf]
        %v457 = vld [vmem:[%s270 + $0x1f4] sm:$0xf]
        %v458 = vld [vmem:[%s270 + $0x1f8] sm:$0xf]
        %v459 = vld [vmem:[%s270 + $0x1fc] sm:$0xf]
        %v460 = vld [vmem:[%s270 + $0x200] sm:$0xf]
        %v461 = vld [vmem:[%s270 + $0x204] sm:$0xf]
        %v462 = vld [vmem:[%s270 + $0x208] sm:$0xf]
        %v463 = vld [vmem:[%s270 + $0x20c] sm:$0xf]
        %v464 = vld [vmem:[%s270 + $0x210] sm:$0xf]
        %v465 = vld [vmem:[%s270 + $0x214] sm:$0xf]
        %v466 = vld [vmem:[%s270 + $0x218] sm:$0xf]
        %v467 = vld [vmem:[%s270 + $0x21c] sm:$0xf]
        %v468 = vld [vmem:[%s270 + $0x220] sm:$0xf]
        %v469 = vld [vmem:[%s270 + $0x224] sm:$0xf]
        %v470 = vld [vmem:[%s270 + $0x228] sm:$0xf]
        %v471 = vld [vmem:[%s270 + $0x22c] sm:$0xf]
        %v472 = vld [vmem:[%s270 + $0x230] sm:$0xf]
        %v473 = vld [vmem:[%s270 + $0x234] sm:$0xf]
        %v474 = vld [vmem:[%s270 + $0x238] sm:$0xf]
        %v475 = vld [vmem:[%s270 + $0x23c] sm:$0xf]
        %v476 = vld [vmem:[%s270 + $0x240] sm:$0xf]
        %v477 = vld [vmem:[%s270 + $0x244] sm:$0xf]
        %v478 = vld [vmem:[%s270 + $0x248] sm:$0xf]
        %v479 = vld [vmem:[%s270 + $0x24c] sm:$0xf]
        %v480 = vld [vmem:[%s270 + $0x250] sm:$0xf]
        %v481 = vld [vmem:[%s270 + $0x254] sm:$0xf]
        %v482 = vld [vmem:[%s270 + $0x258] sm:$0xf]
        %v483 = vld [vmem:[%s270 + $0x25c] sm:$0xf]
        %v484 = vld [vmem:[%s270 + $0x260] sm:$0xf]
        %v485 = vld [vmem:[%s270 + $0x264] sm:$0xf]
        %v486 = vld [vmem:[%s270 + $0x268] sm:$0xf]
        %v487 = vld [vmem:[%s270 + $0x26c] sm:$0xf]
        %v488 = vld [vmem:[%s270 + $0x270] sm:$0xf]
        %v489 = vld [vmem:[%s270 + $0x274] sm:$0xf]
        %v490 = vld [vmem:[%s270 + $0x278] sm:$0xf]
        %v491 = vld [vmem:[%s270 + $0x27c] sm:$0xf]
        %v492 = vld [vmem:[%s270 + $0x280] sm:$0xf]
        %v493 = vld [vmem:[%s270 + $0x284] sm:$0xf]
        %v494 = vld [vmem:[%s270 + $0x288] sm:$0xf]
        %v495 = vld [vmem:[%s270 + $0x28c] sm:$0xf]
        %v496 = vld [vmem:[%s270 + $0x290] sm:$0xf]
        %v497 = vld [vmem:[%s270 + $0x294] sm:$0xf]
        %v498 = vld [vmem:[%s270 + $0x298] sm:$0xf]
        %v499 = vld [vmem:[%s270 + $0x29c] sm:$0xf]
        %v500 = vld [vmem:[%s270 + $0x2a0] sm:$0xf]
        %v501 = vld [vmem:[%s270 + $0x2a4] sm:$0xf]
        %v502 = vld [vmem:[%s270 + $0x2a8] sm:$0xf]
        %v503 = vld [vmem:[%s270 + $0x2ac] sm:$0xf]
        %v504 = vld [vmem:[%s270 + $0x2b0] sm:$0xf]
        %v505 = vld [vmem:[%s270 + $0x2b4] sm:$0xf]
        %v506 = vld [vmem:[%s270 + $0x2b8] sm:$0xf]
        %v507 = vld [vmem:[%s270 + $0x2bc] sm:$0xf]
        %v508 = vld [vmem:[%s270 + $0x2c0] sm:$0xf]
        %v509 = vld [vmem:[%s270 + $0x2c4] sm:$0xf]
        %v510 = vld [vmem:[%s270 + $0x2c8] sm:$0xf]
        %v511 = vld [vmem:[%s270 + $0x2cc] sm:$0xf]
        %v512 = vld [vmem:[%s270 + $0x2d0] sm:$0xf]
        %v513 = vld [vmem:[%s270 + $0x2d4] sm:$0xf]
        %v514 = vld [vmem:[%s270 + $0x2d8] sm:$0xf]
        %v515 = vld [vmem:[%s270 + $0x2dc] sm:$0xf]
        %v516 = vld [vmem:[%s270 + $0x2e0] sm:$0xf]
        %v517 = vld [vmem:[%s270 + $0x2e4] sm:$0xf]
        %v518 = vld [vmem:[%s270 + $0x2e8] sm:$0xf]
        %v519 = vld [vmem:[%s270 + $0x2ec] sm:$0xf]
        %v520 = vld [vmem:[%s270 + $0x2f0] sm:$0xf]
        %v521 = vld [vmem:[%s270 + $0x2f4] sm:$0xf]
        %v522 = vld [vmem:[%s270 + $0x2f8] sm:$0xf]
        %v523 = vld [vmem:[%s270 + $0x2fc] sm:$0xf]
        %v524 = vld [vmem:[%s270 + $0x300] sm:$0xf]
        %v525 = vld [vmem:[%s270 + $0x304] sm:$0xf]
        %v526 = vld [vmem:[%s270 + $0x308] sm:$0xf]
        %v527 = vld [vmem:[%s270 + $0x30c] sm:$0xf]
        %v528 = vld [vmem:[%s270 + $0x310] sm:$0xf]
        %v529 = vld [vmem:[%s270 + $0x314] sm:$0xf]
        %v530 = vld [vmem:[%s270 + $0x318] sm:$0xf]
        %v531 = vld [vmem:[%s270 + $0x31c] sm:$0xf]
        %v532 = vld [vmem:[%s270 + $0x320] sm:$0xf]
        %v533 = vld [vmem:[%s270 + $0x324] sm:$0xf]
        %v534 = vld [vmem:[%s270 + $0x328] sm:$0xf]
        %v535 = vld [vmem:[%s270 + $0x32c] sm:$0xf]
        %v536 = vld [vmem:[%s270 + $0x330] sm:$0xf]
        %v537 = vld [vmem:[%s270 + $0x334] sm:$0xf]
        %v538 = vld [vmem:[%s270 + $0x338] sm:$0xf]
        %v539 = vld [vmem:[%s270 + $0x33c] sm:$0xf]
        %v540 = vld [vmem:[%s270 + $0x340] sm:$0xf]
        %v541 = vld [vmem:[%s270 + $0x344] sm:$0xf]
        %v542 = vld [vmem:[%s270 + $0x348] sm:$0xf]
        %v543 = vld [vmem:[%s270 + $0x34c] sm:$0xf]
        %v544 = vld [vmem:[%s270 + $0x350] sm:$0xf]
        %v545 = vld [vmem:[%s270 + $0x354] sm:$0xf]
        %v546 = vld [vmem:[%s270 + $0x358] sm:$0xf]
        %v547 = vld [vmem:[%s270 + $0x35c] sm:$0xf]
        %v548 = vld [vmem:[%s270 + $0x360] sm:$0xf]
        %v549 = vld [vmem:[%s270 + $0x364] sm:$0xf]
        %v550 = vld [vmem:[%s270 + $0x368] sm:$0xf]
        %v551 = vld [vmem:[%s270 + $0x36c] sm:$0xf]
        %v552 = vld [vmem:[%s270 + $0x370] sm:$0xf]
        %v553 = vld [vmem:[%s270 + $0x374] sm:$0xf]
        %v554 = vld [vmem:[%s270 + $0x378] sm:$0xf]
        %v555 = vld [vmem:[%s270 + $0x37c] sm:$0xf]
        %v556 = vld [vmem:[%s270 + $0x380] sm:$0xf]
        %v557 = vld [vmem:[%s270 + $0x384] sm:$0xf]
        %v558 = vld [vmem:[%s270 + $0x388] sm:$0xf]
        %v559 = vld [vmem:[%s270 + $0x38c] sm:$0xf]
        %v560 = vld [vmem:[%s270 + $0x390] sm:$0xf]
        %v561 = vld [vmem:[%s270 + $0x394] sm:$0xf]
        %v562 = vld [vmem:[%s270 + $0x398] sm:$0xf]
        %v563 = vld [vmem:[%s270 + $0x39c] sm:$0xf]
        %v564 = vld [vmem:[%s270 + $0x3a0] sm:$0xf]
        %v565 = vld [vmem:[%s270 + $0x3a4] sm:$0xf]
        %v566 = vld [vmem:[%s270 + $0x3a8] sm:$0xf]
        %v567 = vld [vmem:[%s270 + $0x3ac] sm:$0xf]
        %v568 = vld [vmem:[%s270 + $0x3b0] sm:$0xf]
        %v569 = vld [vmem:[%s270 + $0x3b4] sm:$0xf]
        %v570 = vld [vmem:[%s270 + $0x3b8] sm:$0xf]
        %v571 = vld [vmem:[%s270 + $0x3bc] sm:$0xf]
        %v572 = vld [vmem:[%s270 + $0x3c0] sm:$0xf]
        %v573 = vld [vmem:[%s270 + $0x3c4] sm:$0xf]
        %v574 = vld [vmem:[%s270 + $0x3c8] sm:$0xf]
        %v575 = vld [vmem:[%s270 + $0x3cc] sm:$0xf]
        %v576 = vld [vmem:[%s270 + $0x3d0] sm:$0xf]
        %v577 = vld [vmem:[%s270 + $0x3d4] sm:$0xf]
        %v578 = vld [vmem:[%s270 + $0x3d8] sm:$0xf]
        %v579 = vld [vmem:[%s270 + $0x3dc] sm:$0xf]
        %v580 = vld [vmem:[%s270 + $0x3e0] sm:$0xf]
        %v581 = vld [vmem:[%s270 + $0x3e4] sm:$0xf]
        %v582 = vld [vmem:[%s270 + $0x3e8] sm:$0xf]
        %v583 = vld [vmem:[%s270 + $0x3ec] sm:$0xf]
        %v584 = vld [vmem:[%s270 + $0x3f0] sm:$0xf]
        %v585 = vld [vmem:[%s270 + $0x3f4] sm:$0xf]
        %v586 = vld [vmem:[%s270 + $0x3f8] sm:$0xf]
        %v587 = vld [vmem:[%s270 + $0x3fc] sm:$0xf]
        %v588 = vld [vmem:[%s270 + $0x400] sm:$0xf]
        %v589 = vld [vmem:[%s270 + $0x404] sm:$0xf]
        %v590 = vld [vmem:[%s270 + $0x408] sm:$0xf]
        %v591 = vld [vmem:[%s270 + $0x40c] sm:$0xf]
        %v592 = vld [vmem:[%s270 + $0x410] sm:$0xf]
        %v593 = vld [vmem:[%s270 + $0x414] sm:$0xf]
        %v594 = vld [vmem:[%s270 + $0x418] sm:$0xf]
        %v595 = vld [vmem:[%s270 + $0x41c] sm:$0xf]
        %v596 = vld [vmem:[%s270 + $0x420] sm:$0xf]
        %v597 = vld [vmem:[%s270 + $0x424] sm:$0xf]
        %v598 = vld [vmem:[%s270 + $0x428] sm:$0xf]
        %v599 = vld [vmem:[%s270 + $0x42c] sm:$0xf]
        %v600 = vld [vmem:[%s270 + $0x430] sm:$0xf]
        %v601 = vld [vmem:[%s270 + $0x434] sm:$0xf]
        %v602 = vld [vmem:[%s270 + $0x438] sm:$0xf]
        %v603 = vld [vmem:[%s270 + $0x43c] sm:$0xf]
        %v604 = vld [vmem:[%s270 + $0x440] sm:$0xf]
        %v605 = vld [vmem:[%s270 + $0x444] sm:$0xf]
        %v606 = vld [vmem:[%s270 + $0x448] sm:$0xf]
        %v607 = vld [vmem:[%s270 + $0x44c] sm:$0xf]
        %v608 = vld [vmem:[%s270 + $0x450] sm:$0xf]
        %v609 = vld [vmem:[%s270 + $0x454] sm:$0xf]
        %v610 = vld [vmem:[%s270 + $0x458] sm:$0xf]
        %v611 = vld [vmem:[%s270 + $0x45c] sm:$0xf]
        %v612 = vld [vmem:[%s270 + $0x460] sm:$0xf]
        %v613 = vld [vmem:[%s270 + $0x464] sm:$0xf]
        %v614 = vld [vmem:[%s270 + $0x468] sm:$0xf]
        %v615 = vld [vmem:[%s270 + $0x46c] sm:$0xf]
        %v616 = vld [vmem:[%s270 + $0x470] sm:$0xf]
        %v617 = vld [vmem:[%s270 + $0x474] sm:$0xf]
        %v618 = vld [vmem:[%s270 + $0x478] sm:$0xf]
        %v619 = vld [vmem:[%s270 + $0x47c] sm:$0xf]
        %v623 = vcombine.high %v329, %v329
        %v625 = vunpack.c.l.s4 1966171168
        %v626 = vunpack.c.0.s8 %v625
        %v627 = vlaneseq
        %v628 = vshrl.u32 %v627, 7
        %v629 = vsub.s32 %v626, %v628
        %v630 = vrot.slane %v329, %v629
        %v632 = vunpack.c.l.s4 1966171168
        %v633 = vunpack.c.0.s8 %v632
        %v634 = vlaneseq
        %v635 = vshrl.u32 %v634, 7
        %v636 = vsub.s32 %v633, %v635
        %v637 = vrot.slane %v623, %v636
        %v638 = vcombine.high %v630, %v630
        %v639 = vcombine.high %v637, %v637
        %v641 = vunpack.c.l.s4 1966171168
        %v642 = vunpack.c.0.s8 %v641
        %v643 = vlaneseq
        %v644 = vshrl.u32 %v643, 7
        %v645 = vsub.s32 %v642, %v644
        %v646 = vrot.slane %v630, %v645
        %v648 = vunpack.c.l.s4 1966171168
        %v649 = vunpack.c.0.s8 %v648
        %v650 = vlaneseq
        %v651 = vshrl.u32 %v650, 7
        %v652 = vsub.s32 %v649, %v651
        %v653 = vrot.slane %v637, %v652
        %v655 = vunpack.c.l.s4 1966171168
        %v656 = vunpack.c.0.s8 %v655
        %v657 = vlaneseq
        %v658 = vshrl.u32 %v657, 7
        %v659 = vsub.s32 %v656, %v658
        %v660 = vrot.slane %v638, %v659
        %v662 = vunpack.c.l.s4 1966171168
        %v663 = vunpack.c.0.s8 %v662
        %v664 = vlaneseq
        %v665 = vshrl.u32 %v664, 7
        %v666 = vsub.s32 %v663, %v665
        %v667 = vrot.slane %v639, %v666
        %v668 = vcombine.high %v646, %v646
        %v669 = vcombine.high %v653, %v653
        %v670 = vcombine.high %v660, %v660
        %v671 = vcombine.high %v667, %v667
        %v672 = vcombine.high %v330, %v330
        %v674 = vunpack.c.l.s4 1966171168
        %v675 = vunpack.c.0.s8 %v674
        %v676 = vlaneseq
        %v677 = vshrl.u32 %v676, 7
        %v678 = vsub.s32 %v675, %v677
        %v679 = vrot.slane %v330, %v678
        %v681 = vunpack.c.l.s4 1966171168
        %v682 = vunpack.c.0.s8 %v681
        %v683 = vlaneseq
        %v684 = vshrl.u32 %v683, 7
        %v685 = vsub.s32 %v682, %v684
        %v686 = vrot.slane %v672, %v685
        %v687 = vcombine.high %v679, %v679
        %v688 = vcombine.high %v686, %v686
        %v690 = vunpack.c.l.s4 1966171168
        %v691 = vunpack.c.0.s8 %v690
        %v692 = vlaneseq
        %v693 = vshrl.u32 %v692, 7
        %v694 = vsub.s32 %v691, %v693
        %v695 = vrot.slane %v679, %v694
        %v697 = vunpack.c.l.s4 1966171168
        %v698 = vunpack.c.0.s8 %v697
        %v699 = vlaneseq
        %v700 = vshrl.u32 %v699, 7
        %v701 = vsub.s32 %v698, %v700
        %v702 = vrot.slane %v686, %v701
        %v704 = vunpack.c.l.s4 1966171168
        %v705 = vunpack.c.0.s8 %v704
        %v706 = vlaneseq
        %v707 = vshrl.u32 %v706, 7
        %v708 = vsub.s32 %v705, %v707
        %v709 = vrot.slane %v687, %v708
        %v711 = vunpack.c.l.s4 1966171168
        %v712 = vunpack.c.0.s8 %v711
        %v713 = vlaneseq
        %v714 = vshrl.u32 %v713, 7
        %v715 = vsub.s32 %v712, %v714
        %v716 = vrot.slane %v688, %v715
        %v717 = vcombine.high %v695, %v695
        %v718 = vcombine.high %v702, %v702
        %v719 = vcombine.high %v709, %v709
        %v720 = vcombine.high %v716, %v716
        %v722 = vunpack.c.l.s4 1966171168
        %v723 = vunpack.c.0.s8 %v722
        %v724 = vlaneseq
        %v725 = vshrl.u32 %v724, 7
        %v726 = vsub.s32 %v723, %v725
        %v727 = vrot.slane %v331, %v726
        %v728 = vcombine.high %v727, %v727
        %v730 = vunpack.c.l.s4 1966171168
        %v731 = vunpack.c.0.s8 %v730
        %v732 = vlaneseq
        %v733 = vshrl.u32 %v732, 7
        %v734 = vsub.s32 %v731, %v733
        %v735 = vrot.slane %v727, %v734
        %v737 = vunpack.c.l.s4 1966171168
        %v738 = vunpack.c.0.s8 %v737
        %v739 = vlaneseq
        %v740 = vshrl.u32 %v739, 7
        %v741 = vsub.s32 %v738, %v740
        %v742 = vrot.slane %v728, %v741
        %v1049 = vunpack.c.l.b16 %v332
        %v1050 = vunpack.c.l.b16 %v333
        %v1051 = vunpack.c.l.b16 %v334
        %v1052 = vunpack.c.l.b16 %v335
        %v1053 = vunpack.c.l.b16 %v336
        %v1054 = vunpack.c.l.b16 %v337
        %v1055 = vunpack.c.l.b16 %v338
        %v1056 = vunpack.c.l.b16 %v339
        %v1057 = vunpack.c.l.b16 %v340
        %v1058 = vunpack.c.l.b16 %v341
        %v1059 = vunpack.c.l.b16 %v342
        %v1060 = vunpack.c.l.b16 %v343
        %v1061 = vunpack.c.l.b16 %v344
        %v1062 = vunpack.c.l.b16 %v345
        %v1063 = vunpack.c.l.b16 %v346
        %v1064 = vunpack.c.l.b16 %v347
        %v1065 = vunpack.c.l.b16 %v348
        %v1066 = vunpack.c.l.b16 %v349
        %v1067 = vunpack.c.l.b16 %v350
        %v1068 = vunpack.c.l.b16 %v351
        %v1069 = vunpack.c.l.b16 %v352
        %v1070 = vunpack.c.l.b16 %v353
        %v1071 = vunpack.c.l.b16 %v354
        %v1072 = vunpack.c.l.b16 %v355
        %v1073 = vunpack.c.l.b16 %v356
        %v1074 = vunpack.c.l.b16 %v357
        %v1075 = vunpack.c.l.b16 %v358
        %v1076 = vunpack.c.l.b16 %v359
        %v1077 = vunpack.c.l.b16 %v360
        %v1078 = vunpack.c.l.b16 %v361
        %v1079 = vunpack.c.l.b16 %v362
        %v1080 = vunpack.c.l.b16 %v363
        %v1081 = vunpack.c.l.b16 %v364
        %v1082 = vunpack.c.l.b16 %v365
        %v1083 = vunpack.c.l.b16 %v366
        %v1084 = vunpack.c.l.b16 %v367
        %v1085 = vunpack.c.l.b16 %v368
        %v1086 = vunpack.c.l.b16 %v369
        %v1087 = vunpack.c.l.b16 %v370
        %v1088 = vunpack.c.l.b16 %v371
        %v1089 = vunpack.c.l.b16 %v372
        %v1090 = vunpack.c.l.b16 %v373
        %v1091 = vunpack.c.l.b16 %v374
        %v1092 = vunpack.c.l.b16 %v375
        %v1093 = vunpack.c.l.b16 %v376
        %v1094 = vunpack.c.l.b16 %v377
        %v1095 = vunpack.c.l.b16 %v378
        %v1096 = vunpack.c.l.b16 %v379
        %v1097 = vunpack.c.l.b16 %v380
        %v1098 = vunpack.c.l.b16 %v381
        %v1099 = vunpack.c.l.b16 %v382
        %v1100 = vunpack.c.l.b16 %v383
        %v1101 = vunpack.c.l.b16 %v384
        %v1102 = vunpack.c.l.b16 %v385
        %v1103 = vunpack.c.l.b16 %v386
        %v1104 = vunpack.c.l.b16 %v387
        %v1105 = vunpack.c.l.b16 %v388
        %v1106 = vunpack.c.l.b16 %v389
        %v1107 = vunpack.c.l.b16 %v390
        %v1108 = vunpack.c.l.b16 %v391
        %v1109 = vunpack.c.l.b16 %v392
        %v1110 = vunpack.c.l.b16 %v393
        %v1111 = vunpack.c.l.b16 %v394
        %v1112 = vunpack.c.l.b16 %v395
        %v1113 = vunpack.c.l.b16 %v396
        %v1114 = vunpack.c.l.b16 %v397
        %v1115 = vunpack.c.l.b16 %v398
        %v1116 = vunpack.c.l.b16 %v399
        %v1117 = vunpack.c.l.b16 %v400
        %v1118 = vunpack.c.l.b16 %v401
        %v1119 = vunpack.c.l.b16 %v402
        %v1120 = vunpack.c.l.b16 %v403
        %v1121 = vunpack.c.l.b16 %v404
        %v1122 = vunpack.c.l.b16 %v405
        %v1123 = vunpack.c.l.b16 %v406
        %v1124 = vunpack.c.l.b16 %v407
        %v1125 = vunpack.c.l.b16 %v408
        %v1126 = vunpack.c.l.b16 %v409
        %v1127 = vunpack.c.l.b16 %v410
        %v1128 = vunpack.c.l.b16 %v411
        %v1129 = vunpack.c.l.b16 %v412
        %v1130 = vunpack.c.l.b16 %v413
        %v1131 = vunpack.c.l.b16 %v414
        %v1132 = vunpack.c.l.b16 %v415
        %v1133 = vunpack.c.l.b16 %v416
        %v1134 = vunpack.c.l.b16 %v417
        %v1135 = vunpack.c.l.b16 %v418
        %v1136 = vunpack.c.l.b16 %v419
        %v1137 = vunpack.c.l.b16 %v420
        %v1138 = vunpack.c.l.b16 %v421
        %v1139 = vunpack.c.l.b16 %v422
        %v1140 = vunpack.c.l.b16 %v423
        %v1141 = vunpack.c.l.b16 %v424
        %v1142 = vunpack.c.l.b16 %v425
        %v1143 = vunpack.c.l.b16 %v426
        %v1144 = vunpack.c.l.b16 %v427
        %v1145 = vunpack.c.l.b16 %v428
        %v1146 = vunpack.c.l.b16 %v429
        %v1147 = vunpack.c.l.b16 %v430
        %v1148 = vunpack.c.l.b16 %v431
        %v1149 = vunpack.c.l.b16 %v432
        %v1150 = vunpack.c.l.b16 %v433
        %v1151 = vunpack.c.l.b16 %v434
        %v1152 = vunpack.c.l.b16 %v435
        %v1153 = vunpack.c.l.b16 %v436
        %v1154 = vunpack.c.l.b16 %v437
        %v1155 = vunpack.c.l.b16 %v438
        %v1156 = vunpack.c.l.b16 %v439
        %v1157 = vunpack.c.l.b16 %v440
        %v1158 = vunpack.c.l.b16 %v441
        %v1159 = vunpack.c.l.b16 %v442
        %v1160 = vunpack.c.l.b16 %v443
        %v1161 = vunpack.c.l.b16 %v444
        %v1162 = vunpack.c.l.b16 %v445
        %v1163 = vunpack.c.l.b16 %v446
        %v1164 = vunpack.c.l.b16 %v447
        %v1165 = vunpack.c.l.b16 %v448
        %v1166 = vunpack.c.l.b16 %v449
        %v1167 = vunpack.c.l.b16 %v450
        %v1168 = vunpack.c.l.b16 %v451
        %v1169 = vunpack.c.l.b16 %v452
        %v1170 = vunpack.c.l.b16 %v453
        %v1171 = vunpack.c.l.b16 %v454
        %v1172 = vunpack.c.l.b16 %v455
        %v1173 = vunpack.c.l.b16 %v456
        %v1174 = vunpack.c.l.b16 %v457
        %v1175 = vunpack.c.l.b16 %v458
        %v1176 = vunpack.c.l.b16 %v459
        %v1177 = vunpack.c.l.b16 %v460
        %v1178 = vunpack.c.l.b16 %v461
        %v1179 = vunpack.c.l.b16 %v462
        %v1180 = vunpack.c.l.b16 %v463
        %v1181 = vunpack.c.l.b16 %v464
        %v1182 = vunpack.c.l.b16 %v465
        %v1183 = vunpack.c.l.b16 %v466
        %v1184 = vunpack.c.l.b16 %v467
        %v1185 = vunpack.c.l.b16 %v468
        %v1186 = vunpack.c.l.b16 %v469
        %v1187 = vunpack.c.l.b16 %v470
        %v1188 = vunpack.c.l.b16 %v471
        %v1189 = vunpack.c.l.b16 %v472
        %v1190 = vunpack.c.l.b16 %v473
        %v1191 = vunpack.c.l.b16 %v474
        %v1192 = vunpack.c.l.b16 %v475
        %v1193 = vunpack.c.l.b16 %v476
        %v1194 = vunpack.c.l.b16 %v477
        %v1195 = vunpack.c.l.b16 %v478
        %v1196 = vunpack.c.l.b16 %v479
        %v1197 = vunpack.c.l.b16 %v480
        %v1198 = vunpack.c.l.b16 %v481
        %v1199 = vunpack.c.l.b16 %v482
        %v1200 = vunpack.c.l.b16 %v483
        %v1201 = vunpack.c.l.b16 %v484
        %v1202 = vunpack.c.l.b16 %v485
        %v1203 = vunpack.c.l.b16 %v486
        %v1204 = vunpack.c.l.b16 %v487
        %v1205 = vunpack.c.l.b16 %v488
        %v1206 = vunpack.c.l.b16 %v489
        %v1207 = vunpack.c.l.b16 %v490
        %v1208 = vunpack.c.l.b16 %v491
        %v1209 = vunpack.c.l.b16 %v492
        %v1210 = vunpack.c.l.b16 %v493
        %v1211 = vunpack.c.l.b16 %v494
        %v1212 = vunpack.c.l.b16 %v495
        %v1213 = vunpack.c.l.b16 %v496
        %v1214 = vunpack.c.l.b16 %v497
        %v1215 = vunpack.c.l.b16 %v498
        %v1216 = vunpack.c.l.b16 %v499
        %v1217 = vunpack.c.l.b16 %v500
        %v1218 = vunpack.c.l.b16 %v501
        %v1219 = vunpack.c.l.b16 %v502
        %v1220 = vunpack.c.l.b16 %v503
        %v1221 = vunpack.c.l.b16 %v504
        %v1222 = vunpack.c.l.b16 %v505
        %v1223 = vunpack.c.l.b16 %v506
        %v1224 = vunpack.c.l.b16 %v507
        %v1225 = vunpack.c.l.b16 %v508
        %v1226 = vunpack.c.l.b16 %v509
        %v1227 = vunpack.c.l.b16 %v510
        %v1228 = vunpack.c.l.b16 %v511
        %v1229 = vunpack.c.l.b16 %v512
        %v1230 = vunpack.c.l.b16 %v513
        %v1231 = vunpack.c.l.b16 %v514
        %v1232 = vunpack.c.l.b16 %v515
        %v1233 = vunpack.c.l.b16 %v516
        %v1234 = vunpack.c.l.b16 %v517
        %v1235 = vunpack.c.l.b16 %v518
        %v1236 = vunpack.c.l.b16 %v519
        %v1237 = vunpack.c.l.b16 %v520
        %v1238 = vunpack.c.l.b16 %v521
        %v1239 = vunpack.c.l.b16 %v522
        %v1240 = vunpack.c.l.b16 %v523
        %v1241 = vunpack.c.l.b16 %v524
        %v1242 = vunpack.c.l.b16 %v525
        %v1243 = vunpack.c.l.b16 %v526
        %v1244 = vunpack.c.l.b16 %v527
        %v1245 = vunpack.c.l.b16 %v528
        %v1246 = vunpack.c.l.b16 %v529
        %v1247 = vunpack.c.l.b16 %v530
        %v1248 = vunpack.c.l.b16 %v531
        %v1249 = vunpack.c.l.b16 %v532
        %v1250 = vunpack.c.l.b16 %v533
        %v1251 = vunpack.c.l.b16 %v534
        %v1252 = vunpack.c.l.b16 %v535
        %v1253 = vunpack.c.l.b16 %v536
        %v1254 = vunpack.c.l.b16 %v537
        %v1255 = vunpack.c.l.b16 %v538
        %v1256 = vunpack.c.l.b16 %v539
        %v1257 = vunpack.c.l.b16 %v540
        %v1258 = vunpack.c.l.b16 %v541
        %v1259 = vunpack.c.l.b16 %v542
        %v1260 = vunpack.c.l.b16 %v543
        %v1261 = vunpack.c.l.b16 %v544
        %v1262 = vunpack.c.l.b16 %v545
        %v1263 = vunpack.c.l.b16 %v546
        %v1264 = vunpack.c.l.b16 %v547
        %v1265 = vunpack.c.l.b16 %v548
        %v1266 = vunpack.c.l.b16 %v549
        %v1267 = vunpack.c.l.b16 %v550
        %v1268 = vunpack.c.l.b16 %v551
        %v1269 = vunpack.c.l.b16 %v552
        %v1270 = vunpack.c.l.b16 %v553
        %v1271 = vunpack.c.l.b16 %v554
        %v1272 = vunpack.c.l.b16 %v555
        %v1273 = vunpack.c.l.b16 %v556
        %v1274 = vunpack.c.l.b16 %v557
        %v1275 = vunpack.c.l.b16 %v558
        %v1276 = vunpack.c.l.b16 %v559
        %v1277 = vunpack.c.l.b16 %v560
        %v1278 = vunpack.c.l.b16 %v561
        %v1279 = vunpack.c.l.b16 %v562
        %v1280 = vunpack.c.l.b16 %v563
        %v1281 = vunpack.c.l.b16 %v564
        %v1282 = vunpack.c.l.b16 %v565
        %v1283 = vunpack.c.l.b16 %v566
        %v1284 = vunpack.c.l.b16 %v567
        %v1285 = vunpack.c.l.b16 %v568
        %v1286 = vunpack.c.l.b16 %v569
        %v1287 = vunpack.c.l.b16 %v570
        %v1288 = vunpack.c.l.b16 %v571
        %v1289 = vunpack.c.l.b16 %v572
        %v1290 = vunpack.c.l.b16 %v573
        %v1291 = vunpack.c.l.b16 %v574
        %v1292 = vunpack.c.l.b16 %v575
        %v1293 = vunpack.c.l.b16 %v576
        %v1294 = vunpack.c.l.b16 %v577
        %v1295 = vunpack.c.l.b16 %v578
        %v1296 = vunpack.c.l.b16 %v579
        %v1297 = vunpack.c.l.b16 %v580
        %v1298 = vunpack.c.l.b16 %v581
        %v1299 = vunpack.c.l.b16 %v582
        %v1300 = vunpack.c.l.b16 %v583
        %v1301 = vunpack.c.l.b16 %v584
        %v1302 = vunpack.c.l.b16 %v585
        %v1303 = vunpack.c.l.b16 %v586
        %v1304 = vunpack.c.l.b16 %v587
        %v1305 = vunpack.c.l.b16 %v588
        %v1306 = vunpack.c.l.b16 %v589
        %v1307 = vunpack.c.l.b16 %v590
        %v1308 = vunpack.c.l.b16 %v591
        %v1309 = vunpack.c.l.b16 %v592
        %v1310 = vunpack.c.l.b16 %v593
        %v1311 = vunpack.c.l.b16 %v594
        %v1312 = vunpack.c.l.b16 %v595
        %v1313 = vunpack.c.l.b16 %v596
        %v1314 = vunpack.c.l.b16 %v597
        %v1315 = vunpack.c.l.b16 %v598
        %v1316 = vunpack.c.l.b16 %v599
        %v1317 = vunpack.c.l.b16 %v600
        %v1318 = vunpack.c.l.b16 %v601
        %v1319 = vunpack.c.l.b16 %v602
        %v1320 = vunpack.c.l.b16 %v603
        %v1321 = vunpack.c.l.b16 %v604
        %v1322 = vunpack.c.l.b16 %v605
        %v1323 = vunpack.c.l.b16 %v606
        %v1324 = vunpack.c.l.b16 %v607
        %v1325 = vunpack.c.l.b16 %v608
        %v1326 = vunpack.c.l.b16 %v609
        %v1327 = vunpack.c.l.b16 %v610
        %v1328 = vunpack.c.l.b16 %v611
        %v1329 = vunpack.c.l.b16 %v612
        %v1330 = vunpack.c.l.b16 %v613
        %v1331 = vunpack.c.l.b16 %v614
        %v1332 = vunpack.c.l.b16 %v615
        %v1333 = vunpack.c.l.b16 %v616
        %v1334 = vunpack.c.l.b16 %v617
        %v1335 = vunpack.c.l.b16 %v618
        %v1336 = vunpack.c.l.b16 %v619
        %v1337 = vpack.c.b16 %v1050, %v1049
        %v1338 = vpack.c.b16 %v1052, %v1051
        %v1339 = vpack.c.b16 %v1054, %v1053
        %v1340 = vpack.c.b16 %v1056, %v1055
        %v1341 = vpack.c.b16 %v1058, %v1057
        %v1342 = vpack.c.b16 %v1060, %v1059
        %v1343 = vpack.c.b16 %v1062, %v1061
        %v1344 = vpack.c.b16 %v1064, %v1063
        %v1345 = vpack.c.b16 %v1066, %v1065
        %v1346 = vpack.c.b16 %v1068, %v1067
        %v1347 = vpack.c.b16 %v1070, %v1069
        %v1348 = vpack.c.b16 %v1072, %v1071
        %v1349 = vpack.c.b16 %v1074, %v1073
        %v1350 = vpack.c.b16 %v1076, %v1075
        %v1351 = vpack.c.b16 %v1078, %v1077
        %v1352 = vpack.c.b16 %v1080, %v1079
        %v1353 = vpack.c.b16 %v1082, %v1081
        %v1354 = vpack.c.b16 %v1084, %v1083
        %v1355 = vpack.c.b16 %v1086, %v1085
        %v1356 = vpack.c.b16 %v1088, %v1087
        %v1357 = vpack.c.b16 %v1090, %v1089
        %v1358 = vpack.c.b16 %v1092, %v1091
        %v1359 = vpack.c.b16 %v1094, %v1093
        %v1360 = vpack.c.b16 %v1096, %v1095
        %v1361 = vpack.c.b16 %v1098, %v1097
        %v1362 = vpack.c.b16 %v1100, %v1099
        %v1363 = vpack.c.b16 %v1102, %v1101
        %v1364 = vpack.c.b16 %v1104, %v1103
        %v1365 = vpack.c.b16 %v1106, %v1105
        %v1366 = vpack.c.b16 %v1108, %v1107
        %v1367 = vpack.c.b16 %v1110, %v1109
        %v1368 = vpack.c.b16 %v1112, %v1111
        %v1369 = vpack.c.b16 %v1114, %v1113
        %v1370 = vpack.c.b16 %v1116, %v1115
        %v1371 = vpack.c.b16 %v1118, %v1117
        %v1372 = vpack.c.b16 %v1120, %v1119
        %v1373 = vpack.c.b16 %v1122, %v1121
        %v1374 = vpack.c.b16 %v1124, %v1123
        %v1375 = vpack.c.b16 %v1126, %v1125
        %v1376 = vpack.c.b16 %v1128, %v1127
        %v1377 = vpack.c.b16 %v1130, %v1129
        %v1378 = vpack.c.b16 %v1132, %v1131
        %v1379 = vpack.c.b16 %v1134, %v1133
        %v1380 = vpack.c.b16 %v1136, %v1135
        %v1381 = vpack.c.b16 %v1138, %v1137
        %v1382 = vpack.c.b16 %v1140, %v1139
        %v1383 = vpack.c.b16 %v1142, %v1141
        %v1384 = vpack.c.b16 %v1144, %v1143
        %v1385 = vpack.c.b16 %v1146, %v1145
        %v1386 = vpack.c.b16 %v1148, %v1147
        %v1387 = vpack.c.b16 %v1150, %v1149
        %v1388 = vpack.c.b16 %v1152, %v1151
        %v1389 = vpack.c.b16 %v1154, %v1153
        %v1390 = vpack.c.b16 %v1156, %v1155
        %v1391 = vpack.c.b16 %v1158, %v1157
        %v1392 = vpack.c.b16 %v1160, %v1159
        %v1393 = vpack.c.b16 %v1162, %v1161
        %v1394 = vpack.c.b16 %v1164, %v1163
        %v1395 = vpack.c.b16 %v1166, %v1165
        %v1396 = vpack.c.b16 %v1168, %v1167
        %v1397 = vpack.c.b16 %v1170, %v1169
        %v1398 = vpack.c.b16 %v1172, %v1171
        %v1399 = vpack.c.b16 %v1174, %v1173
        %v1400 = vpack.c.b16 %v1176, %v1175
        %v1401 = vpack.c.b16 %v1178, %v1177
        %v1402 = vpack.c.b16 %v1180, %v1179
        %v1403 = vpack.c.b16 %v1182, %v1181
        %v1404 = vpack.c.b16 %v1184, %v1183
        %v1405 = vpack.c.b16 %v1186, %v1185
        %v1406 = vpack.c.b16 %v1188, %v1187
        %v1407 = vpack.c.b16 %v1190, %v1189
        %v1408 = vpack.c.b16 %v1192, %v1191
        %v1409 = vpack.c.b16 %v1194, %v1193
        %v1410 = vpack.c.b16 %v1196, %v1195
        %v1411 = vpack.c.b16 %v1198, %v1197
        %v1412 = vpack.c.b16 %v1200, %v1199
        %v1413 = vpack.c.b16 %v1202, %v1201
        %v1414 = vpack.c.b16 %v1204, %v1203
        %v1415 = vpack.c.b16 %v1206, %v1205
        %v1416 = vpack.c.b16 %v1208, %v1207
        %v1417 = vpack.c.b16 %v1210, %v1209
        %v1418 = vpack.c.b16 %v1212, %v1211
        %v1419 = vpack.c.b16 %v1214, %v1213
        %v1420 = vpack.c.b16 %v1216, %v1215
        %v1421 = vpack.c.b16 %v1218, %v1217
        %v1422 = vpack.c.b16 %v1220, %v1219
        %v1423 = vpack.c.b16 %v1222, %v1221
        %v1424 = vpack.c.b16 %v1224, %v1223
        %v1425 = vpack.c.b16 %v1226, %v1225
        %v1426 = vpack.c.b16 %v1228, %v1227
        %v1427 = vpack.c.b16 %v1230, %v1229
        %v1428 = vpack.c.b16 %v1232, %v1231
        %v1429 = vpack.c.b16 %v1234, %v1233
        %v1430 = vpack.c.b16 %v1236, %v1235
        %v1431 = vpack.c.b16 %v1238, %v1237
        %v1432 = vpack.c.b16 %v1240, %v1239
        %v1433 = vpack.c.b16 %v1242, %v1241
        %v1434 = vpack.c.b16 %v1244, %v1243
        %v1435 = vpack.c.b16 %v1246, %v1245
        %v1436 = vpack.c.b16 %v1248, %v1247
        %v1437 = vpack.c.b16 %v1250, %v1249
        %v1438 = vpack.c.b16 %v1252, %v1251
        %v1439 = vpack.c.b16 %v1254, %v1253
        %v1440 = vpack.c.b16 %v1256, %v1255
        %v1441 = vpack.c.b16 %v1258, %v1257
        %v1442 = vpack.c.b16 %v1260, %v1259
        %v1443 = vpack.c.b16 %v1262, %v1261
        %v1444 = vpack.c.b16 %v1264, %v1263
        %v1445 = vpack.c.b16 %v1266, %v1265
        %v1446 = vpack.c.b16 %v1268, %v1267
        %v1447 = vpack.c.b16 %v1270, %v1269
        %v1448 = vpack.c.b16 %v1272, %v1271
        %v1449 = vpack.c.b16 %v1274, %v1273
        %v1450 = vpack.c.b16 %v1276, %v1275
        %v1451 = vpack.c.b16 %v1278, %v1277
        %v1452 = vpack.c.b16 %v1280, %v1279
        %v1453 = vpack.c.b16 %v1282, %v1281
        %v1454 = vpack.c.b16 %v1284, %v1283
        %v1455 = vpack.c.b16 %v1286, %v1285
        %v1456 = vpack.c.b16 %v1288, %v1287
        %v1457 = vpack.c.b16 %v1290, %v1289
        %v1458 = vpack.c.b16 %v1292, %v1291
        %v1459 = vpack.c.b16 %v1294, %v1293
        %v1460 = vpack.c.b16 %v1296, %v1295
        %v1461 = vpack.c.b16 %v1298, %v1297
        %v1462 = vpack.c.b16 %v1300, %v1299
        %v1463 = vpack.c.b16 %v1302, %v1301
        %v1464 = vpack.c.b16 %v1304, %v1303
        %v1465 = vpack.c.b16 %v1306, %v1305
        %v1466 = vpack.c.b16 %v1308, %v1307
        %v1467 = vpack.c.b16 %v1310, %v1309
        %v1468 = vpack.c.b16 %v1312, %v1311
        %v1469 = vpack.c.b16 %v1314, %v1313
        %v1470 = vpack.c.b16 %v1316, %v1315
        %v1471 = vpack.c.b16 %v1318, %v1317
        %v1472 = vpack.c.b16 %v1320, %v1319
        %v1473 = vpack.c.b16 %v1322, %v1321
        %v1474 = vpack.c.b16 %v1324, %v1323
        %v1475 = vpack.c.b16 %v1326, %v1325
        %v1476 = vpack.c.b16 %v1328, %v1327
        %v1477 = vpack.c.b16 %v1330, %v1329
        %v1478 = vpack.c.b16 %v1332, %v1331
        %v1479 = vpack.c.b16 %v1334, %v1333
        %v1480 = vpack.c.b16 %v1336, %v1335
        %1625 = vmatprep.subr.bf16.mxu0 0
        %1626 = vmatpush1.bf16.msra.mxu0 %v1337
        %1627 = vmatprep.subr.bf16.mxu0 0
        %1628 = vmatpush1.bf16.msra.mxu0 %v1338
        %1629 = vmatprep.subr.bf16.mxu0 0
        %1630 = vmatpush1.bf16.msra.mxu0 %v1339
        %1631 = vmatprep.subr.bf16.mxu0 0
        %1632 = vmatpush1.bf16.msra.mxu0 %v1340
        %1633 = vmatprep.subr.bf16.mxu0 0
        %1634 = vmatpush1.bf16.msra.mxu0 %v1341
        %1635 = vmatprep.subr.bf16.mxu0 0
        %1636 = vmatpush1.bf16.msra.mxu0 %v1342
        %1637 = vmatprep.subr.bf16.mxu0 0
        %1638 = vmatpush1.bf16.msra.mxu0 %v1343
        %1639 = vmatprep.subr.bf16.mxu0 0
        %1640 = vmatpush1.bf16.msra.mxu0 %v1344
        %1641 = vmatprep.subr.bf16.mxu0 0
        %1642 = vmatpush1.bf16.msra.mxu0 %v1345
        %1643 = vmatprep.subr.bf16.mxu0 0
        %1644 = vmatpush1.bf16.msra.mxu0 %v1346
        %1645 = vmatprep.subr.bf16.mxu0 0
        %1646 = vmatpush1.bf16.msra.mxu0 %v1347
        %1647 = vmatprep.subr.bf16.mxu0 0
        %1648 = vmatpush1.bf16.msra.mxu0 %v1348
        %1649 = vmatprep.subr.bf16.mxu0 0
        %1650 = vmatpush1.bf16.msra.mxu0 %v1349
        %1651 = vmatprep.subr.bf16.mxu0 0
        %1652 = vmatpush1.bf16.msra.mxu0 %v1350
        %1653 = vmatprep.subr.bf16.mxu0 0
        %1654 = vmatpush1.bf16.msra.mxu0 %v1351
        %1655 = vmatprep.subr.bf16.mxu0 0
        %1656 = vmatpush1.bf16.msra.mxu0 %v1352
        %1657 = vmatprep.mubr.bf16.mxu0 %v660
        %1658 = vmatmul.mubr.bf16.gmra.mrb[0].mxu0 %v646
        %v1659 = vpop.f32.mrb[0].mxu0
        %v1660 = vadd.f32 0.0, %v1659
        %v1661 = vpop.f32.mrb[0].mxu0
        %v1662 = vpop.f32.mrb[0].mxu0
        %v1663 = vpop.f32.mrb[0].mxu0
        %1664 = vdwg.mxu0
        %1665 = vmatprep.subr.bf16.mxu0 0
        %1666 = vmatpush1.bf16.msra.mxu0 %v1353
        %1667 = vmatprep.subr.bf16.mxu0 0
        %1668 = vmatpush1.bf16.msra.mxu0 %v1354
        %1669 = vmatprep.subr.bf16.mxu0 0
        %1670 = vmatpush1.bf16.msra.mxu0 %v1355
        %1671 = vmatprep.subr.bf16.mxu0 0
        %1672 = vmatpush1.bf16.msra.mxu0 %v1356
        %1673 = vmatprep.subr.bf16.mxu0 0
        %1674 = vmatpush1.bf16.msra.mxu0 %v1357
        %1675 = vmatprep.subr.bf16.mxu0 0
        %1676 = vmatpush1.bf16.msra.mxu0 %v1358
        %1677 = vmatprep.subr.bf16.mxu0 0
        %1678 = vmatpush1.bf16.msra.mxu0 %v1359
        %1679 = vmatprep.subr.bf16.mxu0 0
        %1680 = vmatpush1.bf16.msra.mxu0 %v1360
        %1681 = vmatprep.subr.bf16.mxu0 0
        %1682 = vmatpush1.bf16.msra.mxu0 %v1361
        %1683 = vmatprep.subr.bf16.mxu0 0
        %1684 = vmatpush1.bf16.msra.mxu0 %v1362
        %1685 = vmatprep.subr.bf16.mxu0 0
        %1686 = vmatpush1.bf16.msra.mxu0 %v1363
        %1687 = vmatprep.subr.bf16.mxu0 0
        %1688 = vmatpush1.bf16.msra.mxu0 %v1364
        %1689 = vmatprep.subr.bf16.mxu0 0
        %1690 = vmatpush1.bf16.msra.mxu0 %v1365
        %1691 = vmatprep.subr.bf16.mxu0 0
        %1692 = vmatpush1.bf16.msra.mxu0 %v1366
        %1693 = vmatprep.subr.bf16.mxu0 0
        %1694 = vmatpush1.bf16.msra.mxu0 %v1367
        %1695 = vmatprep.subr.bf16.mxu0 0
        %1696 = vmatpush1.bf16.msra.mxu0 %v1368
        %1697 = vmatprep.mubr.bf16.mxu0 %v670
        %1698 = vmatmul.mubr.bf16.gmra.mrb[0].mxu0 %v668
        %v1699 = vpop.f32.mrb[0].mxu0
        %v1700 = vadd.f32 %v1660, %v1699
        %v1701 = vpop.f32.mrb[0].mxu0
        %v1702 = vpop.f32.mrb[0].mxu0
        %v1703 = vpop.f32.mrb[0].mxu0
        %1704 = vdwg.mxu0
        %1705 = vmatprep.subr.bf16.mxu0 0
        %1706 = vmatpush1.bf16.msra.mxu0 %v1369
        %1707 = vmatprep.subr.bf16.mxu0 0
        %1708 = vmatpush1.bf16.msra.mxu0 %v1370
        %1709 = vmatprep.subr.bf16.mxu0 0
        %1710 = vmatpush1.bf16.msra.mxu0 %v1371
        %1711 = vmatprep.subr.bf16.mxu0 0
        %1712 = vmatpush1.bf16.msra.mxu0 %v1372
        %1713 = vmatprep.subr.bf16.mxu0 0
        %1714 = vmatpush1.bf16.msra.mxu0 %v1373
        %1715 = vmatprep.subr.bf16.mxu0 0
        %1716 = vmatpush1.bf16.msra.mxu0 %v1374
        %1717 = vmatprep.subr.bf16.mxu0 0
        %1718 = vmatpush1.bf16.msra.mxu0 %v1375
        %1719 = vmatprep.subr.bf16.mxu0 0
        %1720 = vmatpush1.bf16.msra.mxu0 %v1376
        %1721 = vmatprep.subr.bf16.mxu0 0
        %1722 = vmatpush1.bf16.msra.mxu0 %v1377
        %1723 = vmatprep.subr.bf16.mxu0 0
        %1724 = vmatpush1.bf16.msra.mxu0 %v1378
        %1725 = vmatprep.subr.bf16.mxu0 0
        %1726 = vmatpush1.bf16.msra.mxu0 %v1379
        %1727 = vmatprep.subr.bf16.mxu0 0
        %1728 = vmatpush1.bf16.msra.mxu0 %v1380
        %1729 = vmatprep.subr.bf16.mxu0 0
        %1730 = vmatpush1.bf16.msra.mxu0 %v1381
        %1731 = vmatprep.subr.bf16.mxu0 0
        %1732 = vmatpush1.bf16.msra.mxu0 %v1382
        %1733 = vmatprep.subr.bf16.mxu0 0
        %1734 = vmatpush1.bf16.msra.mxu0 %v1383
        %1735 = vmatprep.subr.bf16.mxu0 0
        %1736 = vmatpush1.bf16.msra.mxu0 %v1384
        %1737 = vmatprep.mubr.bf16.mxu0 %v667
        %1738 = vmatmul.mubr.bf16.gmra.mrb[0].mxu0 %v653
        %v1739 = vpop.f32.mrb[0].mxu0
        %v1740 = vadd.f32 %v1700, %v1739
        %v1741 = vpop.f32.mrb[0].mxu0
        %v1742 = vpop.f32.mrb[0].mxu0
        %v1743 = vpop.f32.mrb[0].mxu0
        %1744 = vdwg.mxu0
        %1745 = vmatprep.subr.bf16.mxu0 0
        %1746 = vmatpush1.bf16.msra.mxu0 %v1385
        %1747 = vmatprep.subr.bf16.mxu0 0
        %1748 = vmatpush1.bf16.msra.mxu0 %v1386
        %1749 = vmatprep.subr.bf16.mxu0 0
        %1750 = vmatpush1.bf16.msra.mxu0 %v1387
        %1751 = vmatprep.subr.bf16.mxu0 0
        %1752 = vmatpush1.bf16.msra.mxu0 %v1388
        %1753 = vmatprep.subr.bf16.mxu0 0
        %1754 = vmatpush1.bf16.msra.mxu0 %v1389
        %1755 = vmatprep.subr.bf16.mxu0 0
        %1756 = vmatpush1.bf16.msra.mxu0 %v1390
        %1757 = vmatprep.subr.bf16.mxu0 0
        %1758 = vmatpush1.bf16.msra.mxu0 %v1391
        %1759 = vmatprep.subr.bf16.mxu0 0
        %1760 = vmatpush1.bf16.msra.mxu0 %v1392
        %1761 = vmatprep.subr.bf16.mxu0 0
        %1762 = vmatpush1.bf16.msra.mxu0 %v1393
        %1763 = vmatprep.subr.bf16.mxu0 0
        %1764 = vmatpush1.bf16.msra.mxu0 %v1394
        %1765 = vmatprep.subr.bf16.mxu0 0
        %1766 = vmatpush1.bf16.msra.mxu0 %v1395
        %1767 = vmatprep.subr.bf16.mxu0 0
        %1768 = vmatpush1.bf16.msra.mxu0 %v1396
        %1769 = vmatprep.subr.bf16.mxu0 0
        %1770 = vmatpush1.bf16.msra.mxu0 %v1397
        %1771 = vmatprep.subr.bf16.mxu0 0
        %1772 = vmatpush1.bf16.msra.mxu0 %v1398
        %1773 = vmatprep.subr.bf16.mxu0 0
        %1774 = vmatpush1.bf16.msra.mxu0 %v1399
        %1775 = vmatprep.subr.bf16.mxu0 0
        %1776 = vmatpush1.bf16.msra.mxu0 %v1400
        %1777 = vmatprep.mubr.bf16.mxu0 %v671
        %1778 = vmatmul.mubr.bf16.gmra.mrb[0].mxu0 %v669
        %v1779 = vpop.f32.mrb[0].mxu0
        %v1780 = vadd.f32 %v1740, %v1779
        %v1781 = vpop.f32.mrb[0].mxu0
        %v1782 = vpop.f32.mrb[0].mxu0
        %v1783 = vpop.f32.mrb[0].mxu0
        %1784 = vdwg.mxu0
        %1785 = vmatprep.subr.bf16.mxu0 0
        %1786 = vmatpush1.bf16.msra.mxu0 %v1401
        %1787 = vmatprep.subr.bf16.mxu0 0
        %1788 = vmatpush1.bf16.msra.mxu0 %v1402
        %1789 = vmatprep.subr.bf16.mxu0 0
        %1790 = vmatpush1.bf16.msra.mxu0 %v1403
        %1791 = vmatprep.subr.bf16.mxu0 0
        %1792 = vmatpush1.bf16.msra.mxu0 %v1404
        %1793 = vmatprep.subr.bf16.mxu0 0
        %1794 = vmatpush1.bf16.msra.mxu0 %v1405
        %1795 = vmatprep.subr.bf16.mxu0 0
        %1796 = vmatpush1.bf16.msra.mxu0 %v1406
        %1797 = vmatprep.subr.bf16.mxu0 0
        %1798 = vmatpush1.bf16.msra.mxu0 %v1407
        %1799 = vmatprep.subr.bf16.mxu0 0
        %1800 = vmatpush1.bf16.msra.mxu0 %v1408
        %1801 = vmatprep.subr.bf16.mxu0 0
        %1802 = vmatpush1.bf16.msra.mxu0 %v1409
        %1803 = vmatprep.subr.bf16.mxu0 0
        %1804 = vmatpush1.bf16.msra.mxu0 %v1410
        %1805 = vmatprep.subr.bf16.mxu0 0
        %1806 = vmatpush1.bf16.msra.mxu0 %v1411
        %1807 = vmatprep.subr.bf16.mxu0 0
        %1808 = vmatpush1.bf16.msra.mxu0 %v1412
        %1809 = vmatprep.subr.bf16.mxu0 0
        %1810 = vmatpush1.bf16.msra.mxu0 %v1413
        %1811 = vmatprep.subr.bf16.mxu0 0
        %1812 = vmatpush1.bf16.msra.mxu0 %v1414
        %1813 = vmatprep.subr.bf16.mxu0 0
        %1814 = vmatpush1.bf16.msra.mxu0 %v1415
        %1815 = vmatprep.subr.bf16.mxu0 0
        %1816 = vmatpush1.bf16.msra.mxu0 %v1416
        %1817 = vmatprep.mubr.bf16.mxu0 %v709
        %1818 = vmatmul.mubr.bf16.gmra.mrb[0].mxu0 %v695
        %v1819 = vpop.f32.mrb[0].mxu0
        %v1820 = vadd.f32 %v1780, %v1819
        %v1821 = vpop.f32.mrb[0].mxu0
        %v1822 = vpop.f32.mrb[0].mxu0
        %v1823 = vpop.f32.mrb[0].mxu0
        %1824 = vdwg.mxu0
        %1825 = vmatprep.subr.bf16.mxu0 0
        %1826 = vmatpush1.bf16.msra.mxu0 %v1417
        %1827 = vmatprep.subr.bf16.mxu0 0
        %1828 = vmatpush1.bf16.msra.mxu0 %v1418
        %1829 = vmatprep.subr.bf16.mxu0 0
        %1830 = vmatpush1.bf16.msra.mxu0 %v1419
        %1831 = vmatprep.subr.bf16.mxu0 0
        %1832 = vmatpush1.bf16.msra.mxu0 %v1420
        %1833 = vmatprep.subr.bf16.mxu0 0
        %1834 = vmatpush1.bf16.msra.mxu0 %v1421
        %1835 = vmatprep.subr.bf16.mxu0 0
        %1836 = vmatpush1.bf16.msra.mxu0 %v1422
        %1837 = vmatprep.subr.bf16.mxu0 0
        %1838 = vmatpush1.bf16.msra.mxu0 %v1423
        %1839 = vmatprep.subr.bf16.mxu0 0
        %1840 = vmatpush1.bf16.msra.mxu0 %v1424
        %1841 = vmatprep.subr.bf16.mxu0 0
        %1842 = vmatpush1.bf16.msra.mxu0 %v1425
        %1843 = vmatprep.subr.bf16.mxu0 0
        %1844 = vmatpush1.bf16.msra.mxu0 %v1426
        %1845 = vmatprep.subr.bf16.mxu0 0
        %1846 = vmatpush1.bf16.msra.mxu0 %v1427
        %1847 = vmatprep.subr.bf16.mxu0 0
        %1848 = vmatpush1.bf16.msra.mxu0 %v1428
        %1849 = vmatprep.subr.bf16.mxu0 0
        %1850 = vmatpush1.bf16.msra.mxu0 %v1429
        %1851 = vmatprep.subr.bf16.mxu0 0
        %1852 = vmatpush1.bf16.msra.mxu0 %v1430
        %1853 = vmatprep.subr.bf16.mxu0 0
        %1854 = vmatpush1.bf16.msra.mxu0 %v1431
        %1855 = vmatprep.subr.bf16.mxu0 0
        %1856 = vmatpush1.bf16.msra.mxu0 %v1432
        %1857 = vmatprep.mubr.bf16.mxu0 %v719
        %1858 = vmatmul.mubr.bf16.gmra.mrb[0].mxu0 %v717
        %v1859 = vpop.f32.mrb[0].mxu0
        %v1860 = vadd.f32 %v1820, %v1859
        %v1861 = vpop.f32.mrb[0].mxu0
        %v1862 = vpop.f32.mrb[0].mxu0
        %v1863 = vpop.f32.mrb[0].mxu0
        %1864 = vdwg.mxu0
        %1865 = vmatprep.subr.bf16.mxu0 0
        %1866 = vmatpush1.bf16.msra.mxu0 %v1433
        %1867 = vmatprep.subr.bf16.mxu0 0
        %1868 = vmatpush1.bf16.msra.mxu0 %v1434
        %1869 = vmatprep.subr.bf16.mxu0 0
        %1870 = vmatpush1.bf16.msra.mxu0 %v1435
        %1871 = vmatprep.subr.bf16.mxu0 0
        %1872 = vmatpush1.bf16.msra.mxu0 %v1436
        %1873 = vmatprep.subr.bf16.mxu0 0
        %1874 = vmatpush1.bf16.msra.mxu0 %v1437
        %1875 = vmatprep.subr.bf16.mxu0 0
        %1876 = vmatpush1.bf16.msra.mxu0 %v1438
        %1877 = vmatprep.subr.bf16.mxu0 0
        %1878 = vmatpush1.bf16.msra.mxu0 %v1439
        %1879 = vmatprep.subr.bf16.mxu0 0
        %1880 = vmatpush1.bf16.msra.mxu0 %v1440
        %1881 = vmatprep.subr.bf16.mxu0 0
        %1882 = vmatpush1.bf16.msra.mxu0 %v1441
        %1883 = vmatprep.subr.bf16.mxu0 0
        %1884 = vmatpush1.bf16.msra.mxu0 %v1442
        %1885 = vmatprep.subr.bf16.mxu0 0
        %1886 = vmatpush1.bf16.msra.mxu0 %v1443
        %1887 = vmatprep.subr.bf16.mxu0 0
        %1888 = vmatpush1.bf16.msra.mxu0 %v1444
        %1889 = vmatprep.subr.bf16.mxu0 0
        %1890 = vmatpush1.bf16.msra.mxu0 %v1445
        %1891 = vmatprep.subr.bf16.mxu0 0
        %1892 = vmatpush1.bf16.msra.mxu0 %v1446
        %1893 = vmatprep.subr.bf16.mxu0 0
        %1894 = vmatpush1.bf16.msra.mxu0 %v1447
        %1895 = vmatprep.subr.bf16.mxu0 0
        %1896 = vmatpush1.bf16.msra.mxu0 %v1448
        %1897 = vmatprep.mubr.bf16.mxu0 %v716
        %1898 = vmatmul.mubr.bf16.gmra.mrb[0].mxu0 %v702
        %v1899 = vpop.f32.mrb[0].mxu0
        %v1900 = vadd.f32 %v1860, %v1899
        %v1901 = vpop.f32.mrb[0].mxu0
        %v1902 = vpop.f32.mrb[0].mxu0
        %v1903 = vpop.f32.mrb[0].mxu0
        %1904 = vdwg.mxu0
        %1905 = vmatprep.subr.bf16.mxu0 0
        %1906 = vmatpush1.bf16.msra.mxu0 %v1449
        %1907 = vmatprep.subr.bf16.mxu0 0
        %1908 = vmatpush1.bf16.msra.mxu0 %v1450
        %1909 = vmatprep.subr.bf16.mxu0 0
        %1910 = vmatpush1.bf16.msra.mxu0 %v1451
        %1911 = vmatprep.subr.bf16.mxu0 0
        %1912 = vmatpush1.bf16.msra.mxu0 %v1452
        %1913 = vmatprep.subr.bf16.mxu0 0
        %1914 = vmatpush1.bf16.msra.mxu0 %v1453
        %1915 = vmatprep.subr.bf16.mxu0 0
        %1916 = vmatpush1.bf16.msra.mxu0 %v1454
        %1917 = vmatprep.subr.bf16.mxu0 0
        %1918 = vmatpush1.bf16.msra.mxu0 %v1455
        %1919 = vmatprep.subr.bf16.mxu0 0
        %1920 = vmatpush1.bf16.msra.mxu0 %v1456
        %1921 = vmatprep.subr.bf16.mxu0 0
        %1922 = vmatpush1.bf16.msra.mxu0 %v1457
        %1923 = vmatprep.subr.bf16.mxu0 0
        %1924 = vmatpush1.bf16.msra.mxu0 %v1458
        %1925 = vmatprep.subr.bf16.mxu0 0
        %1926 = vmatpush1.bf16.msra.mxu0 %v1459
        %1927 = vmatprep.subr.bf16.mxu0 0
        %1928 = vmatpush1.bf16.msra.mxu0 %v1460
        %1929 = vmatprep.subr.bf16.mxu0 0
        %1930 = vmatpush1.bf16.msra.mxu0 %v1461
        %1931 = vmatprep.subr.bf16.mxu0 0
        %1932 = vmatpush1.bf16.msra.mxu0 %v1462
        %1933 = vmatprep.subr.bf16.mxu0 0
        %1934 = vmatpush1.bf16.msra.mxu0 %v1463
        %1935 = vmatprep.subr.bf16.mxu0 0
        %1936 = vmatpush1.bf16.msra.mxu0 %v1464
        %1937 = vmatprep.mubr.bf16.mxu0 %v720
        %1938 = vmatmul.mubr.bf16.gmra.mrb[0].mxu0 %v718
        %v1939 = vpop.f32.mrb[0].mxu0
        %v1940 = vadd.f32 %v1900, %v1939
        %v1941 = vpop.f32.mrb[0].mxu0
        %v1942 = vpop.f32.mrb[0].mxu0
        %v1943 = vpop.f32.mrb[0].mxu0
        %1944 = vdwg.mxu0
        %1945 = vmatprep.subr.bf16.mxu0 0
        %1946 = vmatpush1.bf16.msra.mxu0 %v1465
        %1947 = vmatprep.subr.bf16.mxu0 0
        %1948 = vmatpush1.bf16.msra.mxu0 %v1466
        %1949 = vmatprep.subr.bf16.mxu0 0
        %1950 = vmatpush1.bf16.msra.mxu0 %v1467
        %1951 = vmatprep.subr.bf16.mxu0 0
        %1952 = vmatpush1.bf16.msra.mxu0 %v1468
        %1953 = vmatprep.subr.bf16.mxu0 0
        %1954 = vmatpush1.bf16.msra.mxu0 %v1469
        %1955 = vmatprep.subr.bf16.mxu0 0
        %1956 = vmatpush1.bf16.msra.mxu0 %v1470
        %1957 = vmatprep.subr.bf16.mxu0 0
        %1958 = vmatpush1.bf16.msra.mxu0 %v1471
        %1959 = vmatprep.subr.bf16.mxu0 0
        %1960 = vmatpush1.bf16.msra.mxu0 %v1472
        %1961 = vmatprep.subr.bf16.mxu0 0
        %1962 = vmatpush1.bf16.msra.mxu0 %v1473
        %1963 = vmatprep.subr.bf16.mxu0 0
        %1964 = vmatpush1.bf16.msra.mxu0 %v1474
        %1965 = vmatprep.subr.bf16.mxu0 0
        %1966 = vmatpush1.bf16.msra.mxu0 %v1475
        %1967 = vmatprep.subr.bf16.mxu0 0
        %1968 = vmatpush1.bf16.msra.mxu0 %v1476
        %1969 = vmatprep.subr.bf16.mxu0 0
        %1970 = vmatpush1.bf16.msra.mxu0 %v1477
        %1971 = vmatprep.subr.bf16.mxu0 0
        %1972 = vmatpush1.bf16.msra.mxu0 %v1478
        %1973 = vmatprep.subr.bf16.mxu0 0
        %1974 = vmatpush1.bf16.msra.mxu0 %v1479
        %1975 = vmatprep.subr.bf16.mxu0 0
        %1976 = vmatpush1.bf16.msra.mxu0 %v1480
        %1977 = vmatprep.mubr.bf16.mxu0 %v742
        %1978 = vmatmul.mubr.bf16.gmra.mrb[0].mxu0 %v735
        %v1979 = vpop.f32.mrb[0].mxu0
        %v1980 = vadd.f32 %v1940, %v1979
        %v1981 = vpop.f32.mrb[0].mxu0
        %v1982 = vpop.f32.mrb[0].mxu0
        %v1983 = vpop.f32.mrb[0].mxu0
        %1984 = vdwg.mxu0
        %v1985 = vadd.f32 %v328, %v1980
        %1986 = vst [vmem:[#allocation2] sm:$0x3] %v1985
        %p1987 = scmp.eq.s32.totalorder %s27, 3
        // Predicated region
        $region61: #{net_forward.3} parent=39 // pred_check
          %p1988 = pneg %p1987
        $region62: #{net_forward.3} parent=39 // pred_check_branch
          %1990 = sbr.rel (%p1988) target = $region64
        $region63: #{net_forward.3} parent=39 // pred_region
          %v1991 = vld [vmem:[#allocation2] sm:$0x3]
          %v1992 = vld [vmem:[#allocation6] sm:$0x1]
          %v1994 = vlaneseq
          %v1995 = vshrl.u32 %v1994, 7
          %v1996 = vsub.s32 0, %v1995
          %v1997 = vrot.slane %v1992, %v1996
          %v1999 = vadd.f32 %v1991, %v1997
          %v2000 = vmax.f32 %v1999, 0.0
          %v2001 = vpack.c.bf16 %v2000, %v2000
          %v2002 = vld [vmem:[#allocation8] sm:$0xf]
          %v2003 = vld [vmem:[#allocation8 + $0x4] sm:$0xf]
          %v2004 = vld [vmem:[#allocation8 + $0x8] sm:$0xf]
          %v2005 = vld [vmem:[#allocation8 + $0xc] sm:$0xf]
          %v2006 = vld [vmem:[#allocation8 + $0x10] sm:$0xf]
          %v2007 = vld [vmem:[#allocation8 + $0x14] sm:$0xf]
          %v2008 = vld [vmem:[#allocation8 + $0x18] sm:$0xf]
          %v2009 = vld [vmem:[#allocation8 + $0x1c] sm:$0xf]
          %v2010 = vld [vmem:[#allocation8 + $0x20] sm:$0xf]
          %v2011 = vld [vmem:[#allocation8 + $0x24] sm:$0xf]
          %v2012 = vld [vmem:[#allocation8 + $0x28] sm:$0xf]
          %v2013 = vld [vmem:[#allocation8 + $0x2c] sm:$0xf]
          %v2014 = vld [vmem:[#allocation8 + $0x30] sm:$0xf]
          %v2015 = vld [vmem:[#allocation8 + $0x34] sm:$0xf]
          %v2016 = vld [vmem:[#allocation8 + $0x38] sm:$0xf]
          %v2017 = vld [vmem:[#allocation8 + $0x3c] sm:$0xf]
          %v2018 = vld [vmem:[#allocation9] sm:$0x1]
          %v2020 = vlaneseq
          %v2021 = vshrl.u32 %v2020, 7
          %v2022 = vsub.s32 0, %v2021
          %v2023 = vrot.slane %v2018, %v2022
          %v2041 = vunpack.c.l.b16 %v2002
          %v2042 = vunpack.c.l.b16 %v2003
          %v2043 = vunpack.c.l.b16 %v2004
          %v2044 = vunpack.c.l.b16 %v2005
          %v2045 = vunpack.c.l.b16 %v2006
          %v2046 = vunpack.c.l.b16 %v2007
          %v2047 = vunpack.c.l.b16 %v2008
          %v2048 = vunpack.c.l.b16 %v2009
          %v2049 = vunpack.c.l.b16 %v2010
          %v2050 = vunpack.c.l.b16 %v2011
          %v2051 = vunpack.c.l.b16 %v2012
          %v2052 = vunpack.c.l.b16 %v2013
          %v2053 = vunpack.c.l.b16 %v2014
          %v2054 = vunpack.c.l.b16 %v2015
          %v2055 = vunpack.c.l.b16 %v2016
          %v2056 = vunpack.c.l.b16 %v2017
          %v2057 = vpack.c.b16 %v2042, %v2041
          %v2058 = vpack.c.b16 %v2044, %v2043
          %v2059 = vpack.c.b16 %v2046, %v2045
          %v2060 = vpack.c.b16 %v2048, %v2047
          %v2061 = vpack.c.b16 %v2050, %v2049
          %v2062 = vpack.c.b16 %v2052, %v2051
          %v2063 = vpack.c.b16 %v2054, %v2053
          %v2064 = vpack.c.b16 %v2056, %v2055
          %2073 = vmatprep.subr.bf16.mxu0 0
          %2074 = vmatpush1.bf16.msra.mxu0 %v2057
          %2075 = vmatprep.subr.bf16.mxu0 0
          %2076 = vmatpush1.bf16.msra.mxu0 %v2058
          %2077 = vmatprep.subr.bf16.mxu0 0
          %2078 = vmatpush1.bf16.msra.mxu0 %v2059
          %2079 = vmatprep.subr.bf16.mxu0 0
          %2080 = vmatpush1.bf16.msra.mxu0 %v2060
          %2081 = vmatprep.subr.bf16.mxu0 0
          %2082 = vmatpush1.bf16.msra.mxu0 %v2061
          %2083 = vmatprep.subr.bf16.mxu0 0
          %2084 = vmatpush1.bf16.msra.mxu0 %v2062
          %2085 = vmatprep.subr.bf16.mxu0 0
          %2086 = vmatpush1.bf16.msra.mxu0 %v2063
          %2087 = vmatprep.subr.bf16.mxu0 0
          %2088 = vmatpush1.bf16.msra.mxu0 %v2064
          %2089 = vmatprep.subr.bf16.mxu0 0
          %2090 = vmatpush1.bf16.msra.mxu0 0
          %2091 = vmatprep.subr.bf16.mxu0 0
          %2092 = vmatpush1.bf16.msra.mxu0 0
          %2093 = vmatprep.subr.bf16.mxu0 0
          %2094 = vmatpush1.bf16.msra.mxu0 0
          %2095 = vmatprep.subr.bf16.mxu0 0
          %2096 = vmatpush1.bf16.msra.mxu0 0
          %2097 = vmatprep.subr.bf16.mxu0 0
          %2098 = vmatpush1.bf16.msra.mxu0 0
          %2099 = vmatprep.subr.bf16.mxu0 0
          %2100 = vmatpush1.bf16.msra.mxu0 0
          %2101 = vmatprep.subr.bf16.mxu0 0
          %2102 = vmatpush1.bf16.msra.mxu0 0
          %2103 = vmatprep.subr.bf16.mxu0 0
          %2104 = vmatpush1.bf16.msra.mxu0 0
          %2105 = vmatprep.mubr.bf16.mxu0 0
          %2106 = vmatmul.mubr.bf16.gmra.mrb[0].mxu0 %v2001
          %v2107 = vpop.f32.mrb[0].mxu0
          %v2108 = vadd.f32 %v2023, %v2107
          %v2109 = vpop.f32.mrb[0].mxu0
          %v2110 = vpop.f32.mrb[0].mxu0
          %v2111 = vpop.f32.mrb[0].mxu0
          %2112 = vdwg.mxu0
          %vm2113 = vcmask 1041408
          %v2114 = vsel %vm2113, %v2108, -inf
          %2115 = vmax.xlane.f32.xlu0 %v2114
          %v2116 = vpop.xlane.xlu0 %2115
          %v2117 = vsub.f32 %v2108, %v2116
          %v2118 = vmul.f32 %v2117, 1.442695
          %v2119 = vpow.pop %v2118
          %v2120 = vsel %vm2113, %v2119, 0.0
          %2121 = vadd.xlane.f32.xlu0 %v2120
          %v2122 = vpop.xlane.xlu0 %2121
          %v2123 = vlog2.pop %v2122
          %v2124 = vmul.f32 %v2123, 0.6931472
          %v2125 = vsub.f32 %v2117, %v2124
          %2126 = vst [vmem:[#allocation11] sm:$0x3] %v2125
        $region64: #{net_forward.3} parent=39 // pred_fallthru
          _
        // Predicated region
        $region65: #{net_forward.3} parent=39 // pred_check
          %p2127 = pneg %p169
        $region66: #{net_forward.3} parent=39 // pred_check_branch
          %2129 = sbr.rel (%p2127) target = $region68
        $region67: #{net_forward.3} parent=39 // pred_region
          %s2131 = ssub.s32 32, 32
          %2132 = vsyncadd [#allocation5], %s2131
          %s2133 = smul.addr %s26, 32
          %s2134 = scalar_lea.hbm %s5, %s2133
          %s2136 = sshll.u32 [#allocation11], 4
          %s2137 = int_to_ptr.vmem [resolvable:$true] %s2136
          %2139 = dma.vmem_to_hbm [thread:$0]  %s2137, 32, %s2134, [#allocation5]
        $region68: #{net_forward.3} parent=39 // pred_fallthru
          _
        // Predicated region
        $region69: #{net_forward.3} parent=39 // pred_check
          %p2140 = pneg %p169
        $region70: #{net_forward.3} parent=39 // pred_check_branch
          %2142 = sbr.rel (%p2140) target = $region72
        $region71: #{net_forward.3} parent=39 // pred_region
          %2143 = dma.done [#allocation5], 32
        $region72: #{net_forward.3} parent=39 // pred_fallthru
          _
      $region40: #{net_forward.3} parent=5 // pred_fallthru
        _
      %p2144 = scmp.le.s32.totalorder 2, %s17
      // Predicated region
      $region73: #{net_forward.3} parent=5 // pred_check
        %p2145 = pneg %p2144
      $region74: #{net_forward.3} parent=5 // pred_check_branch
        %2147 = sbr.rel (%p2145) target = $region76
      $region75: #{net_forward.3} parent=5 // pred_region
        %s2148 = ssub.s32 %s17, 2
      $region76: #{net_forward.3} parent=5 // pred_fallthru
        _
    $region6: #{net_forward.3} parent=1 // loop_footer
      %s21 = sadd.s32 1, %s17
    $region7: #{net_forward.3} parent=1 // loop_footer_branch
      %16 = sbr.rel target = $region3
    $region8: #{net_forward.3} parent=1 // loop_exit
      _
    %2149 = vsyncpa [#allocation4], 1
    %s2150 = scalar_lea.sflag [#allocation4], 1
    %2151 = vsyncpa %s2150, 1
    %2152 = vsyncpa [#allocation7], 1
    %2153 = vsyncpa [#allocation10], 1
    %2154 = vsyncpa [#allocation5], 1
    %s2155 = scalar_lea.sflag [#allocation5], 1
    %2156 = vsyncpa %s2155, 1

// kernel: net_forward.2
$region0: #{net_forward.2}
  #allocation0 [shape = 'u32[]', space=smem, size = 0x4, offset = 0x4, fixed_abs, tag = 'smem constant byte address 0x4 - core index']
  #allocation1 [shape = 'u32[144,128]{1,0:T(1,128)}', space=vmem, size = 0x12000, scoped, tag = 'internal scratch']
  %s0 = inlined_call_operand.vmem [shape: bf16[2,25,668], index: 0, kind: input, shape index: {}]
  %s1 = inlined_call_operand.vmem [shape: bf16[288,25], index: 1, kind: input, shape index: {}]
  %s2 = inlined_call_operand.vmem [shape: f32[288,1], index: 2, kind: input, shape index: {}]
  %s3 = inlined_call_operand.hbm [shape: bf16[64,288], index: 3, kind: input, shape index: {}]
  %s4 = inlined_call_operand.vmem [shape: f32[64,1], index: 4, kind: input, shape index: {}]
  %s5 = inlined_call_operand.hbm [shape: bf16[639,144], index: 5, kind: input, shape index: {}]
  %s6 = inlined_call_operand.vmem [shape: bf16[2,64,144], index: 6, kind: output, shape index: {}]
  %s7 = sld [smem:[#allocation0]]
  $region49: #{net_forward.2} parent=0
    _
  %s9 = ssub.s32 1, %s7
  %s10 = scalar_select 0, %s9, %s7
  $region1: #{net_forward.2} parent=0
    #allocation2 [shape = 'u8[49152]{0}', space=vmem, size = 0xc000, scoped, tag = 'input window, operand 3, single buffered']
    #allocation3 [shape = 's32[1]{0}', space=sflag, size = 0x4, scoped, tag = 'scoped memory for net_forward.2']
    #allocation4 [shape = 'u8[327680]{0}', space=vmem, size = 0x50000, scoped, tag = 'input window, operand 5, single buffered']
    #allocation5 [shape = 's32[1]{0}', space=sflag, size = 0x4, scoped, tag = 'scoped memory for net_forward.2']
    %11 = vsyncpa [#allocation3], 0
    %12 = vsyncpa [#allocation5], 0
    // Predicated region
    $region2: #{net_forward.2} parent=1 // pred_check
      _
    $region3: #{net_forward.2} parent=1 // pred_check_branch
      %14 = sbr.rel (0) target = $region5
    $region4: #{net_forward.2} parent=1 // pred_region
      _
    $region5: #{net_forward.2} parent=1 // pred_fallthru
      _
    // Predicated region
    $region6: #{net_forward.2} parent=1 // pred_check
      _
    $region7: #{net_forward.2} parent=1 // pred_check_branch
      %16 = sbr.rel (0) target = $region9
    $region8: #{net_forward.2} parent=1 // pred_region
      _
    $region9: #{net_forward.2} parent=1 // pred_fallthru
      _
    // Predicated region
    $region10: #{net_forward.2} parent=1 // pred_check
      _
    $region11: #{net_forward.2} parent=1 // pred_check_branch
      %18 = sbr.rel (0) target = $region13
    $region12: #{net_forward.2} parent=1 // pred_region
      _
    $region13: #{net_forward.2} parent=1 // pred_fallthru
      _
    // Predicated region
    $region14: #{net_forward.2} parent=1 // pred_check
      _
    $region15: #{net_forward.2} parent=1 // pred_check_branch
      %20 = sbr.rel (0) target = $region17
    $region16: #{net_forward.2} parent=1 // pred_region
      %s22 = ssub.s32 1536, 1536
      %23 = vsyncadd [#allocation3], %s22
      %s24 = sshll.u32 [#allocation2], 4
      %s25 = int_to_ptr.vmem [resolvable:$true] %s24
      %30 = dma.hbm_to_vmem [thread:$0]  %s3, 1536, %s25, [#allocation3], 192, 192, 12
    $region17: #{net_forward.2} parent=1 // pred_fallthru
      _
    // Predicated region
    $region18: #{net_forward.2} parent=1 // pred_check
      _
    $region19: #{net_forward.2} parent=1 // pred_check_branch
      %32 = sbr.rel (0) target = $region21
    $region20: #{net_forward.2} parent=1 // pred_region
      _
    $region21: #{net_forward.2} parent=1 // pred_fallthru
      _
    // Predicated region
    $region22: #{net_forward.2} parent=1 // pred_check
      _
    $region23: #{net_forward.2} parent=1 // pred_check_branch
      %34 = sbr.rel (0) target = $region25
    $region24: #{net_forward.2} parent=1 // pred_region
      %s36 = ssub.s32 10240, 10240
      %37 = vsyncadd [#allocation5], %s36
      %s38 = sshll.u32 [#allocation4], 4
      %s39 = int_to_ptr.vmem [resolvable:$true] %s38
      %44 = dma.hbm_to_vmem [thread:$0]  %s5, 10240, %s39, [#allocation5], 128, 128, 8
    $region25: #{net_forward.2} parent=1 // pred_fallthru
      _
    // Predicated region
    $region26: #{net_forward.2} parent=1 // pred_check
      _
    $region27: #{net_forward.2} parent=1 // pred_check_branch
      %46 = sbr.rel (0) target = $region29
    $region28: #{net_forward.2} parent=1 // pred_region
      %47 = dma.done [#allocation3], 1536
    $region29: #{net_forward.2} parent=1 // pred_fallthru
      _
    // Predicated region
    $region30: #{net_forward.2} parent=1 // pred_check
      _
    $region31: #{net_forward.2} parent=1 // pred_check_branch
      %49 = sbr.rel (0) target = $region33
    $region32: #{net_forward.2} parent=1 // pred_region
      %50 = dma.done [#allocation5], 10240
    $region33: #{net_forward.2} parent=1 // pred_fallthru
      _
    %v52 = vld [vmem:[%s1] sm:$0xf]
    %v53 = vld [vmem:[%s1 + $0x4] sm:$0xf]
    %v54 = vld [vmem:[%s1 + $0x8] sm:$0xf]
    %v55 = vld [vmem:[%s1 + $0xc] sm:$0xf]
    %v56 = vld [vmem:[%s1 + $0x10] sm:$0xf]
    %v57 = vld [vmem:[%s1 + $0x14] sm:$0xf]
    %v58 = vld [vmem:[%s1 + $0x18] sm:$0xf]
    %v59 = vld [vmem:[%s1 + $0x1c] sm:$0xf]
    %v60 = vld [vmem:[%s1 + $0x20] sm:$0xf]
    %v61 = vld [vmem:[%s1 + $0x24] sm:$0xf]
    %v62 = vld [vmem:[%s1 + $0x28] sm:$0xf]
    %v63 = vld [vmem:[%s1 + $0x2c] sm:$0xf]
    %v64 = vld [vmem:[%s1 + $0x30] sm:$0xf]
    %v65 = vld [vmem:[%s1 + $0x34] sm:$0xf]
    %v66 = vld [vmem:[%s1 + $0x38] sm:$0xf]
    %v67 = vld [vmem:[%s1 + $0x3c] sm:$0xf]
    %v68 = vld [vmem:[%s1 + $0x40] sm:$0xf]
    %v69 = vld [vmem:[%s1 + $0x44] sm:$0xf]
    %v70 = vld [vmem:[%s1 + $0x48] sm:$0xf]
    %v71 = vld [vmem:[%s1 + $0x4c] sm:$0xf]
    %v72 = vld [vmem:[%s1 + $0x50] sm:$0xf]
    %v73 = vld [vmem:[%s1 + $0x54] sm:$0xf]
    %v74 = vld [vmem:[%s1 + $0x58] sm:$0xf]
    %v75 = vld [vmem:[%s1 + $0x5c] sm:$0xf]
    %v76 = vld [vmem:[%s1 + $0x60] sm:$0xf]
    %v77 = vld [vmem:[%s1 + $0x64] sm:$0xf]
    %v78 = vld [vmem:[%s1 + $0x68] sm:$0xf]
    %v79 = vld [vmem:[%s1 + $0x6c] sm:$0xf]
    %v80 = vld [vmem:[%s1 + $0x70] sm:$0xf]
    %v81 = vld [vmem:[%s1 + $0x74] sm:$0xf]
    %v82 = vld [vmem:[%s1 + $0x78] sm:$0xf]
    %v83 = vld [vmem:[%s1 + $0x7c] sm:$0xf]
    %v84 = vld [vmem:[%s1 + $0x80] sm:$0xf]
    %v85 = vld [vmem:[%s1 + $0x84] sm:$0xf]
    %v86 = vld [vmem:[%s1 + $0x88] sm:$0xf]
    %v87 = vld [vmem:[%s1 + $0x8c] sm:$0xf]
    %v88 = vld [vmem:[%s2] sm:$0xff]
    %v89 = vld [vmem:[%s2 + $0x8] sm:$0xff]
    %v90 = vld [vmem:[%s2 + $0x10] sm:$0xff]
    %v91 = vld [vmem:[%s2 + $0x18] sm:$0xff]
    %v92 = vld [vmem:[%s2 + $0x20] sm:$0xff]
    %v93 = vld [vmem:[%s2 + $0x28] sm:$0xff]
    %v94 = vld [vmem:[%s2 + $0x30] sm:$0xff]
    %v95 = vld [vmem:[%s2 + $0x38] sm:$0xff]
    %v96 = vld [vmem:[%s2 + $0x40] sm:$0xff]
    %v97 = vld [vmem:[%s2 + $0x48] sm:$0xff]
    %v98 = vld [vmem:[%s2 + $0x50] sm:$0xff]
    %v99 = vld [vmem:[%s2 + $0x58] sm:$0xff]
    %v100 = vld [vmem:[%s2 + $0x60] sm:$0xff]
    %v101 = vld [vmem:[%s2 + $0x68] sm:$0xff]
    %v102 = vld [vmem:[%s2 + $0x70] sm:$0xff]
    %v103 = vld [vmem:[%s2 + $0x78] sm:$0xff]
    %v104 = vld [vmem:[%s2 + $0x80] sm:$0xff]
    %v105 = vld [vmem:[%s2 + $0x88] sm:$0xff]
    %v106 = vld [vmem:[%s2 + $0x90] sm:$0xff]
    %v107 = vld [vmem:[%s2 + $0x98] sm:$0xff]
    %v108 = vld [vmem:[%s2 + $0xa0] sm:$0xff]
    %v109 = vld [vmem:[%s2 + $0xa8] sm:$0xff]
    %v110 = vld [vmem:[%s2 + $0xb0] sm:$0xff]
    %v111 = vld [vmem:[%s2 + $0xb8] sm:$0xff]
    %v112 = vld [vmem:[%s2 + $0xc0] sm:$0xff]
    %v113 = vld [vmem:[%s2 + $0xc8] sm:$0xff]
    %v114 = vld [vmem:[%s2 + $0xd0] sm:$0xff]
    %v115 = vld [vmem:[%s2 + $0xd8] sm:$0xff]
    %v116 = vld [vmem:[%s2 + $0xe0] sm:$0xff]
    %v117 = vld [vmem:[%s2 + $0xe8] sm:$0xff]
    %v118 = vld [vmem:[%s2 + $0xf0] sm:$0xff]
    %v119 = vld [vmem:[%s2 + $0xf8] sm:$0xff]
    %v120 = vld [vmem:[%s2 + $0x100] sm:$0xff]
    %v121 = vld [vmem:[%s2 + $0x108] sm:$0xff]
    %v122 = vld [vmem:[%s2 + $0x110] sm:$0xff]
    %v123 = vld [vmem:[%s2 + $0x118] sm:$0xff]
    %v124 = vld [vmem:[#allocation2] sm:$0xff]
    %v125 = vld [vmem:[#allocation2 + $0x8] sm:$0xf]
    %v126 = vld [vmem:[#allocation2 + $0xc] sm:$0xff]
    %v127 = vld [vmem:[#allocation2 + $0x14] sm:$0xf]
    %v128 = vld [vmem:[#allocation2 + $0x18] sm:$0xff]
    %v129 = vld [vmem:[#allocation2 + $0x20] sm:$0xf]
    %v130 = vld [vmem:[#allocation2 + $0x24] sm:$0xff]
    %v131 = vld [vmem:[#allocation2 + $0x2c] sm:$0xf]
    %v132 = vld [vmem:[#allocation2 + $0x30] sm:$0xff]
    %v133 = vld [vmem:[#allocation2 + $0x38] sm:$0xf]
    %v134 = vld [vmem:[#allocation2 + $0x3c] sm:$0xff]
    %v135 = vld [vmem:[#allocation2 + $0x44] sm:$0xf]
    %v136 = vld [vmem:[#allocation2 + $0x48] sm:$0xff]
    %v137 = vld [vmem:[#allocation2 + $0x50] sm:$0xf]
    %v138 = vld [vmem:[#allocation2 + $0x54] sm:$0xff]
    %v139 = vld [vmem:[#allocation2 + $0x5c] sm:$0xf]
    %v140 = vld [vmem:[%s4] sm:$0xff]
    %v141 = vld [vmem:[%s4 + $0x8] sm:$0xff]
    %v142 = vld [vmem:[%s4 + $0x10] sm:$0xff]
    %v143 = vld [vmem:[%s4 + $0x18] sm:$0xff]
    %v144 = vld [vmem:[%s4 + $0x20] sm:$0xff]
    %v145 = vld [vmem:[%s4 + $0x28] sm:$0xff]
    %v146 = vld [vmem:[%s4 + $0x30] sm:$0xff]
    %v147 = vld [vmem:[%s4 + $0x38] sm:$0xff]
    %v148 = vld [vmem:[#allocation4] sm:$0xff]
    %v149 = vld [vmem:[#allocation4 + $0x8] sm:$0xff]
    %v150 = vld [vmem:[#allocation4 + $0x10] sm:$0xff]
    %v151 = vld [vmem:[#allocation4 + $0x18] sm:$0xff]
    %v152 = vld [vmem:[#allocation4 + $0x20] sm:$0xff]
    %v153 = vld [vmem:[#allocation4 + $0x28] sm:$0xff]
    %v154 = vld [vmem:[#allocation4 + $0x30] sm:$0xff]
    %v155 = vld [vmem:[#allocation4 + $0x38] sm:$0xff]
    %v156 = vld [vmem:[#allocation4 + $0x40] sm:$0xff]
    %v157 = vld [vmem:[#allocation4 + $0x48] sm:$0xff]
    %v158 = vld [vmem:[#allocation4 + $0x50] sm:$0xff]
    %v159 = vld [vmem:[#allocation4 + $0x58] sm:$0xff]
    %v160 = vld [vmem:[#allocation4 + $0x60] sm:$0xff]
    %v161 = vld [vmem:[#allocation4 + $0x68] sm:$0xff]
    %v162 = vld [vmem:[#allocation4 + $0x70] sm:$0xff]
    %v163 = vld [vmem:[#allocation4 + $0x78] sm:$0xff]
    %v164 = vld [vmem:[#allocation4 + $0x80] sm:$0xff]
    %v165 = vld [vmem:[#allocation4 + $0x88] sm:$0xff]
    %v166 = vld [vmem:[#allocation4 + $0x90] sm:$0xff]
    %v167 = vld [vmem:[#allocation4 + $0x98] sm:$0xff]
    %v168 = vld [vmem:[#allocation4 + $0xa0] sm:$0xff]
    %v169 = vld [vmem:[#allocation4 + $0xa8] sm:$0xff]
    %v170 = vld [vmem:[#allocation4 + $0xb0] sm:$0xff]
    %v171 = vld [vmem:[#allocation4 + $0xb8] sm:$0xff]
    %v172 = vld [vmem:[#allocation4 + $0xc0] sm:$0xff]
    %v173 = vld [vmem:[#allocation4 + $0xc8] sm:$0xff]
    %v174 = vld [vmem:[#allocation4 + $0xd0] sm:$0xff]
    %v175 = vld [vmem:[#allocation4 + $0xd8] sm:$0xff]
    %v176 = vld [vmem:[#allocation4 + $0xe0] sm:$0xff]
    %v177 = vld [vmem:[#allocation4 + $0xe8] sm:$0xff]
    %v178 = vld [vmem:[#allocation4 + $0xf0] sm:$0xff]
    %v179 = vld [vmem:[#allocation4 + $0xf8] sm:$0xff]
    %v180 = vld [vmem:[#allocation4 + $0x100] sm:$0xff]
    %v181 = vld [vmem:[#allocation4 + $0x108] sm:$0xff]
    %v182 = vld [vmem:[#allocation4 + $0x110] sm:$0xff]
    %v183 = vld [vmem:[#allocation4 + $0x118] sm:$0xff]
    %v184 = vld [vmem:[#allocation4 + $0x120] sm:$0xff]
    %v185 = vld [vmem:[#allocation4 + $0x128] sm:$0xff]
    %v186 = vld [vmem:[#allocation4 + $0x130] sm:$0xff]
    %v187 = vld [vmem:[#allocation4 + $0x138] sm:$0xff]
    %v188 = vld [vmem:[#allocation4 + $0x140] sm:$0xff]
    %v189 = vld [vmem:[#allocation4 + $0x148] sm:$0xff]
    %v190 = vld [vmem:[#allocation4 + $0x150] sm:$0xff]
    %v191 = vld [vmem:[#allocation4 + $0x158] sm:$0xff]
    %v192 = vld [vmem:[#allocation4 + $0x160] sm:$0xff]
    %v193 = vld [vmem:[#allocation4 + $0x168] sm:$0xff]
    %v194 = vld [vmem:[#allocation4 + $0x170] sm:$0xff]
    %v195 = vld [vmem:[#allocation4 + $0x178] sm:$0xff]
    %v196 = vld [vmem:[#allocation4 + $0x180] sm:$0xff]
    %v197 = vld [vmem:[#allocation4 + $0x188] sm:$0xff]
    %v198 = vld [vmem:[#allocation4 + $0x190] sm:$0xff]
    %v199 = vld [vmem:[#allocation4 + $0x198] sm:$0xff]
    %v200 = vld [vmem:[#allocation4 + $0x1a0] sm:$0xff]
    %v201 = vld [vmem:[#allocation4 + $0x1a8] sm:$0xff]
    %v202 = vld [vmem:[#allocation4 + $0x1b0] sm:$0xff]
    %v203 = vld [vmem:[#allocation4 + $0x1b8] sm:$0xff]
    %v204 = vld [vmem:[#allocation4 + $0x1c0] sm:$0xff]
    %v205 = vld [vmem:[#allocation4 + $0x1c8] sm:$0xff]
    %v206 = vld [vmem:[#allocation4 + $0x1d0] sm:$0xff]
    %v207 = vld [vmem:[#allocation4 + $0x1d8] sm:$0xff]
    %v208 = vld [vmem:[#allocation4 + $0x1e0] sm:$0xff]
    %v209 = vld [vmem:[#allocation4 + $0x1e8] sm:$0xff]
    %v210 = vld [vmem:[#allocation4 + $0x1f0] sm:$0xff]
    %v211 = vld [vmem:[#allocation4 + $0x1f8] sm:$0xff]
    %v212 = vld [vmem:[#allocation4 + $0x200] sm:$0xff]
    %v213 = vld [vmem:[#allocation4 + $0x208] sm:$0xff]
    %v214 = vld [vmem:[#allocation4 + $0x210] sm:$0xff]
    %v215 = vld [vmem:[#allocation4 + $0x218] sm:$0xff]
    %v216 = vld [vmem:[#allocation4 + $0x220] sm:$0xff]
    %v217 = vld [vmem:[#allocation4 + $0x228] sm:$0xff]
    %v218 = vld [vmem:[#allocation4 + $0x230] sm:$0xff]
    %v219 = vld [vmem:[#allocation4 + $0x238] sm:$0xff]
    %v220 = vld [vmem:[#allocation4 + $0x240] sm:$0xff]
    %v221 = vld [vmem:[#allocation4 + $0x248] sm:$0xff]
    %v222 = vld [vmem:[#allocation4 + $0x250] sm:$0xff]
    %v223 = vld [vmem:[#allocation4 + $0x258] sm:$0xff]
    %v224 = vld [vmem:[#allocation4 + $0x260] sm:$0xff]
    %v225 = vld [vmem:[#allocation4 + $0x268] sm:$0xff]
    %v226 = vld [vmem:[#allocation4 + $0x270] sm:$0xff]
    %v227 = vld [vmem:[#allocation4 + $0x278] sm:$0xff]
    loop: start=0, step=1, limit=2
    $region34: #{net_forward.2} parent=1 // loop_pre_header
      _
    $region35: #{net_forward.2} parent=1 // loop_header
      %s229 = sphi 0, %s233
      %p230 = scmp.ge.s32.totalorder %s229, 2
    $region36: #{net_forward.2} parent=1 // loop_header_branch
      %232 = sbr.rel (%p230) target = $region40
    $region37: #{net_forward.2} parent=1 // loop_body
      %s234 = smul.u32 %s229, 24
      %s235 = smul.addr %s234, 4
      %s236 = scalar_lea.vmem %s0, %s235
      %v237 = vld [vmem:[%s236] sm:$0xff]
      %v238 = vld [vmem:[%s236 + $0x8] sm:$0xff]
      %v239 = vld [vmem:[%s236 + $0x10] sm:$0xff]
      %v240 = vld [vmem:[%s236 + $0x18] sm:$0xff]
      %v241 = vld [vmem:[%s236 + $0x20] sm:$0xff]
      %v242 = vld [vmem:[%s236 + $0x28] sm:$0xff]
      %v243 = vld [vmem:[%s236 + $0x30] sm:$0xff]
      %v244 = vld [vmem:[%s236 + $0x38] sm:$0xff]
      %v245 = vld [vmem:[%s236 + $0x40] sm:$0xff]
      %v246 = vld [vmem:[%s236 + $0x48] sm:$0x11]
      %v247 = vld [vmem:[%s236 + $0x50] sm:$0x11]
      %v248 = vld [vmem:[%s236 + $0x58] sm:$0x11]
      %250 = vset.pattern.permute.xlu0 0
      %251 = vperm.xlu0 %250, %v88
      %v252 = vpop.permute.xlu0 %251
      %255 = vset.pattern.permute.xlu0 0
      %256 = vperm.xlu0 %255, %v89
      %v257 = vpop.permute.xlu0 %256
      %260 = vset.pattern.permute.xlu0 0
      %261 = vperm.xlu0 %260, %v90
      %v262 = vpop.permute.xlu0 %261
      %265 = vset.pattern.permute.xlu0 0
      %266 = vperm.xlu0 %265, %v91
      %v267 = vpop.permute.xlu0 %266
      %270 = vset.pattern.permute.xlu0 0
      %271 = vperm.xlu0 %270, %v92
      %v272 = vpop.permute.xlu0 %271
      %275 = vset.pattern.permute.xlu0 0
      %276 = vperm.xlu0 %275, %v93
      %v277 = vpop.permute.xlu0 %276
      %280 = vset.pattern.permute.xlu0 0
      %281 = vperm.xlu0 %280, %v94
      %v282 = vpop.permute.xlu0 %281
      %285 = vset.pattern.permute.xlu0 0
      %286 = vperm.xlu0 %285, %v95
      %v287 = vpop.permute.xlu0 %286
      %290 = vset.pattern.permute.xlu0 0
      %291 = vperm.xlu0 %290, %v96
      %v292 = vpop.permute.xlu0 %291
      %295 = vset.pattern.permute.xlu0 0
      %296 = vperm.xlu0 %295, %v97
      %v297 = vpop.permute.xlu0 %296
      %300 = vset.pattern.permute.xlu0 0
      %301 = vperm.xlu0 %300, %v98
      %v302 = vpop.permute.xlu0 %301
      %305 = vset.pattern.permute.xlu0 0
      %306 = vperm.xlu0 %305, %v99
      %v307 = vpop.permute.xlu0 %306
      %310 = vset.pattern.permute.xlu0 0
      %311 = vperm.xlu0 %310, %v100
      %v312 = vpop.permute.xlu0 %311
      %315 = vset.pattern.permute.xlu0 0
      %316 = vperm.xlu0 %315, %v101
      %v317 = vpop.permute.xlu0 %316
      %320 = vset.pattern.permute.xlu0 0
      %321 = vperm.xlu0 %320, %v102
      %v322 = vpop.permute.xlu0 %321
      %325 = vset.pattern.permute.xlu0 0
      %326 = vperm.xlu0 %325, %v103
      %v327 = vpop.permute.xlu0 %326
      %330 = vset.pattern.permute.xlu0 0
      %331 = vperm.xlu0 %330, %v104
      %v332 = vpop.permute.xlu0 %331
      %335 = vset.pattern.permute.xlu0 0
      %336 = vperm.xlu0 %335, %v105
      %v337 = vpop.permute.xlu0 %336
      %340 = vset.pattern.permute.xlu0 0
      %341 = vperm.xlu0 %340, %v106
      %v342 = vpop.permute.xlu0 %341
      %345 = vset.pattern.permute.xlu0 0
      %346 = vperm.xlu0 %345, %v107
      %v347 = vpop.permute.xlu0 %346
      %350 = vset.pattern.permute.xlu0 0
      %351 = vperm.xlu0 %350, %v108
      %v352 = vpop.permute.xlu0 %351
      %355 = vset.pattern.permute.xlu0 0
      %356 = vperm.xlu0 %355, %v109
      %v357 = vpop.permute.xlu0 %356
      %360 = vset.pattern.permute.xlu0 0
      %361 = vperm.xlu0 %360, %v110
      %v362 = vpop.permute.xlu0 %361
      %365 = vset.pattern.permute.xlu0 0
      %366 = vperm.xlu0 %365, %v111
      %v367 = vpop.permute.xlu0 %366
      %370 = vset.pattern.permute.xlu0 0
      %371 = vperm.xlu0 %370, %v112
      %v372 = vpop.permute.xlu0 %371
      %375 = vset.pattern.permute.xlu0 0
      %376 = vperm.xlu0 %375, %v113
      %v377 = vpop.permute.xlu0 %376
      %380 = vset.pattern.permute.xlu0 0
      %381 = vperm.xlu0 %380, %v114
      %v382 = vpop.permute.xlu0 %381
      %385 = vset.pattern.permute.xlu0 0
      %386 = vperm.xlu0 %385, %v115
      %v387 = vpop.permute.xlu0 %386
      %390 = vset.pattern.permute.xlu0 0
      %391 = vperm.xlu0 %390, %v116
      %v392 = vpop.permute.xlu0 %391
      %395 = vset.pattern.permute.xlu0 0
      %396 = vperm.xlu0 %395, %v117
      %v397 = vpop.permute.xlu0 %396
      %400 = vset.pattern.permute.xlu0 0
      %401 = vperm.xlu0 %400, %v118
      %v402 = vpop.permute.xlu0 %401
      %405 = vset.pattern.permute.xlu0 0
      %406 = vperm.xlu0 %405, %v119
      %v407 = vpop.permute.xlu0 %406
      %410 = vset.pattern.permute.xlu0 0
      %411 = vperm.xlu0 %410, %v120
      %v412 = vpop.permute.xlu0 %411
      %415 = vset.pattern.permute.xlu0 0
      %416 = vperm.xlu0 %415, %v121
      %v417 = vpop.permute.xlu0 %416
      %420 = vset.pattern.permute.xlu0 0
      %421 = vperm.xlu0 %420, %v122
      %v422 = vpop.permute.xlu0 %421
      %425 = vset.pattern.permute.xlu0 0
      %426 = vperm.xlu0 %425, %v123
      %v427 = vpop.permute.xlu0 %426
      %v465 = vunpack.c.l.b16 %v52
      %v466 = vunpack.c.l.b16 %v53
      %v467 = vunpack.c.l.b16 %v54
      %v468 = vunpack.c.l.b16 %v55
      %v469 = vunpack.c.l.b16 %v56
      %v470 = vunpack.c.l.b16 %v57
      %v471 = vunpack.c.l.b16 %v58
      %v472 = vunpack.c.l.b16 %v59
      %v473 = vunpack.c.l.b16 %v60
      %v474 = vunpack.c.l.b16 %v61
      %v475 = vunpack.c.l.b16 %v62
      %v476 = vunpack.c.l.b16 %v63
      %v477 = vunpack.c.l.b16 %v64
      %v478 = vunpack.c.l.b16 %v65
      %v479 = vunpack.c.l.b16 %v66
      %v480 = vunpack.c.l.b16 %v67
      %v481 = vunpack.c.l.b16 %v68
      %v482 = vunpack.c.l.b16 %v69
      %v483 = vunpack.c.l.b16 %v70
      %v484 = vunpack.c.l.b16 %v71
      %v485 = vunpack.c.l.b16 %v72
      %v486 = vunpack.c.l.b16 %v73
      %v487 = vunpack.c.l.b16 %v74
      %v488 = vunpack.c.l.b16 %v75
      %v489 = vunpack.c.l.b16 %v76
      %v490 = vunpack.c.l.b16 %v77
      %v491 = vunpack.c.l.b16 %v78
      %v492 = vunpack.c.l.b16 %v79
      %v493 = vunpack.c.l.b16 %v80
      %v494 = vunpack.c.l.b16 %v81
      %v495 = vunpack.c.l.b16 %v82
      %v496 = vunpack.c.l.b16 %v83
      %v497 = vunpack.c.l.b16 %v84
      %v498 = vunpack.c.l.b16 %v85
      %v499 = vunpack.c.l.b16 %v86
      %v500 = vunpack.c.l.b16 %v87
      %v501 = vpack.c.b16 %v466, %v465
      %v502 = vpack.c.b16 %v468, %v467
      %v503 = vpack.c.b16 %v470, %v469
      %v504 = vpack.c.b16 %v472, %v471
      %v505 = vpack.c.b16 %v474, %v473
      %v506 = vpack.c.b16 %v476, %v475
      %v507 = vpack.c.b16 %v478, %v477
      %v508 = vpack.c.b16 %v480, %v479
      %v509 = vpack.c.b16 %v482, %v481
      %v510 = vpack.c.b16 %v484, %v483
      %v511 = vpack.c.b16 %v486, %v485
      %v512 = vpack.c.b16 %v488, %v487
      %v513 = vpack.c.b16 %v490, %v489
      %v514 = vpack.c.b16 %v492, %v491
      %v515 = vpack.c.b16 %v494, %v493
      %v516 = vpack.c.b16 %v496, %v495
      %v517 = vpack.c.b16 %v498, %v497
      %v518 = vpack.c.b16 %v500, %v499
      %v531 = vunpack.c.l.b16 %v237
      %v532 = vunpack.c.h.b16 %v237
      %v533 = vunpack.c.l.b16 %v238
      %v534 = vunpack.c.h.b16 %v238
      %v535 = vunpack.c.l.b16 %v239
      %v536 = vunpack.c.h.b16 %v239
      %v537 = vunpack.c.l.b16 %v240
      %v538 = vunpack.c.h.b16 %v240
      %v539 = vunpack.c.l.b16 %v241
      %v540 = vunpack.c.h.b16 %v241
      %v541 = vunpack.c.l.b16 %v242
      %v542 = vunpack.c.h.b16 %v242
      %v543 = vunpack.c.l.b16 %v243
      %v544 = vunpack.c.h.b16 %v243
      %v545 = vunpack.c.l.b16 %v244
      %v546 = vunpack.c.h.b16 %v244
      %v547 = vunpack.c.l.b16 %v245
      %v548 = vunpack.c.h.b16 %v245
      %v549 = vunpack.c.l.b16 %v246
      %v550 = vunpack.c.h.b16 %v246
      %v551 = vunpack.c.l.b16 %v247
      %v552 = vunpack.c.h.b16 %v247
      %v553 = vunpack.c.l.b16 %v248
      %v554 = vunpack.c.h.b16 %v248
      %v555 = vpack.c.b16 %v537, %v531
      %v556 = vpack.c.b16 %v538, %v532
      %v557 = vpack.c.b16 %v539, %v533
      %v558 = vpack.c.b16 %v540, %v534
      %v559 = vpack.c.b16 %v541, %v535
      %v560 = vpack.c.b16 %v542, %v536
      %v561 = vpack.c.b16 %v549, %v543
      %v562 = vpack.c.b16 %v550, %v544
      %v563 = vpack.c.b16 %v551, %v545
      %v564 = vpack.c.b16 %v552, %v546
      %v565 = vpack.c.b16 %v553, %v547
      %v566 = vpack.c.b16 %v554, %v548
      %vm573 = vcmask 203776
      %v575 = vsel %vm573, %v501, 0
      %v578 = vsel %vm573, %v502, 0
      %v581 = vsel %vm573, %v503, 0
      %v584 = vsel %vm573, %v504, 0
      %v587 = vsel %vm573, %v505, 0
      %v590 = vsel %vm573, %v506, 0
      %v593 = vsel %vm573, %v507, 0
      %v596 = vsel %vm573, %v508, 0
      %v599 = vsel %vm573, %v509, 0
      %v602 = vsel %vm573, %v510, 0
      %v605 = vsel %vm573, %v511, 0
      %v608 = vsel %vm573, %v512, 0
      %v611 = vsel %vm573, %v513, 0
      %v614 = vsel %vm573, %v514, 0
      %v617 = vsel %vm573, %v515, 0
      %v620 = vsel %vm573, %v516, 0
      %v623 = vsel %vm573, %v517, 0
      %v626 = vsel %vm573, %v518, 0
      %vm628 = vcmask 1043456
      %vm629 = vcmask 1044480
      %v630 = vsel %vm628, 4294967295, 65535
      %v631 = vsel %vm629, %v630, 0
      %v633 = vand.u32 %v561, %v631
      %v636 = vand.u32 %v562, %v631
      %v639 = vand.u32 %v563, %v631
      %v642 = vand.u32 %v564, %v631
      %v645 = vand.u32 %v565, %v631
      %v648 = vand.u32 %v566, %v631
      %650 = vmatprep.subr.bf16.mxu0 %v556
      %651 = vmatpush1.bf16.msra.mxu0 %v555
      %652 = vmatprep.subr.bf16.mxu0 %v636
      %653 = vmatpush1.bf16.msra.mxu0 %v633
      %654 = vmatprep.subr.bf16.mxu0 0
      %655 = vmatpush1.bf16.msra.mxu0 0
      %656 = vmatprep.subr.bf16.mxu0 0
      %657 = vmatpush1.bf16.msra.mxu0 0
      %658 = vmatprep.subr.bf16.mxu0 0
      %659 = vmatpush1.bf16.msra.mxu0 0
      %660 = vmatprep.subr.bf16.mxu0 0
      %661 = vmatpush1.bf16.msra.mxu0 0
      %662 = vmatprep.subr.bf16.mxu0 0
      %663 = vmatpush1.bf16.msra.mxu0 0
      %664 = vmatprep.subr.bf16.mxu0 0
      %665 = vmatpush1.bf16.msra.mxu0 0
      %666 = vmatprep.subr.bf16.mxu0 0
      %667 = vmatpush1.bf16.msra.mxu0 0
      %668 = vmatprep.subr.bf16.mxu0 0
      %669 = vmatpush1.bf16.msra.mxu0 0
      %670 = vmatprep.subr.bf16.mxu0 0
      %671 = vmatpush1.bf16.msra.mxu0 0
      %672 = vmatprep.subr.bf16.mxu0 0
      %673 = vmatpush1.bf16.msra.mxu0 0
      %674 = vmatprep.subr.bf16.mxu0 0
      %675 = vmatpush1.bf16.msra.mxu0 0
      %676 = vmatprep.subr.bf16.mxu0 0
      %677 = vmatpush1.bf16.msra.mxu0 0
      %678 = vmatprep.subr.bf16.mxu0 0
      %679 = vmatpush1.bf16.msra.mxu0 0
      %680 = vmatprep.subr.bf16.mxu0 0
      %681 = vmatpush1.bf16.msra.mxu0 0
      %682 = vmatprep.mubr.bf16.mxu0 0
      %683 = vmatmul.mubr.bf16.gmra.mrb[0].mxu0 %v575
      %v684 = vpop.f32.mrb[0].mxu0
      %v685 = vadd.f32 %v252, %v684
      %v686 = vpop.f32.mrb[0].mxu0
      %v687 = vadd.f32 %v252, %v686
      %v688 = vpop.f32.mrb[0].mxu0
      %v689 = vadd.f32 %v257, %v688
      %v690 = vpop.f32.mrb[0].mxu0
      %v691 = vadd.f32 %v257, %v690
      %692 = vmatprep.mubr.bf16.mxu0 0
      %693 = vmatmul.mubr.bf16.gmra.mrb[0].mxu0 %v578
      %v694 = vpop.f32.mrb[0].mxu0
      %v695 = vadd.f32 %v262, %v694
      %v696 = vpop.f32.mrb[0].mxu0
      %v697 = vadd.f32 %v262, %v696
      %v698 = vpop.f32.mrb[0].mxu0
      %v699 = vadd.f32 %v267, %v698
      %v700 = vpop.f32.mrb[0].mxu0
      %v701 = vadd.f32 %v267, %v700
      %702 = vmatprep.mubr.bf16.mxu0 0
      %703 = vmatmul.mubr.bf16.gmra.mrb[0].mxu0 %v581
      %v704 = vpop.f32.mrb[0].mxu0
      %v705 = vadd.f32 %v272, %v704
      %v706 = vpop.f32.mrb[0].mxu0
      %v707 = vadd.f32 %v272, %v706
      %v708 = vpop.f32.mrb[0].mxu0
      %v709 = vadd.f32 %v277, %v708
      %v710 = vpop.f32.mrb[0].mxu0
      %v711 = vadd.f32 %v277, %v710
      %712 = vmatprep.mubr.bf16.mxu0 0
      %713 = vmatmul.mubr.bf16.gmra.mrb[0].mxu0 %v584
      %v714 = vpop.f32.mrb[0].mxu0
      %v715 = vadd.f32 %v282, %v714
      %v716 = vpop.f32.mrb[0].mxu0
      %v717 = vadd.f32 %v282, %v716
      %v718 = vpop.f32.mrb[0].mxu0
      %v719 = vadd.f32 %v287, %v718
      %v720 = vpop.f32.mrb[0].mxu0
      %v721 = vadd.f32 %v287, %v720
      %722 = vmatprep.mubr.bf16.mxu0 0
      %723 = vmatmul.mubr.bf16.gmra.mrb[0].mxu0 %v587
      %v724 = vpop.f32.mrb[0].mxu0
      %v725 = vadd.f32 %v292, %v724
      %v726 = vpop.f32.mrb[0].mxu0
      %v727 = vadd.f32 %v292, %v726
      %v728 = vpop.f32.mrb[0].mxu0
      %v729 = vadd.f32 %v297, %v728
      %v730 = vpop.f32.mrb[0].mxu0
      %v731 = vadd.f32 %v297, %v730
      %732 = vmatprep.mubr.bf16.mxu0 0
      %733 = vmatmul.mubr.bf16.gmra.mrb[0].mxu0 %v590
      %v734 = vpop.f32.mrb[0].mxu0
      %v735 = vadd.f32 %v302, %v734
      %v736 = vpop.f32.mrb[0].mxu0
      %v737 = vadd.f32 %v302, %v736
      %v738 = vpop.f32.mrb[0].mxu0
      %v739 = vadd.f32 %v307, %v738
      %v740 = vpop.f32.mrb[0].mxu0
      %v741 = vadd.f32 %v307, %v740
      %742 = vmatprep.mubr.bf16.mxu0 0
      %743 = vmatmul.mubr.bf16.gmra.mrb[0].mxu0 %v593
      %v744 = vpop.f32.mrb[0].mxu0
      %v745 = vadd.f32 %v312, %v744
      %v746 = vpop.f32.mrb[0].mxu0
      %v747 = vadd.f32 %v312, %v746
      %v748 = vpop.f32.mrb[0].mxu0
      %v749 = vadd.f32 %v317, %v748
      %v750 = vpop.f32.mrb[0].mxu0
      %v751 = vadd.f32 %v317, %v750
      %752 = vmatprep.mubr.bf16.mxu0 0
      %753 = vmatmul.mubr.bf16.gmra.mrb[0].mxu0 %v596
      %v754 = vpop.f32.mrb[0].mxu0
      %v755 = vadd.f32 %v322, %v754
      %v756 = vpop.f32.mrb[0].mxu0
      %v757 = vadd.f32 %v322, %v756
      %v758 = vpop.f32.mrb[0].mxu0
      %v759 = vadd.f32 %v327, %v758
      %v760 = vpop.f32.mrb[0].mxu0
      %v761 = vadd.f32 %v327, %v760
      %762 = vmatprep.mubr.bf16.mxu0 0
      %763 = vmatmul.mubr.bf16.gmra.mrb[0].mxu0 %v599
      %v764 = vpop.f32.mrb[0].mxu0
      %v765 = vadd.f32 %v332, %v764
      %v766 = vpop.f32.mrb[0].mxu0
      %v767 = vadd.f32 %v332, %v766
      %v768 = vpop.f32.mrb[0].mxu0
      %v769 = vadd.f32 %v337, %v768
      %v770 = vpop.f32.mrb[0].mxu0
      %v771 = vadd.f32 %v337, %v770
      %772 = vmatprep.mubr.bf16.mxu0 0
      %773 = vmatmul.mubr.bf16.gmra.mrb[0].mxu0 %v602
      %v774 = vpop.f32.mrb[0].mxu0
      %v775 = vadd.f32 %v342, %v774
      %v776 = vpop.f32.mrb[0].mxu0
      %v777 = vadd.f32 %v342, %v776
      %v778 = vpop.f32.mrb[0].mxu0
      %v779 = vadd.f32 %v347, %v778
      %v780 = vpop.f32.mrb[0].mxu0
      %v781 = vadd.f32 %v347, %v780
      %782 = vmatprep.mubr.bf16.mxu0 0
      %783 = vmatmul.mubr.bf16.gmra.mrb[0].mxu0 %v605
      %v784 = vpop.f32.mrb[0].mxu0
      %v785 = vadd.f32 %v352, %v784
      %v786 = vpop.f32.mrb[0].mxu0
      %v787 = vadd.f32 %v352, %v786
      %v788 = vpop.f32.mrb[0].mxu0
      %v789 = vadd.f32 %v357, %v788
      %v790 = vpop.f32.mrb[0].mxu0
      %v791 = vadd.f32 %v357, %v790
      %792 = vmatprep.mubr.bf16.mxu0 0
      %793 = vmatmul.mubr.bf16.gmra.mrb[0].mxu0 %v608
      %v794 = vpop.f32.mrb[0].mxu0
      %v795 = vadd.f32 %v362, %v794
      %v796 = vpop.f32.mrb[0].mxu0
      %v797 = vadd.f32 %v362, %v796
      %v798 = vpop.f32.mrb[0].mxu0
      %v799 = vadd.f32 %v367, %v798
      %v800 = vpop.f32.mrb[0].mxu0
      %v801 = vadd.f32 %v367, %v800
      %802 = vmatprep.mubr.bf16.mxu0 0
      %803 = vmatmul.mubr.bf16.gmra.mrb[0].mxu0 %v611
      %v804 = vpop.f32.mrb[0].mxu0
      %v805 = vadd.f32 %v372, %v804
      %v806 = vpop.f32.mrb[0].mxu0
      %v807 = vadd.f32 %v372, %v806
      %v808 = vpop.f32.mrb[0].mxu0
      %v809 = vadd.f32 %v377, %v808
      %v810 = vpop.f32.mrb[0].mxu0
      %v811 = vadd.f32 %v377, %v810
      %812 = vmatprep.mubr.bf16.mxu0 0
      %813 = vmatmul.mubr.bf16.gmra.mrb[0].mxu0 %v614
      %v814 = vpop.f32.mrb[0].mxu0
      %v815 = vadd.f32 %v382, %v814
      %v816 = vpop.f32.mrb[0].mxu0
      %v817 = vadd.f32 %v382, %v816
      %v818 = vpop.f32.mrb[0].mxu0
      %v819 = vadd.f32 %v387, %v818
      %v820 = vpop.f32.mrb[0].mxu0
      %v821 = vadd.f32 %v387, %v820
      %822 = vmatprep.mubr.bf16.mxu0 0
      %823 = vmatmul.mubr.bf16.gmra.mrb[0].mxu0 %v617
      %v824 = vpop.f32.mrb[0].mxu0
      %v825 = vadd.f32 %v392, %v824
      %v826 = vpop.f32.mrb[0].mxu0
      %v827 = vadd.f32 %v392, %v826
      %v828 = vpop.f32.mrb[0].mxu0
      %v829 = vadd.f32 %v397, %v828
      %v830 = vpop.f32.mrb[0].mxu0
      %v831 = vadd.f32 %v397, %v830
      %832 = vmatprep.mubr.bf16.mxu0 0
      %833 = vmatmul.mubr.bf16.gmra.mrb[0].mxu0 %v620
      %v834 = vpop.f32.mrb[0].mxu0
      %v835 = vadd.f32 %v402, %v834
      %v836 = vpop.f32.mrb[0].mxu0
      %v837 = vadd.f32 %v402, %v836
      %v838 = vpop.f32.mrb[0].mxu0
      %v839 = vadd.f32 %v407, %v838
      %v840 = vpop.f32.mrb[0].mxu0
      %v841 = vadd.f32 %v407, %v840
      %842 = vmatprep.mubr.bf16.mxu0 0
      %843 = vmatmul.mubr.bf16.gmra.mrb[0].mxu0 %v623
      %v844 = vpop.f32.mrb[0].mxu0
      %v845 = vadd.f32 %v412, %v844
      %v846 = vpop.f32.mrb[0].mxu0
      %v847 = vadd.f32 %v412, %v846
      %v848 = vpop.f32.mrb[0].mxu0
      %v849 = vadd.f32 %v417, %v848
      %v850 = vpop.f32.mrb[0].mxu0
      %v851 = vadd.f32 %v417, %v850
      %852 = vmatprep.mubr.bf16.mxu0 0
      %853 = vmatmul.mubr.bf16.gmra.mrb[0].mxu0 %v626
      %v854 = vpop.f32.mrb[0].mxu0
      %v855 = vadd.f32 %v422, %v854
      %v856 = vpop.f32.mrb[0].mxu0
      %v857 = vadd.f32 %v422, %v856
      %v858 = vpop.f32.mrb[0].mxu0
      %v859 = vadd.f32 %v427, %v858
      %v860 = vpop.f32.mrb[0].mxu0
      %v861 = vadd.f32 %v427, %v860
      %862 = vdwg.mxu0
      %863 = vmatprep.subr.bf16.mxu0 %v558
      %864 = vmatpush1.bf16.msra.mxu0 %v557
      %865 = vmatprep.subr.bf16.mxu0 %v642
      %866 = vmatpush1.bf16.msra.mxu0 %v639
      %867 = vmatprep.subr.bf16.mxu0 0
      %868 = vmatpush1.bf16.msra.mxu0 0
      %869 = vmatprep.subr.bf16.mxu0 0
      %870 = vmatpush1.bf16.msra.mxu0 0
      %871 = vmatprep.subr.bf16.mxu0 0
      %872 = vmatpush1.bf16.msra.mxu0 0
      %873 = vmatprep.subr.bf16.mxu0 0
      %874 = vmatpush1.bf16.msra.mxu0 0
      %875 = vmatprep.subr.bf16.mxu0 0
      %876 = vmatpush1.bf16.msra.mxu0 0
      %877 = vmatprep.subr.bf16.mxu0 0
      %878 = vmatpush1.bf16.msra.mxu0 0
      %879 = vmatprep.subr.bf16.mxu0 0
      %880 = vmatpush1.bf16.msra.mxu0 0
      %881 = vmatprep.subr.bf16.mxu0 0
      %882 = vmatpush1.bf16.msra.mxu0 0
      %883 = vmatprep.subr.bf16.mxu0 0
      %884 = vmatpush1.bf16.msra.mxu0 0
      %885 = vmatprep.subr.bf16.mxu0 0
      %886 = vmatpush1.bf16.msra.mxu0 0
      %887 = vmatprep.subr.bf16.mxu0 0
      %888 = vmatpush1.bf16.msra.mxu0 0
      %889 = vmatprep.subr.bf16.mxu0 0
      %890 = vmatpush1.bf16.msra.mxu0 0
      %891 = vmatprep.subr.bf16.mxu0 0
      %892 = vmatpush1.bf16.msra.mxu0 0
      %893 = vmatprep.subr.bf16.mxu0 0
      %894 = vmatpush1.bf16.msra.mxu0 0
      %895 = vmatprep.mubr.bf16.mxu0 0
      %896 = vmatmul.mubr.bf16.gmra.mrb[0].mxu0 %v575
      %v897 = vpop.f32.mrb[0].mxu0
      %v898 = vadd.f32 %v252, %v897
      %v899 = vpop.f32.mrb[0].mxu0
      %v900 = vadd.f32 %v252, %v899
      %v901 = vpop.f32.mrb[0].mxu0
      %v902 = vadd.f32 %v257, %v901
      %v903 = vpop.f32.mrb[0].mxu0
      %v904 = vadd.f32 %v257, %v903
      %905 = vmatprep.mubr.bf16.mxu0 0
      %906 = vmatmul.mubr.bf16.gmra.mrb[0].mxu0 %v578
      %v907 = vpop.f32.mrb[0].mxu0
      %v908 = vadd.f32 %v262, %v907
      %v909 = vpop.f32.mrb[0].mxu0
      %v910 = vadd.f32 %v262, %v909
      %v911 = vpop.f32.mrb[0].mxu0
      %v912 = vadd.f32 %v267, %v911
      %v913 = vpop.f32.mrb[0].mxu0
      %v914 = vadd.f32 %v267, %v913
      %915 = vmatprep.mubr.bf16.mxu0 0
      %916 = vmatmul.mubr.bf16.gmra.mrb[0].mxu0 %v581
      %v917 = vpop.f32.mrb[0].mxu0
      %v918 = vadd.f32 %v272, %v917
      %v919 = vpop.f32.mrb[0].mxu0
      %v920 = vadd.f32 %v272, %v919
      %v921 = vpop.f32.mrb[0].mxu0
      %v922 = vadd.f32 %v277, %v921
      %v923 = vpop.f32.mrb[0].mxu0
      %v924 = vadd.f32 %v277, %v923
      %925 = vmatprep.mubr.bf16.mxu0 0
      %926 = vmatmul.mubr.bf16.gmra.mrb[0].mxu0 %v584
      %v927 = vpop.f32.mrb[0].mxu0
      %v928 = vadd.f32 %v282, %v927
      %v929 = vpop.f32.mrb[0].mxu0
      %v930 = vadd.f32 %v282, %v929
      %v931 = vpop.f32.mrb[0].mxu0
      %v932 = vadd.f32 %v287, %v931
      %v933 = vpop.f32.mrb[0].mxu0
      %v934 = vadd.f32 %v287, %v933
      %935 = vmatprep.mubr.bf16.mxu0 0
      %936 = vmatmul.mubr.bf16.gmra.mrb[0].mxu0 %v587
      %v937 = vpop.f32.mrb[0].mxu0
      %v938 = vadd.f32 %v292, %v937
      %v939 = vpop.f32.mrb[0].mxu0
      %v940 = vadd.f32 %v292, %v939
      %v941 = vpop.f32.mrb[0].mxu0
      %v942 = vadd.f32 %v297, %v941
      %v943 = vpop.f32.mrb[0].mxu0
      %v944 = vadd.f32 %v297, %v943
      %945 = vmatprep.mubr.bf16.mxu0 0
      %946 = vmatmul.mubr.bf16.gmra.mrb[0].mxu0 %v590
      %v947 = vpop.f32.mrb[0].mxu0
      %v948 = vadd.f32 %v302, %v947
      %v949 = vpop.f32.mrb[0].mxu0
      %v950 = vadd.f32 %v302, %v949
      %v951 = vpop.f32.mrb[0].mxu0
      %v952 = vadd.f32 %v307, %v951
      %v953 = vpop.f32.mrb[0].mxu0
      %v954 = vadd.f32 %v307, %v953
      %955 = vmatprep.mubr.bf16.mxu0 0
      %956 = vmatmul.mubr.bf16.gmra.mrb[0].mxu0 %v593
      %v957 = vpop.f32.mrb[0].mxu0
      %v958 = vadd.f32 %v312, %v957
      %v959 = vpop.f32.mrb[0].mxu0
      %v960 = vadd.f32 %v312, %v959
      %v961 = vpop.f32.mrb[0].mxu0
      %v962 = vadd.f32 %v317, %v961
      %v963 = vpop.f32.mrb[0].mxu0
      %v964 = vadd.f32 %v317, %v963
      %965 = vmatprep.mubr.bf16.mxu0 0
      %966 = vmatmul.mubr.bf16.gmra.mrb[0].mxu0 %v596
      %v967 = vpop.f32.mrb[0].mxu0
      %v968 = vadd.f32 %v322, %v967
      %v969 = vpop.f32.mrb[0].mxu0
      %v970 = vadd.f32 %v322, %v969
      %v971 = vpop.f32.mrb[0].mxu0
      %v972 = vadd.f32 %v327, %v971
      %v973 = vpop.f32.mrb[0].mxu0
      %v974 = vadd.f32 %v327, %v973
      %975 = vmatprep.mubr.bf16.mxu0 0
      %976 = vmatmul.mubr.bf16.gmra.mrb[0].mxu0 %v599
      %v977 = vpop.f32.mrb[0].mxu0
      %v978 = vadd.f32 %v332, %v977
      %v979 = vpop.f32.mrb[0].mxu0
      %v980 = vadd.f32 %v332, %v979
      %v981 = vpop.f32.mrb[0].mxu0
      %v982 = vadd.f32 %v337, %v981
      %v983 = vpop.f32.mrb[0].mxu0
      %v984 = vadd.f32 %v337, %v983
      %985 = vmatprep.mubr.bf16.mxu0 0
      %986 = vmatmul.mubr.bf16.gmra.mrb[0].mxu0 %v602
      %v987 = vpop.f32.mrb[0].mxu0
      %v988 = vadd.f32 %v342, %v987
      %v989 = vpop.f32.mrb[0].mxu0
      %v990 = vadd.f32 %v342, %v989
      %v991 = vpop.f32.mrb[0].mxu0
      %v992 = vadd.f32 %v347, %v991
      %v993 = vpop.f32.mrb[0].mxu0
      %v994 = vadd.f32 %v347, %v993
      %995 = vmatprep.mubr.bf16.mxu0 0
      %996 = vmatmul.mubr.bf16.gmra.mrb[0].mxu0 %v605
      %v997 = vpop.f32.mrb[0].mxu0
      %v998 = vadd.f32 %v352, %v997
      %v999 = vpop.f32.mrb[0].mxu0
      %v1000 = vadd.f32 %v352, %v999
      %v1001 = vpop.f32.mrb[0].mxu0
      %v1002 = vadd.f32 %v357, %v1001
      %v1003 = vpop.f32.mrb[0].mxu0
      %v1004 = vadd.f32 %v357, %v1003
      %1005 = vmatprep.mubr.bf16.mxu0 0
      %1006 = vmatmul.mubr.bf16.gmra.mrb[0].mxu0 %v608
      %v1007 = vpop.f32.mrb[0].mxu0
      %v1008 = vadd.f32 %v362, %v1007
      %v1009 = vpop.f32.mrb[0].mxu0
      %v1010 = vadd.f32 %v362, %v1009
      %v1011 = vpop.f32.mrb[0].mxu0
      %v1012 = vadd.f32 %v367, %v1011
      %v1013 = vpop.f32.mrb[0].mxu0
      %v1014 = vadd.f32 %v367, %v1013
      %1015 = vmatprep.mubr.bf16.mxu0 0
      %1016 = vmatmul.mubr.bf16.gmra.mrb[0].mxu0 %v611
      %v1017 = vpop.f32.mrb[0].mxu0
      %v1018 = vadd.f32 %v372, %v1017
      %v1019 = vpop.f32.mrb[0].mxu0
      %v1020 = vadd.f32 %v372, %v1019
      %v1021 = vpop.f32.mrb[0].mxu0
      %v1022 = vadd.f32 %v377, %v1021
      %v1023 = vpop.f32.mrb[0].mxu0
      %v1024 = vadd.f32 %v377, %v1023
      %1025 = vmatprep.mubr.bf16.mxu0 0
      %1026 = vmatmul.mubr.bf16.gmra.mrb[0].mxu0 %v614
      %v1027 = vpop.f32.mrb[0].mxu0
      %v1028 = vadd.f32 %v382, %v1027
      %v1029 = vpop.f32.mrb[0].mxu0
      %v1030 = vadd.f32 %v382, %v1029
      %v1031 = vpop.f32.mrb[0].mxu0
      %v1032 = vadd.f32 %v387, %v1031
      %v1033 = vpop.f32.mrb[0].mxu0
      %v1034 = vadd.f32 %v387, %v1033
      %1035 = vmatprep.mubr.bf16.mxu0 0
      %1036 = vmatmul.mubr.bf16.gmra.mrb[0].mxu0 %v617
      %v1037 = vpop.f32.mrb[0].mxu0
      %v1038 = vadd.f32 %v392, %v1037
      %v1039 = vpop.f32.mrb[0].mxu0
      %v1040 = vadd.f32 %v392, %v1039
      %v1041 = vpop.f32.mrb[0].mxu0
      %v1042 = vadd.f32 %v397, %v1041
      %v1043 = vpop.f32.mrb[0].mxu0
      %v1044 = vadd.f32 %v397, %v1043
      %1045 = vmatprep.mubr.bf16.mxu0 0
      %1046 = vmatmul.mubr.bf16.gmra.mrb[0].mxu0 %v620
      %v1047 = vpop.f32.mrb[0].mxu0
      %v1048 = vadd.f32 %v402, %v1047
      %v1049 = vpop.f32.mrb[0].mxu0
      %v1050 = vadd.f32 %v402, %v1049
      %v1051 = vpop.f32.mrb[0].mxu0
      %v1052 = vadd.f32 %v407, %v1051
      %v1053 = vpop.f32.mrb[0].mxu0
      %v1054 = vadd.f32 %v407, %v1053
      %1055 = vmatprep.mubr.bf16.mxu0 0
      %1056 = vmatmul.mubr.bf16.gmra.mrb[0].mxu0 %v623
      %v1057 = vpop.f32.mrb[0].mxu0
      %v1058 = vadd.f32 %v412, %v1057
      %v1059 = vpop.f32.mrb[0].mxu0
      %v1060 = vadd.f32 %v412, %v1059
      %v1061 = vpop.f32.mrb[0].mxu0
      %v1062 = vadd.f32 %v417, %v1061
      %v1063 = vpop.f32.mrb[0].mxu0
      %v1064 = vadd.f32 %v417, %v1063
      %1065 = vmatprep.mubr.bf16.mxu0 0
      %1066 = vmatmul.mubr.bf16.gmra.mrb[0].mxu0 %v626
      %v1067 = vpop.f32.mrb[0].mxu0
      %v1068 = vadd.f32 %v422, %v1067
      %v1069 = vpop.f32.mrb[0].mxu0
      %v1070 = vadd.f32 %v422, %v1069
      %v1071 = vpop.f32.mrb[0].mxu0
      %v1072 = vadd.f32 %v427, %v1071
      %v1073 = vpop.f32.mrb[0].mxu0
      %v1074 = vadd.f32 %v427, %v1073
      %1075 = vdwg.mxu0
      %1076 = vmatprep.subr.bf16.mxu0 %v560
      %1077 = vmatpush1.bf16.msra.mxu0 %v559
      %1078 = vmatprep.subr.bf16.mxu0 %v648
      %1079 = vmatpush1.bf16.msra.mxu0 %v645
      %1080 = vmatprep.subr.bf16.mxu0 0
      %1081 = vmatpush1.bf16.msra.mxu0 0
      %1082 = vmatprep.subr.bf16.mxu0 0
      %1083 = vmatpush1.bf16.msra.mxu0 0
      %1084 = vmatprep.subr.bf16.mxu0 0
      %1085 = vmatpush1.bf16.msra.mxu0 0
      %1086 = vmatprep.subr.bf16.mxu0 0
      %1087 = vmatpush1.bf16.msra.mxu0 0
      %1088 = vmatprep.subr.bf16.mxu0 0
      %1089 = vmatpush1.bf16.msra.mxu0 0
      %1090 = vmatprep.subr.bf16.mxu0 0
      %1091 = vmatpush1.bf16.msra.mxu0 0
      %1092 = vmatprep.subr.bf16.mxu0 0
      %1093 = vmatpush1.bf16.msra.mxu0 0
      %1094 = vmatprep.subr.bf16.mxu0 0
      %1095 = vmatpush1.bf16.msra.mxu0 0
      %1096 = vmatprep.subr.bf16.mxu0 0
      %1097 = vmatpush1.bf16.msra.mxu0 0
      %1098 = vmatprep.subr.bf16.mxu0 0
      %1099 = vmatpush1.bf16.msra.mxu0 0
      %1100 = vmatprep.subr.bf16.mxu0 0
      %1101 = vmatpush1.bf16.msra.mxu0 0
      %1102 = vmatprep.subr.bf16.mxu0 0
      %1103 = vmatpush1.bf16.msra.mxu0 0
      %1104 = vmatprep.subr.bf16.mxu0 0
      %1105 = vmatpush1.bf16.msra.mxu0 0
      %1106 = vmatprep.subr.bf16.mxu0 0
      %1107 = vmatpush1.bf16.msra.mxu0 0
      %1108 = vmatprep.mubr.bf16.mxu0 0
      %1109 = vmatmul.mubr.bf16.gmra.mrb[0].mxu0 %v575
      %v1110 = vpop.f32.mrb[0].mxu0
      %v1111 = vadd.f32 %v252, %v1110
      %v1112 = vpop.f32.mrb[0].mxu0
      %v1113 = vadd.f32 %v252, %v1112
      %v1114 = vpop.f32.mrb[0].mxu0
      %v1115 = vadd.f32 %v257, %v1114
      %v1116 = vpop.f32.mrb[0].mxu0
      %v1117 = vadd.f32 %v257, %v1116
      %1118 = vmatprep.mubr.bf16.mxu0 0
      %1119 = vmatmul.mubr.bf16.gmra.mrb[0].mxu0 %v578
      %v1120 = vpop.f32.mrb[0].mxu0
      %v1121 = vadd.f32 %v262, %v1120
      %v1122 = vpop.f32.mrb[0].mxu0
      %v1123 = vadd.f32 %v262, %v1122
      %v1124 = vpop.f32.mrb[0].mxu0
      %v1125 = vadd.f32 %v267, %v1124
      %v1126 = vpop.f32.mrb[0].mxu0
      %v1127 = vadd.f32 %v267, %v1126
      %1128 = vmatprep.mubr.bf16.mxu0 0
      %1129 = vmatmul.mubr.bf16.gmra.mrb[0].mxu0 %v581
      %v1130 = vpop.f32.mrb[0].mxu0
      %v1131 = vadd.f32 %v272, %v1130
      %v1132 = vpop.f32.mrb[0].mxu0
      %v1133 = vadd.f32 %v272, %v1132
      %v1134 = vpop.f32.mrb[0].mxu0
      %v1135 = vadd.f32 %v277, %v1134
      %v1136 = vpop.f32.mrb[0].mxu0
      %v1137 = vadd.f32 %v277, %v1136
      %1138 = vmatprep.mubr.bf16.mxu0 0
      %1139 = vmatmul.mubr.bf16.gmra.mrb[0].mxu0 %v584
      %v1140 = vpop.f32.mrb[0].mxu0
      %v1141 = vadd.f32 %v282, %v1140
      %v1142 = vpop.f32.mrb[0].mxu0
      %v1143 = vadd.f32 %v282, %v1142
      %v1144 = vpop.f32.mrb[0].mxu0
      %v1145 = vadd.f32 %v287, %v1144
      %v1146 = vpop.f32.mrb[0].mxu0
      %v1147 = vadd.f32 %v287, %v1146
      %1148 = vmatprep.mubr.bf16.mxu0 0
      %1149 = vmatmul.mubr.bf16.gmra.mrb[0].mxu0 %v587
      %v1150 = vpop.f32.mrb[0].mxu0
      %v1151 = vadd.f32 %v292, %v1150
      %v1152 = vpop.f32.mrb[0].mxu0
      %v1153 = vadd.f32 %v292, %v1152
      %v1154 = vpop.f32.mrb[0].mxu0
      %v1155 = vadd.f32 %v297, %v1154
      %v1156 = vpop.f32.mrb[0].mxu0
      %v1157 = vadd.f32 %v297, %v1156
      %1158 = vmatprep.mubr.bf16.mxu0 0
      %1159 = vmatmul.mubr.bf16.gmra.mrb[0].mxu0 %v590
      %v1160 = vpop.f32.mrb[0].mxu0
      %v1161 = vadd.f32 %v302, %v1160
      %v1162 = vpop.f32.mrb[0].mxu0
      %v1163 = vadd.f32 %v302, %v1162
      %v1164 = vpop.f32.mrb[0].mxu0
      %v1165 = vadd.f32 %v307, %v1164
      %v1166 = vpop.f32.mrb[0].mxu0
      %v1167 = vadd.f32 %v307, %v1166
      %1168 = vmatprep.mubr.bf16.mxu0 0
      %1169 = vmatmul.mubr.bf16.gmra.mrb[0].mxu0 %v593
      %v1170 = vpop.f32.mrb[0].mxu0
      %v1171 = vadd.f32 %v312, %v1170
      %v1172 = vpop.f32.mrb[0].mxu0
      %v1173 = vadd.f32 %v312, %v1172
      %v1174 = vpop.f32.mrb[0].mxu0
      %v1175 = vadd.f32 %v317, %v1174
      %v1176 = vpop.f32.mrb[0].mxu0
      %v1177 = vadd.f32 %v317, %v1176
      %1178 = vmatprep.mubr.bf16.mxu0 0
      %1179 = vmatmul.mubr.bf16.gmra.mrb[0].mxu0 %v596
      %v1180 = vpop.f32.mrb[0].mxu0
      %v1181 = vadd.f32 %v322, %v1180
      %v1182 = vpop.f32.mrb[0].mxu0
      %v1183 = vadd.f32 %v322, %v1182
      %v1184 = vpop.f32.mrb[0].mxu0
      %v1185 = vadd.f32 %v327, %v1184
      %v1186 = vpop.f32.mrb[0].mxu0
      %v1187 = vadd.f32 %v327, %v1186
      %1188 = vmatprep.mubr.bf16.mxu0 0
      %1189 = vmatmul.mubr.bf16.gmra.mrb[0].mxu0 %v599
      %v1190 = vpop.f32.mrb[0].mxu0
      %v1191 = vadd.f32 %v332, %v1190
      %v1192 = vpop.f32.mrb[0].mxu0
      %v1193 = vadd.f32 %v332, %v1192
      %v1194 = vpop.f32.mrb[0].mxu0
      %v1195 = vadd.f32 %v337, %v1194
      %v1196 = vpop.f32.mrb[0].mxu0
      %v1197 = vadd.f32 %v337, %v1196
      %1198 = vmatprep.mubr.bf16.mxu0 0
      %1199 = vmatmul.mubr.bf16.gmra.mrb[0].mxu0 %v602
      %v1200 = vpop.f32.mrb[0].mxu0
      %v1201 = vadd.f32 %v342, %v1200
      %v1202 = vpop.f32.mrb[0].mxu0
      %v1203 = vadd.f32 %v342, %v1202
      %v1204 = vpop.f32.mrb[0].mxu0
      %v1205 = vadd.f32 %v347, %v1204
      %v1206 = vpop.f32.mrb[0].mxu0
      %v1207 = vadd.f32 %v347, %v1206
      %1208 = vmatprep.mubr.bf16.mxu0 0
      %1209 = vmatmul.mubr.bf16.gmra.mrb[0].mxu0 %v605
      %v1210 = vpop.f32.mrb[0].mxu0
      %v1211 = vadd.f32 %v352, %v1210
      %v1212 = vpop.f32.mrb[0].mxu0
      %v1213 = vadd.f32 %v352, %v1212
      %v1214 = vpop.f32.mrb[0].mxu0
      %v1215 = vadd.f32 %v357, %v1214
      %v1216 = vpop.f32.mrb[0].mxu0
      %v1217 = vadd.f32 %v357, %v1216
      %1218 = vmatprep.mubr.bf16.mxu0 0
      %1219 = vmatmul.mubr.bf16.gmra.mrb[0].mxu0 %v608
      %v1220 = vpop.f32.mrb[0].mxu0
      %v1221 = vadd.f32 %v362, %v1220
      %v1222 = vpop.f32.mrb[0].mxu0
      %v1223 = vadd.f32 %v362, %v1222
      %v1224 = vpop.f32.mrb[0].mxu0
      %v1225 = vadd.f32 %v367, %v1224
      %v1226 = vpop.f32.mrb[0].mxu0
      %v1227 = vadd.f32 %v367, %v1226
      %1228 = vmatprep.mubr.bf16.mxu0 0
      %1229 = vmatmul.mubr.bf16.gmra.mrb[0].mxu0 %v611
      %v1230 = vpop.f32.mrb[0].mxu0
      %v1231 = vadd.f32 %v372, %v1230
      %v1232 = vpop.f32.mrb[0].mxu0
      %v1233 = vadd.f32 %v372, %v1232
      %v1234 = vpop.f32.mrb[0].mxu0
      %v1235 = vadd.f32 %v377, %v1234
      %v1236 = vpop.f32.mrb[0].mxu0
      %v1237 = vadd.f32 %v377, %v1236
      %1238 = vmatprep.mubr.bf16.mxu0 0
      %1239 = vmatmul.mubr.bf16.gmra.mrb[0].mxu0 %v614
      %v1240 = vpop.f32.mrb[0].mxu0
      %v1241 = vadd.f32 %v382, %v1240
      %v1242 = vpop.f32.mrb[0].mxu0
      %v1243 = vadd.f32 %v382, %v1242
      %v1244 = vpop.f32.mrb[0].mxu0
      %v1245 = vadd.f32 %v387, %v1244
      %v1246 = vpop.f32.mrb[0].mxu0
      %v1247 = vadd.f32 %v387, %v1246
      %1248 = vmatprep.mubr.bf16.mxu0 0
      %1249 = vmatmul.mubr.bf16.gmra.mrb[0].mxu0 %v617
      %v1250 = vpop.f32.mrb[0].mxu0
      %v1251 = vadd.f32 %v392, %v1250
      %v1252 = vpop.f32.mrb[0].mxu0
      %v1253 = vadd.f32 %v392, %v1252
      %v1254 = vpop.f32.mrb[0].mxu0
      %v1255 = vadd.f32 %v397, %v1254
      %v1256 = vpop.f32.mrb[0].mxu0
      %v1257 = vadd.f32 %v397, %v1256
      %1258 = vmatprep.mubr.bf16.mxu0 0
      %1259 = vmatmul.mubr.bf16.gmra.mrb[0].mxu0 %v620
      %v1260 = vpop.f32.mrb[0].mxu0
      %v1261 = vadd.f32 %v402, %v1260
      %v1262 = vpop.f32.mrb[0].mxu0
      %v1263 = vadd.f32 %v402, %v1262
      %v1264 = vpop.f32.mrb[0].mxu0
      %v1265 = vadd.f32 %v407, %v1264
      %v1266 = vpop.f32.mrb[0].mxu0
      %v1267 = vadd.f32 %v407, %v1266
      %1268 = vmatprep.mubr.bf16.mxu0 0
      %1269 = vmatmul.mubr.bf16.gmra.mrb[0].mxu0 %v623
      %v1270 = vpop.f32.mrb[0].mxu0
      %v1271 = vadd.f32 %v412, %v1270
      %v1272 = vpop.f32.mrb[0].mxu0
      %v1273 = vadd.f32 %v412, %v1272
      %v1274 = vpop.f32.mrb[0].mxu0
      %v1275 = vadd.f32 %v417, %v1274
      %v1276 = vpop.f32.mrb[0].mxu0
      %v1277 = vadd.f32 %v417, %v1276
      %1278 = vmatprep.mubr.bf16.mxu0 0
      %1279 = vmatmul.mubr.bf16.gmra.mrb[0].mxu0 %v626
      %v1280 = vpop.f32.mrb[0].mxu0
      %v1281 = vadd.f32 %v422, %v1280
      %v1282 = vpop.f32.mrb[0].mxu0
      %v1283 = vadd.f32 %v422, %v1282
      %v1284 = vpop.f32.mrb[0].mxu0
      %v1285 = vadd.f32 %v427, %v1284
      %v1286 = vpop.f32.mrb[0].mxu0
      %v1287 = vadd.f32 %v427, %v1286
      %1288 = vdwg.mxu0
      %v1289 = vmax.f32 %v685, 0.0
      %v1290 = vmax.f32 %v687, 0.0
      %v1291 = vmax.f32 %v898, 0.0
      %v1292 = vmax.f32 %v900, 0.0
      %v1293 = vmax.f32 %v1111, 0.0
      %v1294 = vmax.f32 %v1113, 0.0
      %v1295 = vmax.f32 %v689, 0.0
      %v1296 = vmax.f32 %v691, 0.0
      %v1297 = vmax.f32 %v902, 0.0
      %v1298 = vmax.f32 %v904, 0.0
      %v1299 = vmax.f32 %v1115, 0.0
      %v1300 = vmax.f32 %v1117, 0.0
      %v1301 = vmax.f32 %v695, 0.0
      %v1302 = vmax.f32 %v697, 0.0
      %v1303 = vmax.f32 %v908, 0.0
      %v1304 = vmax.f32 %v910, 0.0
      %v1305 = vmax.f32 %v1121, 0.0
      %v1306 = vmax.f32 %v1123, 0.0
      %v1307 = vmax.f32 %v699, 0.0
      %v1308 = vmax.f32 %v701, 0.0
      %v1309 = vmax.f32 %v912, 0.0
      %v1310 = vmax.f32 %v914, 0.0
      %v1311 = vmax.f32 %v1125, 0.0
      %v1312 = vmax.f32 %v1127, 0.0
      %v1313 = vmax.f32 %v705, 0.0
      %v1314 = vmax.f32 %v707, 0.0
      %v1315 = vmax.f32 %v918, 0.0
      %v1316 = vmax.f32 %v920, 0.0
      %v1317 = vmax.f32 %v1131, 0.0
      %v1318 = vmax.f32 %v1133, 0.0
      %v1319 = vmax.f32 %v709, 0.0
      %v1320 = vmax.f32 %v711, 0.0
      %v1321 = vmax.f32 %v922, 0.0
      %v1322 = vmax.f32 %v924, 0.0
      %v1323 = vmax.f32 %v1135, 0.0
      %v1324 = vmax.f32 %v1137, 0.0
      %v1325 = vmax.f32 %v715, 0.0
      %v1326 = vmax.f32 %v717, 0.0
      %v1327 = vmax.f32 %v928, 0.0
      %v1328 = vmax.f32 %v930, 0.0
      %v1329 = vmax.f32 %v1141, 0.0
      %v1330 = vmax.f32 %v1143, 0.0
      %v1331 = vmax.f32 %v719, 0.0
      %v1332 = vmax.f32 %v721, 0.0
      %v1333 = vmax.f32 %v932, 0.0
      %v1334 = vmax.f32 %v934, 0.0
      %v1335 = vmax.f32 %v1145, 0.0
      %v1336 = vmax.f32 %v1147, 0.0
      %v1337 = vmax.f32 %v725, 0.0
      %v1338 = vmax.f32 %v727, 0.0
      %v1339 = vmax.f32 %v938, 0.0
      %v1340 = vmax.f32 %v940, 0.0
      %v1341 = vmax.f32 %v1151, 0.0
      %v1342 = vmax.f32 %v1153, 0.0
      %v1343 = vmax.f32 %v729, 0.0
      %v1344 = vmax.f32 %v731, 0.0
      %v1345 = vmax.f32 %v942, 0.0
      %v1346 = vmax.f32 %v944, 0.0
      %v1347 = vmax.f32 %v1155, 0.0
      %v1348 = vmax.f32 %v1157, 0.0
      %v1349 = vmax.f32 %v735, 0.0
      %v1350 = vmax.f32 %v737, 0.0
      %v1351 = vmax.f32 %v948, 0.0
      %v1352 = vmax.f32 %v950, 0.0
      %v1353 = vmax.f32 %v1161, 0.0
      %v1354 = vmax.f32 %v1163, 0.0
      %v1355 = vmax.f32 %v739, 0.0
      %v1356 = vmax.f32 %v741, 0.0
      %v1357 = vmax.f32 %v952, 0.0
      %v1358 = vmax.f32 %v954, 0.0
      %v1359 = vmax.f32 %v1165, 0.0
      %v1360 = vmax.f32 %v1167, 0.0
      %v1361 = vmax.f32 %v745, 0.0
      %v1362 = vmax.f32 %v747, 0.0
      %v1363 = vmax.f32 %v958, 0.0
      %v1364 = vmax.f32 %v960, 0.0
      %v1365 = vmax.f32 %v1171, 0.0
      %v1366 = vmax.f32 %v1173, 0.0
      %v1367 = vmax.f32 %v749, 0.0
      %v1368 = vmax.f32 %v751, 0.0
      %v1369 = vmax.f32 %v962, 0.0
      %v1370 = vmax.f32 %v964, 0.0
      %v1371 = vmax.f32 %v1175, 0.0
      %v1372 = vmax.f32 %v1177, 0.0
      %v1373 = vmax.f32 %v755, 0.0
      %v1374 = vmax.f32 %v757, 0.0
      %v1375 = vmax.f32 %v968, 0.0
      %v1376 = vmax.f32 %v970, 0.0
      %v1377 = vmax.f32 %v1181, 0.0
      %v1378 = vmax.f32 %v1183, 0.0
      %v1379 = vmax.f32 %v759, 0.0
      %v1380 = vmax.f32 %v761, 0.0
      %v1381 = vmax.f32 %v972, 0.0
      %v1382 = vmax.f32 %v974, 0.0
      %v1383 = vmax.f32 %v1185, 0.0
      %v1384 = vmax.f32 %v1187, 0.0
      %v1385 = vmax.f32 %v765, 0.0
      %v1386 = vmax.f32 %v767, 0.0
      %v1387 = vmax.f32 %v978, 0.0
      %v1388 = vmax.f32 %v980, 0.0
      %v1389 = vmax.f32 %v1191, 0.0
      %v1390 = vmax.f32 %v1193, 0.0
      %v1391 = vmax.f32 %v769, 0.0
      %v1392 = vmax.f32 %v771, 0.0
      %v1393 = vmax.f32 %v982, 0.0
      %v1394 = vmax.f32 %v984, 0.0
      %v1395 = vmax.f32 %v1195, 0.0
      %v1396 = vmax.f32 %v1197, 0.0
      %v1397 = vmax.f32 %v775, 0.0
      %v1398 = vmax.f32 %v777, 0.0
      %v1399 = vmax.f32 %v988, 0.0
      %v1400 = vmax.f32 %v990, 0.0
      %v1401 = vmax.f32 %v1201, 0.0
      %v1402 = vmax.f32 %v1203, 0.0
      %v1403 = vmax.f32 %v779, 0.0
      %v1404 = vmax.f32 %v781, 0.0
      %v1405 = vmax.f32 %v992, 0.0
      %v1406 = vmax.f32 %v994, 0.0
      %v1407 = vmax.f32 %v1205, 0.0
      %v1408 = vmax.f32 %v1207, 0.0
      %v1409 = vmax.f32 %v785, 0.0
      %v1410 = vmax.f32 %v787, 0.0
      %v1411 = vmax.f32 %v998, 0.0
      %v1412 = vmax.f32 %v1000, 0.0
      %v1413 = vmax.f32 %v1211, 0.0
      %v1414 = vmax.f32 %v1213, 0.0
      %v1415 = vmax.f32 %v789, 0.0
      %v1416 = vmax.f32 %v791, 0.0
      %v1417 = vmax.f32 %v1002, 0.0
      %v1418 = vmax.f32 %v1004, 0.0
      %v1419 = vmax.f32 %v1215, 0.0
      %v1420 = vmax.f32 %v1217, 0.0
      %v1421 = vmax.f32 %v795, 0.0
      %v1422 = vmax.f32 %v797, 0.0
      %v1423 = vmax.f32 %v1008, 0.0
      %v1424 = vmax.f32 %v1010, 0.0
      %v1425 = vmax.f32 %v1221, 0.0
      %v1426 = vmax.f32 %v1223, 0.0
      %v1427 = vmax.f32 %v799, 0.0
      %v1428 = vmax.f32 %v801, 0.0
      %v1429 = vmax.f32 %v1012, 0.0
      %v1430 = vmax.f32 %v1014, 0.0
      %v1431 = vmax.f32 %v1225, 0.0
      %v1432 = vmax.f32 %v1227, 0.0
      %v1433 = vmax.f32 %v805, 0.0
      %v1434 = vmax.f32 %v807, 0.0
      %v1435 = vmax.f32 %v1018, 0.0
      %v1436 = vmax.f32 %v1020, 0.0
      %v1437 = vmax.f32 %v1231, 0.0
      %v1438 = vmax.f32 %v1233, 0.0
      %v1439 = vmax.f32 %v809, 0.0
      %v1440 = vmax.f32 %v811, 0.0
      %v1441 = vmax.f32 %v1022, 0.0
      %v1442 = vmax.f32 %v1024, 0.0
      %v1443 = vmax.f32 %v1235, 0.0
      %v1444 = vmax.f32 %v1237, 0.0
      %v1445 = vmax.f32 %v815, 0.0
      %v1446 = vmax.f32 %v817, 0.0
      %v1447 = vmax.f32 %v1028, 0.0
      %v1448 = vmax.f32 %v1030, 0.0
      %v1449 = vmax.f32 %v1241, 0.0
      %v1450 = vmax.f32 %v1243, 0.0
      %v1451 = vmax.f32 %v819, 0.0
      %v1452 = vmax.f32 %v821, 0.0
      %v1453 = vmax.f32 %v1032, 0.0
      %v1454 = vmax.f32 %v1034, 0.0
      %v1455 = vmax.f32 %v1245, 0.0
      %v1456 = vmax.f32 %v1247, 0.0
      %v1457 = vmax.f32 %v825, 0.0
      %v1458 = vmax.f32 %v827, 0.0
      %v1459 = vmax.f32 %v1038, 0.0
      %v1460 = vmax.f32 %v1040, 0.0
      %v1461 = vmax.f32 %v1251, 0.0
      %v1462 = vmax.f32 %v1253, 0.0
      %v1463 = vmax.f32 %v829, 0.0
      %v1464 = vmax.f32 %v831, 0.0
      %v1465 = vmax.f32 %v1042, 0.0
      %v1466 = vmax.f32 %v1044, 0.0
      %v1467 = vmax.f32 %v1255, 0.0
      %v1468 = vmax.f32 %v1257, 0.0
      %v1469 = vmax.f32 %v835, 0.0
      %v1470 = vmax.f32 %v837, 0.0
      %v1471 = vmax.f32 %v1048, 0.0
      %v1472 = vmax.f32 %v1050, 0.0
      %v1473 = vmax.f32 %v1261, 0.0
      %v1474 = vmax.f32 %v1263, 0.0
      %v1475 = vmax.f32 %v839, 0.0
      %v1476 = vmax.f32 %v841, 0.0
      %v1477 = vmax.f32 %v1052, 0.0
      %v1478 = vmax.f32 %v1054, 0.0
      %v1479 = vmax.f32 %v1265, 0.0
      %v1480 = vmax.f32 %v1267, 0.0
      %v1481 = vmax.f32 %v845, 0.0
      %v1482 = vmax.f32 %v847, 0.0
      %v1483 = vmax.f32 %v1058, 0.0
      %v1484 = vmax.f32 %v1060, 0.0
      %v1485 = vmax.f32 %v1271, 0.0
      %v1486 = vmax.f32 %v1273, 0.0
      %v1487 = vmax.f32 %v849, 0.0
      %v1488 = vmax.f32 %v851, 0.0
      %v1489 = vmax.f32 %v1062, 0.0
      %v1490 = vmax.f32 %v1064, 0.0
      %v1491 = vmax.f32 %v1275, 0.0
      %v1492 = vmax.f32 %v1277, 0.0
      %v1493 = vmax.f32 %v855, 0.0
      %v1494 = vmax.f32 %v857, 0.0
      %v1495 = vmax.f32 %v1068, 0.0
      %v1496 = vmax.f32 %v1070, 0.0
      %v1497 = vmax.f32 %v1281, 0.0
      %v1498 = vmax.f32 %v1283, 0.0
      %v1499 = vmax.f32 %v859, 0.0
      %v1500 = vmax.f32 %v861, 0.0
      %v1501 = vmax.f32 %v1072, 0.0
      %v1502 = vmax.f32 %v1074, 0.0
      %v1503 = vmax.f32 %v1285, 0.0
      %v1504 = vmax.f32 %v1287, 0.0
      %v1505 = vpack.c.bf16 %v1295, %v1289
      %v1506 = vpack.c.bf16 %v1296, %v1290
      %v1507 = vpack.c.bf16 %v1297, %v1291
      %v1508 = vpack.c.bf16 %v1298, %v1292
      %v1509 = vpack.c.bf16 %v1299, %v1293
      %v1510 = vpack.c.bf16 %v1300, %v1294
      %v1511 = vpack.c.bf16 %v1307, %v1301
      %v1512 = vpack.c.bf16 %v1308, %v1302
      %v1513 = vpack.c.bf16 %v1309, %v1303
      %v1514 = vpack.c.bf16 %v1310, %v1304
      %v1515 = vpack.c.bf16 %v1311, %v1305
      %v1516 = vpack.c.bf16 %v1312, %v1306
      %v1517 = vpack.c.bf16 %v1319, %v1313
      %v1518 = vpack.c.bf16 %v1320, %v1314
      %v1519 = vpack.c.bf16 %v1321, %v1315
      %v1520 = vpack.c.bf16 %v1322, %v1316
      %v1521 = vpack.c.bf16 %v1323, %v1317
      %v1522 = vpack.c.bf16 %v1324, %v1318
      %v1523 = vpack.c.bf16 %v1331, %v1325
      %v1524 = vpack.c.bf16 %v1332, %v1326
      %v1525 = vpack.c.bf16 %v1333, %v1327
      %v1526 = vpack.c.bf16 %v1334, %v1328
      %v1527 = vpack.c.bf16 %v1335, %v1329
      %v1528 = vpack.c.bf16 %v1336, %v1330
      %v1529 = vpack.c.bf16 %v1343, %v1337
      %v1530 = vpack.c.bf16 %v1344, %v1338
      %v1531 = vpack.c.bf16 %v1345, %v1339
      %v1532 = vpack.c.bf16 %v1346, %v1340
      %v1533 = vpack.c.bf16 %v1347, %v1341
      %v1534 = vpack.c.bf16 %v1348, %v1342
      %v1535 = vpack.c.bf16 %v1355, %v1349
      %v1536 = vpack.c.bf16 %v1356, %v1350
      %v1537 = vpack.c.bf16 %v1357, %v1351
      %v1538 = vpack.c.bf16 %v1358, %v1352
      %v1539 = vpack.c.bf16 %v1359, %v1353
      %v1540 = vpack.c.bf16 %v1360, %v1354
      %v1541 = vpack.c.bf16 %v1367, %v1361
      %v1542 = vpack.c.bf16 %v1368, %v1362
      %v1543 = vpack.c.bf16 %v1369, %v1363
      %v1544 = vpack.c.bf16 %v1370, %v1364
      %v1545 = vpack.c.bf16 %v1371, %v1365
      %v1546 = vpack.c.bf16 %v1372, %v1366
      %v1547 = vpack.c.bf16 %v1379, %v1373
      %v1548 = vpack.c.bf16 %v1380, %v1374
      %v1549 = vpack.c.bf16 %v1381, %v1375
      %v1550 = vpack.c.bf16 %v1382, %v1376
      %v1551 = vpack.c.bf16 %v1383, %v1377
      %v1552 = vpack.c.bf16 %v1384, %v1378
      %v1553 = vpack.c.bf16 %v1391, %v1385
      %v1554 = vpack.c.bf16 %v1392, %v1386
      %v1555 = vpack.c.bf16 %v1393, %v1387
      %v1556 = vpack.c.bf16 %v1394, %v1388
      %v1557 = vpack.c.bf16 %v1395, %v1389
      %v1558 = vpack.c.bf16 %v1396, %v1390
      %v1559 = vpack.c.bf16 %v1403, %v1397
      %v1560 = vpack.c.bf16 %v1404, %v1398
      %v1561 = vpack.c.bf16 %v1405, %v1399
      %v1562 = vpack.c.bf16 %v1406, %v1400
      %v1563 = vpack.c.bf16 %v1407, %v1401
      %v1564 = vpack.c.bf16 %v1408, %v1402
      %v1565 = vpack.c.bf16 %v1415, %v1409
      %v1566 = vpack.c.bf16 %v1416, %v1410
      %v1567 = vpack.c.bf16 %v1417, %v1411
      %v1568 = vpack.c.bf16 %v1418, %v1412
      %v1569 = vpack.c.bf16 %v1419, %v1413
      %v1570 = vpack.c.bf16 %v1420, %v1414
      %v1571 = vpack.c.bf16 %v1427, %v1421
      %v1572 = vpack.c.bf16 %v1428, %v1422
      %v1573 = vpack.c.bf16 %v1429, %v1423
      %v1574 = vpack.c.bf16 %v1430, %v1424
      %v1575 = vpack.c.bf16 %v1431, %v1425
      %v1576 = vpack.c.bf16 %v1432, %v1426
      %v1577 = vpack.c.bf16 %v1439, %v1433
      %v1578 = vpack.c.bf16 %v1440, %v1434
      %v1579 = vpack.c.bf16 %v1441, %v1435
      %v1580 = vpack.c.bf16 %v1442, %v1436
      %v1581 = vpack.c.bf16 %v1443, %v1437
      %v1582 = vpack.c.bf16 %v1444, %v1438
      %v1583 = vpack.c.bf16 %v1451, %v1445
      %v1584 = vpack.c.bf16 %v1452, %v1446
      %v1585 = vpack.c.bf16 %v1453, %v1447
      %v1586 = vpack.c.bf16 %v1454, %v1448
      %v1587 = vpack.c.bf16 %v1455, %v1449
      %v1588 = vpack.c.bf16 %v1456, %v1450
      %v1589 = vpack.c.bf16 %v1463, %v1457
      %v1590 = vpack.c.bf16 %v1464, %v1458
      %v1591 = vpack.c.bf16 %v1465, %v1459
      %v1592 = vpack.c.bf16 %v1466, %v1460
      %v1593 = vpack.c.bf16 %v1467, %v1461
      %v1594 = vpack.c.bf16 %v1468, %v1462
      %v1595 = vpack.c.bf16 %v1475, %v1469
      %v1596 = vpack.c.bf16 %v1476, %v1470
      %v1597 = vpack.c.bf16 %v1477, %v1471
      %v1598 = vpack.c.bf16 %v1478, %v1472
      %v1599 = vpack.c.bf16 %v1479, %v1473
      %v1600 = vpack.c.bf16 %v1480, %v1474
      %v1601 = vpack.c.bf16 %v1487, %v1481
      %v1602 = vpack.c.bf16 %v1488, %v1482
      %v1603 = vpack.c.bf16 %v1489, %v1483
      %v1604 = vpack.c.bf16 %v1490, %v1484
      %v1605 = vpack.c.bf16 %v1491, %v1485
      %v1606 = vpack.c.bf16 %v1492, %v1486
      %v1607 = vpack.c.bf16 %v1499, %v1493
      %v1608 = vpack.c.bf16 %v1500, %v1494
      %v1609 = vpack.c.bf16 %v1501, %v1495
      %v1610 = vpack.c.bf16 %v1502, %v1496
      %v1611 = vpack.c.bf16 %v1503, %v1497
      %v1612 = vpack.c.bf16 %v1504, %v1498
      %v1629 = vunpack.c.l.b16 %v124
      %v1630 = vunpack.c.h.b16 %v124
      %v1631 = vunpack.c.l.b16 %v125
      %v1632 = vunpack.c.l.b16 %v126
      %v1633 = vunpack.c.h.b16 %v126
      %v1634 = vunpack.c.l.b16 %v127
      %v1635 = vunpack.c.l.b16 %v128
      %v1636 = vunpack.c.h.b16 %v128
      %v1637 = vunpack.c.l.b16 %v129
      %v1638 = vunpack.c.l.b16 %v130
      %v1639 = vunpack.c.h.b16 %v130
      %v1640 = vunpack.c.l.b16 %v131
      %v1641 = vunpack.c.l.b16 %v132
      %v1642 = vunpack.c.h.b16 %v132
      %v1643 = vunpack.c.l.b16 %v133
      %v1644 = vunpack.c.l.b16 %v134
      %v1645 = vunpack.c.h.b16 %v134
      %v1646 = vunpack.c.l.b16 %v135
      %v1647 = vunpack.c.l.b16 %v136
      %v1648 = vunpack.c.h.b16 %v136
      %v1649 = vunpack.c.l.b16 %v137
      %v1650 = vunpack.c.l.b16 %v138
      %v1651 = vunpack.c.h.b16 %v138
      %v1652 = vunpack.c.l.b16 %v139
      %v1653 = vpack.c.b16 %v1632, %v1629
      %v1654 = vpack.c.b16 %v1633, %v1630
      %v1655 = vpack.c.b16 %v1634, %v1631
      %v1656 = vpack.c.b16 %v1638, %v1635
      %v1657 = vpack.c.b16 %v1639, %v1636
      %v1658 = vpack.c.b16 %v1640, %v1637
      %v1659 = vpack.c.b16 %v1644, %v1641
      %v1660 = vpack.c.b16 %v1645, %v1642
      %v1661 = vpack.c.b16 %v1646, %v1643
      %v1662 = vpack.c.b16 %v1650, %v1647
      %v1663 = vpack.c.b16 %v1651, %v1648
      %v1664 = vpack.c.b16 %v1652, %v1649
      %vm1673 = vcmask 261120
      %v1675 = vsel %vm1673, %v1655, 0
      %v1678 = vsel %vm1673, %v1658, 0
      %v1681 = vsel %vm1673, %v1661, 0
      %v1684 = vsel %vm1673, %v1664, 0
      %1686 = vmatprep.subr.bf16.mxu0 %v1506
      %1687 = vmatpush1.bf16.msra.mxu0 %v1505
      %1688 = vmatprep.subr.bf16.mxu0 %v1512
      %1689 = vmatpush1.bf16.msra.mxu0 %v1511
      %1690 = vmatprep.subr.bf16.mxu0 %v1518
      %1691 = vmatpush1.bf16.msra.mxu0 %v1517
      %1692 = vmatprep.subr.bf16.mxu0 %v1524
      %1693 = vmatpush1.bf16.msra.mxu0 %v1523
      %1694 = vmatprep.subr.bf16.mxu0 %v1530
      %1695 = vmatpush1.bf16.msra.mxu0 %v1529
      %1696 = vmatprep.subr.bf16.mxu0 %v1536
      %1697 = vmatpush1.bf16.msra.mxu0 %v1535
      %1698 = vmatprep.subr.bf16.mxu0 %v1542
      %1699 = vmatpush1.bf16.msra.mxu0 %v1541
      %1700 = vmatprep.subr.bf16.mxu0 %v1548
      %1701 = vmatpush1.bf16.msra.mxu0 %v1547
      %1702 = vmatprep.subr.bf16.mxu0 %v1554
      %1703 = vmatpush1.bf16.msra.mxu0 %v1553
      %1704 = vmatprep.subr.bf16.mxu0 %v1560
      %1705 = vmatpush1.bf16.msra.mxu0 %v1559
      %1706 = vmatprep.subr.bf16.mxu0 %v1566
      %1707 = vmatpush1.bf16.msra.mxu0 %v1565
      %1708 = vmatprep.subr.bf16.mxu0 %v1572
      %1709 = vmatpush1.bf16.msra.mxu0 %v1571
      %1710 = vmatprep.subr.bf16.mxu0 %v1578
      %1711 = vmatpush1.bf16.msra.mxu0 %v1577
      %1712 = vmatprep.subr.bf16.mxu0 %v1584
      %1713 = vmatpush1.bf16.msra.mxu0 %v1583
      %1714 = vmatprep.subr.bf16.mxu0 %v1590
      %1715 = vmatpush1.bf16.msra.mxu0 %v1589
      %1716 = vmatprep.subr.bf16.mxu0 %v1596
      %1717 = vmatpush1.bf16.msra.mxu0 %v1595
      %1718 = vmatprep.mubr.bf16.mxu0 %v1654
      %1719 = vmatmul.mubr.bf16.gmra.mrb[0].mxu0 %v1653
      %v1720 = vpop.f32.mrb[0].mxu0
      %v1721 = vadd.f32 0.0, %v1720
      %v1722 = vpop.f32.mrb[0].mxu0
      %v1723 = vadd.f32 0.0, %v1722
      %v1724 = vpop.f32.mrb[0].mxu0
      %v1725 = vadd.f32 0.0, %v1724
      %v1726 = vpop.f32.mrb[0].mxu0
      %v1727 = vadd.f32 0.0, %v1726
      %1728 = vmatprep.mubr.bf16.mxu0 %v1657
      %1729 = vmatmul.mubr.bf16.gmra.mrb[0].mxu0 %v1656
      %v1730 = vpop.f32.mrb[0].mxu0
      %v1731 = vadd.f32 0.0, %v1730
      %v1732 = vpop.f32.mrb[0].mxu0
      %v1733 = vadd.f32 0.0, %v1732
      %v1734 = vpop.f32.mrb[0].mxu0
      %v1735 = vadd.f32 0.0, %v1734
      %v1736 = vpop.f32.mrb[0].mxu0
      %v1737 = vadd.f32 0.0, %v1736
      %1738 = vmatprep.mubr.bf16.mxu0 %v1660
      %1739 = vmatmul.mubr.bf16.gmra.mrb[0].mxu0 %v1659
      %v1740 = vpop.f32.mrb[0].mxu0
      %v1741 = vadd.f32 0.0, %v1740
      %v1742 = vpop.f32.mrb[0].mxu0
      %v1743 = vadd.f32 0.0, %v1742
      %v1744 = vpop.f32.mrb[0].mxu0
      %v1745 = vadd.f32 0.0, %v1744
      %v1746 = vpop.f32.mrb[0].mxu0
      %v1747 = vadd.f32 0.0, %v1746
      %1748 = vmatprep.mubr.bf16.mxu0 %v1663
      %1749 = vmatmul.mubr.bf16.gmra.mrb[0].mxu0 %v1662
      %v1750 = vpop.f32.mrb[0].mxu0
      %v1751 = vadd.f32 0.0, %v1750
      %v1752 = vpop.f32.mrb[0].mxu0
      %v1753 = vadd.f32 0.0, %v1752
      %v1754 = vpop.f32.mrb[0].mxu0
      %v1755 = vadd.f32 0.0, %v1754
      %v1756 = vpop.f32.mrb[0].mxu0
      %v1757 = vadd.f32 0.0, %v1756
      %1758 = vdwg.mxu0
      %1759 = vmatprep.subr.bf16.mxu0 %v1602
      %1760 = vmatpush1.bf16.msra.mxu0 %v1601
      %1761 = vmatprep.subr.bf16.mxu0 %v1608
      %1762 = vmatpush1.bf16.msra.mxu0 %v1607
      %1763 = vmatprep.subr.bf16.mxu0 0
      %1764 = vmatpush1.bf16.msra.mxu0 0
      %1765 = vmatprep.subr.bf16.mxu0 0
      %1766 = vmatpush1.bf16.msra.mxu0 0
      %1767 = vmatprep.subr.bf16.mxu0 0
      %1768 = vmatpush1.bf16.msra.mxu0 0
      %1769 = vmatprep.subr.bf16.mxu0 0
      %1770 = vmatpush1.bf16.msra.mxu0 0
      %1771 = vmatprep.subr.bf16.mxu0 0
      %1772 = vmatpush1.bf16.msra.mxu0 0
      %1773 = vmatprep.subr.bf16.mxu0 0
      %1774 = vmatpush1.bf16.msra.mxu0 0
      %1775 = vmatprep.subr.bf16.mxu0 0
      %1776 = vmatpush1.bf16.msra.mxu0 0
      %1777 = vmatprep.subr.bf16.mxu0 0
      %1778 = vmatpush1.bf16.msra.mxu0 0
      %1779 = vmatprep.subr.bf16.mxu0 0
      %1780 = vmatpush1.bf16.msra.mxu0 0
      %1781 = vmatprep.subr.bf16.mxu0 0
      %1782 = vmatpush1.bf16.msra.mxu0 0
      %1783 = vmatprep.subr.bf16.mxu0 0
      %1784 = vmatpush1.bf16.msra.mxu0 0
      %1785 = vmatprep.subr.bf16.mxu0 0
      %1786 = vmatpush1.bf16.msra.mxu0 0
      %1787 = vmatprep.subr.bf16.mxu0 0
      %1788 = vmatpush1.bf16.msra.mxu0 0
      %1789 = vmatprep.subr.bf16.mxu0 0
      %1790 = vmatpush1.bf16.msra.mxu0 0
      %1791 = vmatprep.mubr.bf16.mxu0 0
      %1792 = vmatmul.mubr.bf16.gmra.mrb[0].mxu0 %v1675
      %v1793 = vpop.f32.mrb[0].mxu0
      %v1794 = vadd.f32 %v1721, %v1793
      %v1795 = vpop.f32.mrb[0].mxu0
      %v1796 = vadd.f32 %v1723, %v1795
      %v1797 = vpop.f32.mrb[0].mxu0
      %v1798 = vadd.f32 %v1725, %v1797
      %v1799 = vpop.f32.mrb[0].mxu0
      %v1800 = vadd.f32 %v1727, %v1799
      %1801 = vmatprep.mubr.bf16.mxu0 0
      %1802 = vmatmul.mubr.bf16.gmra.mrb[0].mxu0 %v1678
      %v1803 = vpop.f32.mrb[0].mxu0
      %v1804 = vadd.f32 %v1731, %v1803
      %v1805 = vpop.f32.mrb[0].mxu0
      %v1806 = vadd.f32 %v1733, %v1805
      %v1807 = vpop.f32.mrb[0].mxu0
      %v1808 = vadd.f32 %v1735, %v1807
      %v1809 = vpop.f32.mrb[0].mxu0
      %v1810 = vadd.f32 %v1737, %v1809
      %1811 = vmatprep.mubr.bf16.mxu0 0
      %1812 = vmatmul.mubr.bf16.gmra.mrb[0].mxu0 %v1681
      %v1813 = vpop.f32.mrb[0].mxu0
      %v1814 = vadd.f32 %v1741, %v1813
      %v1815 = vpop.f32.mrb[0].mxu0
      %v1816 = vadd.f32 %v1743, %v1815
      %v1817 = vpop.f32.mrb[0].mxu0
      %v1818 = vadd.f32 %v1745, %v1817
      %v1819 = vpop.f32.mrb[0].mxu0
      %v1820 = vadd.f32 %v1747, %v1819
      %1821 = vmatprep.mubr.bf16.mxu0 0
      %1822 = vmatmul.mubr.bf16.gmra.mrb[0].mxu0 %v1684
      %v1823 = vpop.f32.mrb[0].mxu0
      %v1824 = vadd.f32 %v1751, %v1823
      %v1825 = vpop.f32.mrb[0].mxu0
      %v1826 = vadd.f32 %v1753, %v1825
      %v1827 = vpop.f32.mrb[0].mxu0
      %v1828 = vadd.f32 %v1755, %v1827
      %v1829 = vpop.f32.mrb[0].mxu0
      %v1830 = vadd.f32 %v1757, %v1829
      %1831 = vdwg.mxu0
      %1832 = vmatprep.subr.bf16.mxu0 %v1508
      %1833 = vmatpush1.bf16.msra.mxu0 %v1507
      %1834 = vmatprep.subr.bf16.mxu0 %v1514
      %1835 = vmatpush1.bf16.msra.mxu0 %v1513
      %1836 = vmatprep.subr.bf16.mxu0 %v1520
      %1837 = vmatpush1.bf16.msra.mxu0 %v1519
      %1838 = vmatprep.subr.bf16.mxu0 %v1526
      %1839 = vmatpush1.bf16.msra.mxu0 %v1525
      %1840 = vmatprep.subr.bf16.mxu0 %v1532
      %1841 = vmatpush1.bf16.msra.mxu0 %v1531
      %1842 = vmatprep.subr.bf16.mxu0 %v1538
      %1843 = vmatpush1.bf16.msra.mxu0 %v1537
      %1844 = vmatprep.subr.bf16.mxu0 %v1544
      %1845 = vmatpush1.bf16.msra.mxu0 %v1543
      %1846 = vmatprep.subr.bf16.mxu0 %v1550
      %1847 = vmatpush1.bf16.msra.mxu0 %v1549
      %1848 = vmatprep.subr.bf16.mxu0 %v1556
      %1849 = vmatpush1.bf16.msra.mxu0 %v1555
      %1850 = vmatprep.subr.bf16.mxu0 %v1562
      %1851 = vmatpush1.bf16.msra.mxu0 %v1561
      %1852 = vmatprep.subr.bf16.mxu0 %v1568
      %1853 = vmatpush1.bf16.msra.mxu0 %v1567
      %1854 = vmatprep.subr.bf16.mxu0 %v1574
      %1855 = vmatpush1.bf16.msra.mxu0 %v1573
      %1856 = vmatprep.subr.bf16.mxu0 %v1580
      %1857 = vmatpush1.bf16.msra.mxu0 %v1579
      %1858 = vmatprep.subr.bf16.mxu0 %v1586
      %1859 = vmatpush1.bf16.msra.mxu0 %v1585
      %1860 = vmatprep.subr.bf16.mxu0 %v1592
      %1861 = vmatpush1.bf16.msra.mxu0 %v1591
      %1862 = vmatprep.subr.bf16.mxu0 %v1598
      %1863 = vmatpush1.bf16.msra.mxu0 %v1597
      %1864 = vmatprep.mubr.bf16.mxu0 %v1654
      %1865 = vmatmul.mubr.bf16.gmra.mrb[0].mxu0 %v1653
      %v1866 = vpop.f32.mrb[0].mxu0
      %v1867 = vadd.f32 0.0, %v1866
      %v1868 = vpop.f32.mrb[0].mxu0
      %v1869 = vadd.f32 0.0, %v1868
      %v1870 = vpop.f32.mrb[0].mxu0
      %v1871 = vadd.f32 0.0, %v1870
      %v1872 = vpop.f32.mrb[0].mxu0
      %v1873 = vadd.f32 0.0, %v1872
      %1874 = vmatprep.mubr.bf16.mxu0 %v1657
      %1875 = vmatmul.mubr.bf16.gmra.mrb[0].mxu0 %v1656
      %v1876 = vpop.f32.mrb[0].mxu0
      %v1877 = vadd.f32 0.0, %v1876
      %v1878 = vpop.f32.mrb[0].mxu0
      %v1879 = vadd.f32 0.0, %v1878
      %v1880 = vpop.f32.mrb[0].mxu0
      %v1881 = vadd.f32 0.0, %v1880
      %v1882 = vpop.f32.mrb[0].mxu0
      %v1883 = vadd.f32 0.0, %v1882
      %1884 = vmatprep.mubr.bf16.mxu0 %v1660
      %1885 = vmatmul.mubr.bf16.gmra.mrb[0].mxu0 %v1659
      %v1886 = vpop.f32.mrb[0].mxu0
      %v1887 = vadd.f32 0.0, %v1886
      %v1888 = vpop.f32.mrb[0].mxu0
      %v1889 = vadd.f32 0.0, %v1888
      %v1890 = vpop.f32.mrb[0].mxu0
      %v1891 = vadd.f32 0.0, %v1890
      %v1892 = vpop.f32.mrb[0].mxu0
      %v1893 = vadd.f32 0.0, %v1892
      %1894 = vmatprep.mubr.bf16.mxu0 %v1663
      %1895 = vmatmul.mubr.bf16.gmra.mrb[0].mxu0 %v1662
      %v1896 = vpop.f32.mrb[0].mxu0
      %v1897 = vadd.f32 0.0, %v1896
      %v1898 = vpop.f32.mrb[0].mxu0
      %v1899 = vadd.f32 0.0, %v1898
      %v1900 = vpop.f32.mrb[0].mxu0
      %v1901 = vadd.f32 0.0, %v1900
      %v1902 = vpop.f32.mrb[0].mxu0
      %v1903 = vadd.f32 0.0, %v1902
      %1904 = vdwg.mxu0
      %1905 = vmatprep.subr.bf16.mxu0 %v1604
      %1906 = vmatpush1.bf16.msra.mxu0 %v1603
      %1907 = vmatprep.subr.bf16.mxu0 %v1610
      %1908 = vmatpush1.bf16.msra.mxu0 %v1609
      %1909 = vmatprep.subr.bf16.mxu0 0
      %1910 = vmatpush1.bf16.msra.mxu0 0
      %1911 = vmatprep.subr.bf16.mxu0 0
      %1912 = vmatpush1.bf16.msra.mxu0 0
      %1913 = vmatprep.subr.bf16.mxu0 0
      %1914 = vmatpush1.bf16.msra.mxu0 0
      %1915 = vmatprep.subr.bf16.mxu0 0
      %1916 = vmatpush1.bf16.msra.mxu0 0
      %1917 = vmatprep.subr.bf16.mxu0 0
      %1918 = vmatpush1.bf16.msra.mxu0 0
      %1919 = vmatprep.subr.bf16.mxu0 0
      %1920 = vmatpush1.bf16.msra.mxu0 0
      %1921 = vmatprep.subr.bf16.mxu0 0
      %1922 = vmatpush1.bf16.msra.mxu0 0
      %1923 = vmatprep.subr.bf16.mxu0 0
      %1924 = vmatpush1.bf16.msra.mxu0 0
      %1925 = vmatprep.subr.bf16.mxu0 0
      %1926 = vmatpush1.bf16.msra.mxu0 0
      %1927 = vmatprep.subr.bf16.mxu0 0
      %1928 = vmatpush1.bf16.msra.mxu0 0
      %1929 = vmatprep.subr.bf16.mxu0 0
      %1930 = vmatpush1.bf16.msra.mxu0 0
      %1931 = vmatprep.subr.bf16.mxu0 0
      %1932 = vmatpush1.bf16.msra.mxu0 0
      %1933 = vmatprep.subr.bf16.mxu0 0
      %1934 = vmatpush1.bf16.msra.mxu0 0
      %1935 = vmatprep.subr.bf16.mxu0 0
      %1936 = vmatpush1.bf16.msra.mxu0 0
      %1937 = vmatprep.mubr.bf16.mxu0 0
      %1938 = vmatmul.mubr.bf16.gmra.mrb[0].mxu0 %v1675
      %v1939 = vpop.f32.mrb[0].mxu0
      %v1940 = vadd.f32 %v1867, %v1939
      %v1941 = vpop.f32.mrb[0].mxu0
      %v1942 = vadd.f32 %v1869, %v1941
      %v1943 = vpop.f32.mrb[0].mxu0
      %v1944 = vadd.f32 %v1871, %v1943
      %v1945 = vpop.f32.mrb[0].mxu0
      %v1946 = vadd.f32 %v1873, %v1945
      %1947 = vmatprep.mubr.bf16.mxu0 0
      %1948 = vmatmul.mubr.bf16.gmra.mrb[0].mxu0 %v1678
      %v1949 = vpop.f32.mrb[0].mxu0
      %v1950 = vadd.f32 %v1877, %v1949
      %v1951 = vpop.f32.mrb[0].mxu0
      %v1952 = vadd.f32 %v1879, %v1951
      %v1953 = vpop.f32.mrb[0].mxu0
      %v1954 = vadd.f32 %v1881, %v1953
      %v1955 = vpop.f32.mrb[0].mxu0
      %v1956 = vadd.f32 %v1883, %v1955
      %1957 = vmatprep.mubr.bf16.mxu0 0
      %1958 = vmatmul.mubr.bf16.gmra.mrb[0].mxu0 %v1681
      %v1959 = vpop.f32.mrb[0].mxu0
      %v1960 = vadd.f32 %v1887, %v1959
      %v1961 = vpop.f32.mrb[0].mxu0
      %v1962 = vadd.f32 %v1889, %v1961
      %v1963 = vpop.f32.mrb[0].mxu0
      %v1964 = vadd.f32 %v1891, %v1963
      %v1965 = vpop.f32.mrb[0].mxu0
      %v1966 = vadd.f32 %v1893, %v1965
      %1967 = vmatprep.mubr.bf16.mxu0 0
      %1968 = vmatmul.mubr.bf16.gmra.mrb[0].mxu0 %v1684
      %v1969 = vpop.f32.mrb[0].mxu0
      %v1970 = vadd.f32 %v1897, %v1969
      %v1971 = vpop.f32.mrb[0].mxu0
      %v1972 = vadd.f32 %v1899, %v1971
      %v1973 = vpop.f32.mrb[0].mxu0
      %v1974 = vadd.f32 %v1901, %v1973
      %v1975 = vpop.f32.mrb[0].mxu0
      %v1976 = vadd.f32 %v1903, %v1975
      %1977 = vdwg.mxu0
      %1978 = vmatprep.subr.bf16.mxu0 %v1510
      %1979 = vmatpush1.bf16.msra.mxu0 %v1509
      %1980 = vmatprep.subr.bf16.mxu0 %v1516
      %1981 = vmatpush1.bf16.msra.mxu0 %v1515
      %1982 = vmatprep.subr.bf16.mxu0 %v1522
      %1983 = vmatpush1.bf16.msra.mxu0 %v1521
      %1984 = vmatprep.subr.bf16.mxu0 %v1528
      %1985 = vmatpush1.bf16.msra.mxu0 %v1527
      %1986 = vmatprep.subr.bf16.mxu0 %v1534
      %1987 = vmatpush1.bf16.msra.mxu0 %v1533
      %1988 = vmatprep.subr.bf16.mxu0 %v1540
      %1989 = vmatpush1.bf16.msra.mxu0 %v1539
      %1990 = vmatprep.subr.bf16.mxu0 %v1546
      %1991 = vmatpush1.bf16.msra.mxu0 %v1545
      %1992 = vmatprep.subr.bf16.mxu0 %v1552
      %1993 = vmatpush1.bf16.msra.mxu0 %v1551
      %1994 = vmatprep.subr.bf16.mxu0 %v1558
      %1995 = vmatpush1.bf16.msra.mxu0 %v1557
      %1996 = vmatprep.subr.bf16.mxu0 %v1564
      %1997 = vmatpush1.bf16.msra.mxu0 %v1563
      %1998 = vmatprep.subr.bf16.mxu0 %v1570
      %1999 = vmatpush1.bf16.msra.mxu0 %v1569
      %2000 = vmatprep.subr.bf16.mxu0 %v1576
      %2001 = vmatpush1.bf16.msra.mxu0 %v1575
      %2002 = vmatprep.subr.bf16.mxu0 %v1582
      %2003 = vmatpush1.bf16.msra.mxu0 %v1581
      %2004 = vmatprep.subr.bf16.mxu0 %v1588
      %2005 = vmatpush1.bf16.msra.mxu0 %v1587
      %2006 = vmatprep.subr.bf16.mxu0 %v1594
      %2007 = vmatpush1.bf16.msra.mxu0 %v1593
      %2008 = vmatprep.subr.bf16.mxu0 %v1600
      %2009 = vmatpush1.bf16.msra.mxu0 %v1599
      %2010 = vmatprep.mubr.bf16.mxu0 %v1654
      %2011 = vmatmul.mubr.bf16.gmra.mrb[0].mxu0 %v1653
      %v2012 = vpop.f32.mrb[0].mxu0
      %v2013 = vadd.f32 0.0, %v2012
      %v2014 = vpop.f32.mrb[0].mxu0
      %v2015 = vadd.f32 0.0, %v2014
      %v2016 = vpop.f32.mrb[0].mxu0
      %v2017 = vadd.f32 0.0, %v2016
      %v2018 = vpop.f32.mrb[0].mxu0
      %v2019 = vadd.f32 0.0, %v2018
      %2020 = vmatprep.mubr.bf16.mxu0 %v1657
      %2021 = vmatmul.mubr.bf16.gmra.mrb[0].mxu0 %v1656
      %v2022 = vpop.f32.mrb[0].mxu0
      %v2023 = vadd.f32 0.0, %v2022
      %v2024 = vpop.f32.mrb[0].mxu0
      %v2025 = vadd.f32 0.0, %v2024
      %v2026 = vpop.f32.mrb[0].mxu0
      %v2027 = vadd.f32 0.0, %v2026
      %v2028 = vpop.f32.mrb[0].mxu0
      %v2029 = vadd.f32 0.0, %v2028
      %2030 = vmatprep.mubr.bf16.mxu0 %v1660
      %2031 = vmatmul.mubr.bf16.gmra.mrb[0].mxu0 %v1659
      %v2032 = vpop.f32.mrb[0].mxu0
      %v2033 = vadd.f32 0.0, %v2032
      %v2034 = vpop.f32.mrb[0].mxu0
      %v2035 = vadd.f32 0.0, %v2034
      %v2036 = vpop.f32.mrb[0].mxu0
      %v2037 = vadd.f32 0.0, %v2036
      %v2038 = vpop.f32.mrb[0].mxu0
      %v2039 = vadd.f32 0.0, %v2038
      %2040 = vmatprep.mubr.bf16.mxu0 %v1663
      %2041 = vmatmul.mubr.bf16.gmra.mrb[0].mxu0 %v1662
      %v2042 = vpop.f32.mrb[0].mxu0
      %v2043 = vadd.f32 0.0, %v2042
      %v2044 = vpop.f32.mrb[0].mxu0
      %v2045 = vadd.f32 0.0, %v2044
      %v2046 = vpop.f32.mrb[0].mxu0
      %v2047 = vadd.f32 0.0, %v2046
      %v2048 = vpop.f32.mrb[0].mxu0
      %v2049 = vadd.f32 0.0, %v2048
      %2050 = vdwg.mxu0
      %2051 = vmatprep.subr.bf16.mxu0 %v1606
      %2052 = vmatpush1.bf16.msra.mxu0 %v1605
      %2053 = vmatprep.subr.bf16.mxu0 %v1612
      %2054 = vmatpush1.bf16.msra.mxu0 %v1611
      %2055 = vmatprep.subr.bf16.mxu0 0
      %2056 = vmatpush1.bf16.msra.mxu0 0
      %2057 = vmatprep.subr.bf16.mxu0 0
      %2058 = vmatpush1.bf16.msra.mxu0 0
      %2059 = vmatprep.subr.bf16.mxu0 0
      %2060 = vmatpush1.bf16.msra.mxu0 0
      %2061 = vmatprep.subr.bf16.mxu0 0
      %2062 = vmatpush1.bf16.msra.mxu0 0
      %2063 = vmatprep.subr.bf16.mxu0 0
      %2064 = vmatpush1.bf16.msra.mxu0 0
      %2065 = vmatprep.subr.bf16.mxu0 0
      %2066 = vmatpush1.bf16.msra.mxu0 0
      %2067 = vmatprep.subr.bf16.mxu0 0
      %2068 = vmatpush1.bf16.msra.mxu0 0
      %2069 = vmatprep.subr.bf16.mxu0 0
      %2070 = vmatpush1.bf16.msra.mxu0 0
      %2071 = vmatprep.subr.bf16.mxu0 0
      %2072 = vmatpush1.bf16.msra.mxu0 0
      %2073 = vmatprep.subr.bf16.mxu0 0
      %2074 = vmatpush1.bf16.msra.mxu0 0
      %2075 = vmatprep.subr.bf16.mxu0 0
      %2076 = vmatpush1.bf16.msra.mxu0 0
      %2077 = vmatprep.subr.bf16.mxu0 0
      %2078 = vmatpush1.bf16.msra.mxu0 0
      %2079 = vmatprep.subr.bf16.mxu0 0
      %2080 = vmatpush1.bf16.msra.mxu0 0
      %2081 = vmatprep.subr.bf16.mxu0 0
      %2082 = vmatpush1.bf16.msra.mxu0 0
      %2083 = vmatprep.mubr.bf16.mxu0 0
      %2084 = vmatmul.mubr.bf16.gmra.mrb[0].mxu0 %v1675
      %v2085 = vpop.f32.mrb[0].mxu0
      %v2086 = vadd.f32 %v2013, %v2085
      %v2087 = vpop.f32.mrb[0].mxu0
      %v2088 = vadd.f32 %v2015, %v2087
      %v2089 = vpop.f32.mrb[0].mxu0
      %v2090 = vadd.f32 %v2017, %v2089
      %v2091 = vpop.f32.mrb[0].mxu0
      %v2092 = vadd.f32 %v2019, %v2091
      %2093 = vmatprep.mubr.bf16.mxu0 0
      %2094 = vmatmul.mubr.bf16.gmra.mrb[0].mxu0 %v1678
      %v2095 = vpop.f32.mrb[0].mxu0
      %v2096 = vadd.f32 %v2023, %v2095
      %v2097 = vpop.f32.mrb[0].mxu0
      %v2098 = vadd.f32 %v2025, %v2097
      %v2099 = vpop.f32.mrb[0].mxu0
      %v2100 = vadd.f32 %v2027, %v2099
      %v2101 = vpop.f32.mrb[0].mxu0
      %v2102 = vadd.f32 %v2029, %v2101
      %2103 = vmatprep.mubr.bf16.mxu0 0
      %2104 = vmatmul.mubr.bf16.gmra.mrb[0].mxu0 %v1681
      %v2105 = vpop.f32.mrb[0].mxu0
      %v2106 = vadd.f32 %v2033, %v2105
      %v2107 = vpop.f32.mrb[0].mxu0
      %v2108 = vadd.f32 %v2035, %v2107
      %v2109 = vpop.f32.mrb[0].mxu0
      %v2110 = vadd.f32 %v2037, %v2109
      %v2111 = vpop.f32.mrb[0].mxu0
      %v2112 = vadd.f32 %v2039, %v2111
      %2113 = vmatprep.mubr.bf16.mxu0 0
      %2114 = vmatmul.mubr.bf16.gmra.mrb[0].mxu0 %v1684
      %v2115 = vpop.f32.mrb[0].mxu0
      %v2116 = vadd.f32 %v2043, %v2115
      %v2117 = vpop.f32.mrb[0].mxu0
      %v2118 = vadd.f32 %v2045, %v2117
      %v2119 = vpop.f32.mrb[0].mxu0
      %v2120 = vadd.f32 %v2047, %v2119
      %v2121 = vpop.f32.mrb[0].mxu0
      %v2122 = vadd.f32 %v2049, %v2121
      %2123 = vdwg.mxu0
      %2164 = vrot.lane.b32.xlu0 %v1794, 127
      %v2165 = vpop.permute.xlu0 %2164
      %2166 = vrot.lane.b32.xlu0 %v1796, 127
      %v2167 = vpop.permute.xlu0 %2166
      %2168 = vrot.lane.b32.xlu0 %v1940, 127
      %v2169 = vpop.permute.xlu0 %2168
      %2170 = vrot.lane.b32.xlu0 %v1942, 127
      %v2171 = vpop.permute.xlu0 %2170
      %2172 = vrot.lane.b32.xlu0 %v2086, 127
      %v2173 = vpop.permute.xlu0 %2172
      %2174 = vrot.lane.b32.xlu0 %v1798, 127
      %v2175 = vpop.permute.xlu0 %2174
      %2176 = vrot.lane.b32.xlu0 %v1800, 127
      %v2177 = vpop.permute.xlu0 %2176
      %2178 = vrot.lane.b32.xlu0 %v1944, 127
      %v2179 = vpop.permute.xlu0 %2178
      %2180 = vrot.lane.b32.xlu0 %v1946, 127
      %v2181 = vpop.permute.xlu0 %2180
      %2182 = vrot.lane.b32.xlu0 %v2090, 127
      %v2183 = vpop.permute.xlu0 %2182
      %2184 = vrot.lane.b32.xlu0 %v1804, 127
      %v2185 = vpop.permute.xlu0 %2184
      %2186 = vrot.lane.b32.xlu0 %v1806, 127
      %v2187 = vpop.permute.xlu0 %2186
      %2188 = vrot.lane.b32.xlu0 %v1950, 127
      %v2189 = vpop.permute.xlu0 %2188
      %2190 = vrot.lane.b32.xlu0 %v1952, 127
      %v2191 = vpop.permute.xlu0 %2190
      %2192 = vrot.lane.b32.xlu0 %v2096, 127
      %v2193 = vpop.permute.xlu0 %2192
      %2194 = vrot.lane.b32.xlu0 %v1808, 127
      %v2195 = vpop.permute.xlu0 %2194
      %2196 = vrot.lane.b32.xlu0 %v1810, 127
      %v2197 = vpop.permute.xlu0 %2196
      %2198 = vrot.lane.b32.xlu0 %v1954, 127
      %v2199 = vpop.permute.xlu0 %2198
      %2200 = vrot.lane.b32.xlu0 %v1956, 127
      %v2201 = vpop.permute.xlu0 %2200
      %2202 = vrot.lane.b32.xlu0 %v2100, 127
      %v2203 = vpop.permute.xlu0 %2202
      %2204 = vrot.lane.b32.xlu0 %v1814, 127
      %v2205 = vpop.permute.xlu0 %2204
      %2206 = vrot.lane.b32.xlu0 %v1816, 127
      %v2207 = vpop.permute.xlu0 %2206
      %2208 = vrot.lane.b32.xlu0 %v1960, 127
      %v2209 = vpop.permute.xlu0 %2208
      %2210 = vrot.lane.b32.xlu0 %v1962, 127
      %v2211 = vpop.permute.xlu0 %2210
      %2212 = vrot.lane.b32.xlu0 %v2106, 127
      %v2213 = vpop.permute.xlu0 %2212
      %2214 = vrot.lane.b32.xlu0 %v1818, 127
      %v2215 = vpop.permute.xlu0 %2214
      %2216 = vrot.lane.b32.xlu0 %v1820, 127
      %v2217 = vpop.permute.xlu0 %2216
      %2218 = vrot.lane.b32.xlu0 %v1964, 127
      %v2219 = vpop.permute.xlu0 %2218
      %2220 = vrot.lane.b32.xlu0 %v1966, 127
      %v2221 = vpop.permute.xlu0 %2220
      %2222 = vrot.lane.b32.xlu0 %v2110, 127
      %v2223 = vpop.permute.xlu0 %2222
      %2224 = vrot.lane.b32.xlu0 %v1824, 127
      %v2225 = vpop.permute.xlu0 %2224
      %2226 = vrot.lane.b32.xlu0 %v1826, 127
      %v2227 = vpop.permute.xlu0 %2226
      %2228 = vrot.lane.b32.xlu0 %v1970, 127
      %v2229 = vpop.permute.xlu0 %2228
      %2230 = vrot.lane.b32.xlu0 %v1972, 127
      %v2231 = vpop.permute.xlu0 %2230
      %2232 = vrot.lane.b32.xlu0 %v2116, 127
      %v2233 = vpop.permute.xlu0 %2232
      %2234 = vrot.lane.b32.xlu0 %v1828, 127
      %v2235 = vpop.permute.xlu0 %2234
      %2236 = vrot.lane.b32.xlu0 %v1830, 127
      %v2237 = vpop.permute.xlu0 %2236
      %2238 = vrot.lane.b32.xlu0 %v1974, 127
      %v2239 = vpop.permute.xlu0 %2238
      %2240 = vrot.lane.b32.xlu0 %v1976, 127
      %v2241 = vpop.permute.xlu0 %2240
      %2242 = vrot.lane.b32.xlu0 %v2120, 127
      %v2243 = vpop.permute.xlu0 %2242
      %vm2244 = vcmask 1039360
      %v2245 = vsel %vm2244, %v2165, %v2167
      %v2246 = vsel %vm2244, %v2167, %v2169
      %v2247 = vsel %vm2244, %v2169, %v2171
      %v2248 = vsel %vm2244, %v2171, %v2173
      %v2249 = vsel %vm2244, %v2175, %v2177
      %v2250 = vsel %vm2244, %v2177, %v2179
      %v2251 = vsel %vm2244, %v2179, %v2181
      %v2252 = vsel %vm2244, %v2181, %v2183
      %v2253 = vsel %vm2244, %v2185, %v2187
      %v2254 = vsel %vm2244, %v2187, %v2189
      %v2255 = vsel %vm2244, %v2189, %v2191
      %v2256 = vsel %vm2244, %v2191, %v2193
      %v2257 = vsel %vm2244, %v2195, %v2197
      %v2258 = vsel %vm2244, %v2197, %v2199
      %v2259 = vsel %vm2244, %v2199, %v2201
      %v2260 = vsel %vm2244, %v2201, %v2203
      %v2261 = vsel %vm2244, %v2205, %v2207
      %v2262 = vsel %vm2244, %v2207, %v2209
      %v2263 = vsel %vm2244, %v2209, %v2211
      %v2264 = vsel %vm2244, %v2211, %v2213
      %v2265 = vsel %vm2244, %v2215, %v2217
      %v2266 = vsel %vm2244, %v2217, %v2219
      %v2267 = vsel %vm2244, %v2219, %v2221
      %v2268 = vsel %vm2244, %v2221, %v2223
      %v2269 = vsel %vm2244, %v2225, %v2227
      %v2270 = vsel %vm2244, %v2227, %v2229
      %v2271 = vsel %vm2244, %v2229, %v2231
      %v2272 = vsel %vm2244, %v2231, %v2233
      %v2273 = vsel %vm2244, %v2235, %v2237
      %v2274 = vsel %vm2244, %v2237, %v2239
      %v2275 = vsel %vm2244, %v2239, %v2241
      %v2276 = vsel %vm2244, %v2241, %v2243
      %v2317 = vmax.f32 %v1794, %v2245
      %v2318 = vmax.f32 %v1796, %v2246
      %v2319 = vmax.f32 %v1940, %v2247
      %v2320 = vmax.f32 %v1942, %v2248
      %v2321 = vmax.f32 %v2086, %v2173
      %v2322 = vmax.f32 %v1798, %v2249
      %v2323 = vmax.f32 %v1800, %v2250
      %v2324 = vmax.f32 %v1944, %v2251
      %v2325 = vmax.f32 %v1946, %v2252
      %v2326 = vmax.f32 %v2090, %v2183
      %v2327 = vmax.f32 %v1804, %v2253
      %v2328 = vmax.f32 %v1806, %v2254
      %v2329 = vmax.f32 %v1950, %v2255
      %v2330 = vmax.f32 %v1952, %v2256
      %v2331 = vmax.f32 %v2096, %v2193
      %v2332 = vmax.f32 %v1808, %v2257
      %v2333 = vmax.f32 %v1810, %v2258
      %v2334 = vmax.f32 %v1954, %v2259
      %v2335 = vmax.f32 %v1956, %v2260
      %v2336 = vmax.f32 %v2100, %v2203
      %v2337 = vmax.f32 %v1814, %v2261
      %v2338 = vmax.f32 %v1816, %v2262
      %v2339 = vmax.f32 %v1960, %v2263
      %v2340 = vmax.f32 %v1962, %v2264
      %v2341 = vmax.f32 %v2106, %v2213
      %v2342 = vmax.f32 %v1818, %v2265
      %v2343 = vmax.f32 %v1820, %v2266
      %v2344 = vmax.f32 %v1964, %v2267
      %v2345 = vmax.f32 %v1966, %v2268
      %v2346 = vmax.f32 %v2110, %v2223
      %v2347 = vmax.f32 %v1824, %v2269
      %v2348 = vmax.f32 %v1826, %v2270
      %v2349 = vmax.f32 %v1970, %v2271
      %v2350 = vmax.f32 %v1972, %v2272
      %v2351 = vmax.f32 %v2116, %v2233
      %v2352 = vmax.f32 %v1828, %v2273
      %v2353 = vmax.f32 %v1830, %v2274
      %v2354 = vmax.f32 %v1974, %v2275
      %v2355 = vmax.f32 %v1976, %v2276
      %v2356 = vmax.f32 %v2120, %v2243
      %2365 = vrot.lane.b32.xlu0 %v2088, 127
      %v2366 = vpop.permute.xlu0 %2365
      %2367 = vrot.lane.b32.xlu0 %v2092, 127
      %v2368 = vpop.permute.xlu0 %2367
      %2369 = vrot.lane.b32.xlu0 %v2098, 127
      %v2370 = vpop.permute.xlu0 %2369
      %2371 = vrot.lane.b32.xlu0 %v2102, 127
      %v2372 = vpop.permute.xlu0 %2371
      %2373 = vrot.lane.b32.xlu0 %v2108, 127
      %v2374 = vpop.permute.xlu0 %2373
      %2375 = vrot.lane.b32.xlu0 %v2112, 127
      %v2376 = vpop.permute.xlu0 %2375
      %2377 = vrot.lane.b32.xlu0 %v2118, 127
      %v2378 = vpop.permute.xlu0 %2377
      %2379 = vrot.lane.b32.xlu0 %v2122, 127
      %v2380 = vpop.permute.xlu0 %2379
      %v2381 = vsel %vm2244, %v2173, %v2366
      %v2382 = vsel %vm2244, %v2183, %v2368
      %v2383 = vsel %vm2244, %v2193, %v2370
      %v2384 = vsel %vm2244, %v2203, %v2372
      %v2385 = vsel %vm2244, %v2213, %v2374
      %v2386 = vsel %vm2244, %v2223, %v2376
      %v2387 = vsel %vm2244, %v2233, %v2378
      %v2388 = vsel %vm2244, %v2243, %v2380
      %v2405 = vmax.f32 %v2086, %v2381
      %v2406 = vmax.f32 %v2088, %v2366
      %v2407 = vmax.f32 %v2090, %v2382
      %v2408 = vmax.f32 %v2092, %v2368
      %v2409 = vmax.f32 %v2096, %v2383
      %v2410 = vmax.f32 %v2098, %v2370
      %v2411 = vmax.f32 %v2100, %v2384
      %v2412 = vmax.f32 %v2102, %v2372
      %v2413 = vmax.f32 %v2106, %v2385
      %v2414 = vmax.f32 %v2108, %v2374
      %v2415 = vmax.f32 %v2110, %v2386
      %v2416 = vmax.f32 %v2112, %v2376
      %v2417 = vmax.f32 %v2116, %v2387
      %v2418 = vmax.f32 %v2118, %v2378
      %v2419 = vmax.f32 %v2120, %v2388
      %v2420 = vmax.f32 %v2122, %v2380
      %2469 = vrot.lane.b32.xlu0 %v2317, 100
      %v2470 = vpop.permute.xlu0 %2469
      %2471 = vrot.lane.b32.xlu0 %v2318, 100
      %v2472 = vpop.permute.xlu0 %2471
      %2473 = vrot.lane.b32.xlu0 %v2319, 100
      %v2474 = vpop.permute.xlu0 %2473
      %2475 = vrot.lane.b32.xlu0 %v2320, 100
      %v2476 = vpop.permute.xlu0 %2475
      %2477 = vrot.lane.b32.xlu0 %v2405, 100
      %v2478 = vpop.permute.xlu0 %2477
      %2479 = vrot.lane.b32.xlu0 %v2406, 100
      %v2480 = vpop.permute.xlu0 %2479
      %2481 = vrot.lane.b32.xlu0 %v2322, 100
      %v2482 = vpop.permute.xlu0 %2481
      %2483 = vrot.lane.b32.xlu0 %v2323, 100
      %v2484 = vpop.permute.xlu0 %2483
      %2485 = vrot.lane.b32.xlu0 %v2324, 100
      %v2486 = vpop.permute.xlu0 %2485
      %2487 = vrot.lane.b32.xlu0 %v2325, 100
      %v2488 = vpop.permute.xlu0 %2487
      %2489 = vrot.lane.b32.xlu0 %v2407, 100
      %v2490 = vpop.permute.xlu0 %2489
      %2491 = vrot.lane.b32.xlu0 %v2408, 100
      %v2492 = vpop.permute.xlu0 %2491
      %2493 = vrot.lane.b32.xlu0 %v2327, 100
      %v2494 = vpop.permute.xlu0 %2493
      %2495 = vrot.lane.b32.xlu0 %v2328, 100
      %v2496 = vpop.permute.xlu0 %2495
      %2497 = vrot.lane.b32.xlu0 %v2329, 100
      %v2498 = vpop.permute.xlu0 %2497
      %2499 = vrot.lane.b32.xlu0 %v2330, 100
      %v2500 = vpop.permute.xlu0 %2499
      %2501 = vrot.lane.b32.xlu0 %v2409, 100
      %v2502 = vpop.permute.xlu0 %2501
      %2503 = vrot.lane.b32.xlu0 %v2410, 100
      %v2504 = vpop.permute.xlu0 %2503
      %2505 = vrot.lane.b32.xlu0 %v2332, 100
      %v2506 = vpop.permute.xlu0 %2505
      %2507 = vrot.lane.b32.xlu0 %v2333, 100
      %v2508 = vpop.permute.xlu0 %2507
      %2509 = vrot.lane.b32.xlu0 %v2334, 100
      %v2510 = vpop.permute.xlu0 %2509
      %2511 = vrot.lane.b32.xlu0 %v2335, 100
      %v2512 = vpop.permute.xlu0 %2511
      %2513 = vrot.lane.b32.xlu0 %v2411, 100
      %v2514 = vpop.permute.xlu0 %2513
      %2515 = vrot.lane.b32.xlu0 %v2412, 100
      %v2516 = vpop.permute.xlu0 %2515
      %2517 = vrot.lane.b32.xlu0 %v2337, 100
      %v2518 = vpop.permute.xlu0 %2517
      %2519 = vrot.lane.b32.xlu0 %v2338, 100
      %v2520 = vpop.permute.xlu0 %2519
      %2521 = vrot.lane.b32.xlu0 %v2339, 100
      %v2522 = vpop.permute.xlu0 %2521
      %2523 = vrot.lane.b32.xlu0 %v2340, 100
      %v2524 = vpop.permute.xlu0 %2523
      %2525 = vrot.lane.b32.xlu0 %v2413, 100
      %v2526 = vpop.permute.xlu0 %2525
      %2527 = vrot.lane.b32.xlu0 %v2414, 100
      %v2528 = vpop.permute.xlu0 %2527
      %2529 = vrot.lane.b32.xlu0 %v2342, 100
      %v2530 = vpop.permute.xlu0 %2529
      %2531 = vrot.lane.b32.xlu0 %v2343, 100
      %v2532 = vpop.permute.xlu0 %2531
      %2533 = vrot.lane.b32.xlu0 %v2344, 100
      %v2534 = vpop.permute.xlu0 %2533
      %2535 = vrot.lane.b32.xlu0 %v2345, 100
      %v2536 = vpop.permute.xlu0 %2535
      %2537 = vrot.lane.b32.xlu0 %v2415, 100
      %v2538 = vpop.permute.xlu0 %2537
      %2539 = vrot.lane.b32.xlu0 %v2416, 100
      %v2540 = vpop.permute.xlu0 %2539
      %2541 = vrot.lane.b32.xlu0 %v2347, 100
      %v2542 = vpop.permute.xlu0 %2541
      %2543 = vrot.lane.b32.xlu0 %v2348, 100
      %v2544 = vpop.permute.xlu0 %2543
      %2545 = vrot.lane.b32.xlu0 %v2349, 100
      %v2546 = vpop.permute.xlu0 %2545
      %2547 = vrot.lane.b32.xlu0 %v2350, 100
      %v2548 = vpop.permute.xlu0 %2547
      %2549 = vrot.lane.b32.xlu0 %v2417, 100
      %v2550 = vpop.permute.xlu0 %2549
      %2551 = vrot.lane.b32.xlu0 %v2418, 100
      %v2552 = vpop.permute.xlu0 %2551
      %2553 = vrot.lane.b32.xlu0 %v2352, 100
      %v2554 = vpop.permute.xlu0 %2553
      %2555 = vrot.lane.b32.xlu0 %v2353, 100
      %v2556 = vpop.permute.xlu0 %2555
      %2557 = vrot.lane.b32.xlu0 %v2354, 100
      %v2558 = vpop.permute.xlu0 %2557
      %2559 = vrot.lane.b32.xlu0 %v2355, 100
      %v2560 = vpop.permute.xlu0 %2559
      %2561 = vrot.lane.b32.xlu0 %v2419, 100
      %v2562 = vpop.permute.xlu0 %2561
      %2563 = vrot.lane.b32.xlu0 %v2420, 100
      %v2564 = vpop.permute.xlu0 %2563
      %vm2565 = vcmask 818176
      %v2566 = vsel %vm2565, %v2470, %v2472
      %v2567 = vsel %vm2565, %v2472, %v2474
      %v2568 = vsel %vm2565, %v2474, %v2476
      %v2569 = vsel %vm2565, %v2476, %v2478
      %v2570 = vsel %vm2565, %v2478, %v2480
      %v2571 = vsel %vm2565, %v2482, %v2484
      %v2572 = vsel %vm2565, %v2484, %v2486
      %v2573 = vsel %vm2565, %v2486, %v2488
      %v2574 = vsel %vm2565, %v2488, %v2490
      %v2575 = vsel %vm2565, %v2490, %v2492
      %v2576 = vsel %vm2565, %v2494, %v2496
      %v2577 = vsel %vm2565, %v2496, %v2498
      %v2578 = vsel %vm2565, %v2498, %v2500
      %v2579 = vsel %vm2565, %v2500, %v2502
      %v2580 = vsel %vm2565, %v2502, %v2504
      %v2581 = vsel %vm2565, %v2506, %v2508
      %v2582 = vsel %vm2565, %v2508, %v2510
      %v2583 = vsel %vm2565, %v2510, %v2512
      %v2584 = vsel %vm2565, %v2512, %v2514
      %v2585 = vsel %vm2565, %v2514, %v2516
      %v2586 = vsel %vm2565, %v2518, %v2520
      %v2587 = vsel %vm2565, %v2520, %v2522
      %v2588 = vsel %vm2565, %v2522, %v2524
      %v2589 = vsel %vm2565, %v2524, %v2526
      %v2590 = vsel %vm2565, %v2526, %v2528
      %v2591 = vsel %vm2565, %v2530, %v2532
      %v2592 = vsel %vm2565, %v2532, %v2534
      %v2593 = vsel %vm2565, %v2534, %v2536
      %v2594 = vsel %vm2565, %v2536, %v2538
      %v2595 = vsel %vm2565, %v2538, %v2540
      %v2596 = vsel %vm2565, %v2542, %v2544
      %v2597 = vsel %vm2565, %v2544, %v2546
      %v2598 = vsel %vm2565, %v2546, %v2548
      %v2599 = vsel %vm2565, %v2548, %v2550
      %v2600 = vsel %vm2565, %v2550, %v2552
      %v2601 = vsel %vm2565, %v2554, %v2556
      %v2602 = vsel %vm2565, %v2556, %v2558
      %v2603 = vsel %vm2565, %v2558, %v2560
      %v2604 = vsel %vm2565, %v2560, %v2562
      %v2605 = vsel %vm2565, %v2562, %v2564
      %v2646 = vmax.f32 %v2317, %v2566
      %v2647 = vmax.f32 %v2318, %v2567
      %v2648 = vmax.f32 %v2319, %v2568
      %v2649 = vmax.f32 %v2320, %v2569
      %v2650 = vmax.f32 %v2321, %v2570
      %v2651 = vmax.f32 %v2322, %v2571
      %v2652 = vmax.f32 %v2323, %v2572
      %v2653 = vmax.f32 %v2324, %v2573
      %v2654 = vmax.f32 %v2325, %v2574
      %v2655 = vmax.f32 %v2326, %v2575
      %v2656 = vmax.f32 %v2327, %v2576
      %v2657 = vmax.f32 %v2328, %v2577
      %v2658 = vmax.f32 %v2329, %v2578
      %v2659 = vmax.f32 %v2330, %v2579
      %v2660 = vmax.f32 %v2331, %v2580
      %v2661 = vmax.f32 %v2332, %v2581
      %v2662 = vmax.f32 %v2333, %v2582
      %v2663 = vmax.f32 %v2334, %v2583
      %v2664 = vmax.f32 %v2335, %v2584
      %v2665 = vmax.f32 %v2336, %v2585
      %v2666 = vmax.f32 %v2337, %v2586
      %v2667 = vmax.f32 %v2338, %v2587
      %v2668 = vmax.f32 %v2339, %v2588
      %v2669 = vmax.f32 %v2340, %v2589
      %v2670 = vmax.f32 %v2341, %v2590
      %v2671 = vmax.f32 %v2342, %v2591
      %v2672 = vmax.f32 %v2343, %v2592
      %v2673 = vmax.f32 %v2344, %v2593
      %v2674 = vmax.f32 %v2345, %v2594
      %v2675 = vmax.f32 %v2346, %v2595
      %v2676 = vmax.f32 %v2347, %v2596
      %v2677 = vmax.f32 %v2348, %v2597
      %v2678 = vmax.f32 %v2349, %v2598
      %v2679 = vmax.f32 %v2350, %v2599
      %v2680 = vmax.f32 %v2351, %v2600
      %v2681 = vmax.f32 %v2352, %v2601
      %v2682 = vmax.f32 %v2353, %v2602
      %v2683 = vmax.f32 %v2354, %v2603
      %v2684 = vmax.f32 %v2355, %v2604
      %v2685 = vmax.f32 %v2356, %v2605
      %v2686 = vpack.c.bf16 %v2651, %v2646
      %v2687 = vpack.c.bf16 %v2652, %v2647
      %v2688 = vpack.c.bf16 %v2653, %v2648
      %v2689 = vpack.c.bf16 %v2654, %v2649
      %v2690 = vpack.c.bf16 %v2655, %v2650
      %v2691 = vpack.c.bf16 %v2661, %v2656
      %v2692 = vpack.c.bf16 %v2662, %v2657
      %v2693 = vpack.c.bf16 %v2663, %v2658
      %v2694 = vpack.c.bf16 %v2664, %v2659
      %v2695 = vpack.c.bf16 %v2665, %v2660
      %v2696 = vpack.c.bf16 %v2671, %v2666
      %v2697 = vpack.c.bf16 %v2672, %v2667
      %v2698 = vpack.c.bf16 %v2673, %v2668
      %v2699 = vpack.c.bf16 %v2674, %v2669
      %v2700 = vpack.c.bf16 %v2675, %v2670
      %v2701 = vpack.c.bf16 %v2681, %v2676
      %v2702 = vpack.c.bf16 %v2682, %v2677
      %v2703 = vpack.c.bf16 %v2683, %v2678
      %v2704 = vpack.c.bf16 %v2684, %v2679
      %v2705 = vpack.c.bf16 %v2685, %v2680
      %2707 = vset.pattern.permute.xlu0 0
      %2708 = vperm.xlu0 %2707, %v140
      %v2709 = vpop.permute.xlu0 %2708
      %2712 = vset.pattern.permute.xlu0 0
      %2713 = vperm.xlu0 %2712, %v141
      %v2714 = vpop.permute.xlu0 %2713
      %2717 = vset.pattern.permute.xlu0 0
      %2718 = vperm.xlu0 %2717, %v142
      %v2719 = vpop.permute.xlu0 %2718
      %2722 = vset.pattern.permute.xlu0 0
      %2723 = vperm.xlu0 %2722, %v143
      %v2724 = vpop.permute.xlu0 %2723
      %2727 = vset.pattern.permute.xlu0 0
      %2728 = vperm.xlu0 %2727, %v144
      %v2729 = vpop.permute.xlu0 %2728
      %2732 = vset.pattern.permute.xlu0 0
      %2733 = vperm.xlu0 %2732, %v145
      %v2734 = vpop.permute.xlu0 %2733
      %2737 = vset.pattern.permute.xlu0 0
      %2738 = vperm.xlu0 %2737, %v146
      %v2739 = vpop.permute.xlu0 %2738
      %2742 = vset.pattern.permute.xlu0 0
      %2743 = vperm.xlu0 %2742, %v147
      %v2744 = vpop.permute.xlu0 %2743
      %v2826 = vunpack.c.l.b16 %v148
      %v2827 = vunpack.c.h.b16 %v148
      %v2828 = vunpack.c.l.b16 %v149
      %v2829 = vunpack.c.h.b16 %v149
      %v2830 = vunpack.c.l.b16 %v150
      %v2831 = vunpack.c.h.b16 %v150
      %v2832 = vunpack.c.l.b16 %v151
      %v2833 = vunpack.c.h.b16 %v151
      %v2834 = vunpack.c.l.b16 %v152
      %v2835 = vunpack.c.h.b16 %v152
      %v2836 = vunpack.c.l.b16 %v153
      %v2837 = vunpack.c.h.b16 %v153
      %v2838 = vunpack.c.l.b16 %v154
      %v2839 = vunpack.c.h.b16 %v154
      %v2840 = vunpack.c.l.b16 %v155
      %v2841 = vunpack.c.h.b16 %v155
      %v2842 = vunpack.c.l.b16 %v156
      %v2843 = vunpack.c.h.b16 %v156
      %v2844 = vunpack.c.l.b16 %v157
      %v2845 = vunpack.c.h.b16 %v157
      %v2846 = vunpack.c.l.b16 %v158
      %v2847 = vunpack.c.h.b16 %v158
      %v2848 = vunpack.c.l.b16 %v159
      %v2849 = vunpack.c.h.b16 %v159
      %v2850 = vunpack.c.l.b16 %v160
      %v2851 = vunpack.c.h.b16 %v160
      %v2852 = vunpack.c.l.b16 %v161
      %v2853 = vunpack.c.h.b16 %v161
      %v2854 = vunpack.c.l.b16 %v162
      %v2855 = vunpack.c.h.b16 %v162
      %v2856 = vunpack.c.l.b16 %v163
      %v2857 = vunpack.c.h.b16 %v163
      %v2858 = vunpack.c.l.b16 %v164
      %v2859 = vunpack.c.h.b16 %v164
      %v2860 = vunpack.c.l.b16 %v165
      %v2861 = vunpack.c.h.b16 %v165
      %v2862 = vunpack.c.l.b16 %v166
      %v2863 = vunpack.c.h.b16 %v166
      %v2864 = vunpack.c.l.b16 %v167
      %v2865 = vunpack.c.h.b16 %v167
      %v2866 = vunpack.c.l.b16 %v168
      %v2867 = vunpack.c.h.b16 %v168
      %v2868 = vunpack.c.l.b16 %v169
      %v2869 = vunpack.c.h.b16 %v169
      %v2870 = vunpack.c.l.b16 %v170
      %v2871 = vunpack.c.h.b16 %v170
      %v2872 = vunpack.c.l.b16 %v171
      %v2873 = vunpack.c.h.b16 %v171
      %v2874 = vunpack.c.l.b16 %v172
      %v2875 = vunpack.c.h.b16 %v172
      %v2876 = vunpack.c.l.b16 %v173
      %v2877 = vunpack.c.h.b16 %v173
      %v2878 = vunpack.c.l.b16 %v174
      %v2879 = vunpack.c.h.b16 %v174
      %v2880 = vunpack.c.l.b16 %v175
      %v2881 = vunpack.c.h.b16 %v175
      %v2882 = vunpack.c.l.b16 %v176
      %v2883 = vunpack.c.h.b16 %v176
      %v2884 = vunpack.c.l.b16 %v177
      %v2885 = vunpack.c.h.b16 %v177
      %v2886 = vunpack.c.l.b16 %v178
      %v2887 = vunpack.c.h.b16 %v178
      %v2888 = vunpack.c.l.b16 %v179
      %v2889 = vunpack.c.h.b16 %v179
      %v2890 = vunpack.c.l.b16 %v180
      %v2891 = vunpack.c.h.b16 %v180
      %v2892 = vunpack.c.l.b16 %v181
      %v2893 = vunpack.c.h.b16 %v181
      %v2894 = vunpack.c.l.b16 %v182
      %v2895 = vunpack.c.h.b16 %v182
      %v2896 = vunpack.c.l.b16 %v183
      %v2897 = vunpack.c.h.b16 %v183
      %v2898 = vunpack.c.l.b16 %v184
      %v2899 = vunpack.c.h.b16 %v184
      %v2900 = vunpack.c.l.b16 %v185
      %v2901 = vunpack.c.h.b16 %v185
      %v2902 = vunpack.c.l.b16 %v186
      %v2903 = vunpack.c.h.b16 %v186
      %v2904 = vunpack.c.l.b16 %v187
      %v2905 = vunpack.c.h.b16 %v187
      %v2906 = vunpack.c.l.b16 %v188
      %v2907 = vunpack.c.h.b16 %v188
      %v2908 = vunpack.c.l.b16 %v189
      %v2909 = vunpack.c.h.b16 %v189
      %v2910 = vunpack.c.l.b16 %v190
      %v2911 = vunpack.c.h.b16 %v190
      %v2912 = vunpack.c.l.b16 %v191
      %v2913 = vunpack.c.h.b16 %v191
      %v2914 = vunpack.c.l.b16 %v192
      %v2915 = vunpack.c.h.b16 %v192
      %v2916 = vunpack.c.l.b16 %v193
      %v2917 = vunpack.c.h.b16 %v193
      %v2918 = vunpack.c.l.b16 %v194
      %v2919 = vunpack.c.h.b16 %v194
      %v2920 = vunpack.c.l.b16 %v195
      %v2921 = vunpack.c.h.b16 %v195
      %v2922 = vunpack.c.l.b16 %v196
      %v2923 = vunpack.c.h.b16 %v196
      %v2924 = vunpack.c.l.b16 %v197
      %v2925 = vunpack.c.h.b16 %v197
      %v2926 = vunpack.c.l.b16 %v198
      %v2927 = vunpack.c.h.b16 %v198
      %v2928 = vunpack.c.l.b16 %v199
      %v2929 = vunpack.c.h.b16 %v199
      %v2930 = vunpack.c.l.b16 %v200
      %v2931 = vunpack.c.h.b16 %v200
      %v2932 = vunpack.c.l.b16 %v201
      %v2933 = vunpack.c.h.b16 %v201
      %v2934 = vunpack.c.l.b16 %v202
      %v2935 = vunpack.c.h.b16 %v202
      %v2936 = vunpack.c.l.b16 %v203
      %v2937 = vunpack.c.h.b16 %v203
      %v2938 = vunpack.c.l.b16 %v204
      %v2939 = vunpack.c.h.b16 %v204
      %v2940 = vunpack.c.l.b16 %v205
      %v2941 = vunpack.c.h.b16 %v205
      %v2942 = vunpack.c.l.b16 %v206
      %v2943 = vunpack.c.h.b16 %v206
      %v2944 = vunpack.c.l.b16 %v207
      %v2945 = vunpack.c.h.b16 %v207
      %v2946 = vunpack.c.l.b16 %v208
      %v2947 = vunpack.c.h.b16 %v208
      %v2948 = vunpack.c.l.b16 %v209
      %v2949 = vunpack.c.h.b16 %v209
      %v2950 = vunpack.c.l.b16 %v210
      %v2951 = vunpack.c.h.b16 %v210
      %v2952 = vunpack.c.l.b16 %v211
      %v2953 = vunpack.c.h.b16 %v211
      %v2954 = vunpack.c.l.b16 %v212
      %v2955 = vunpack.c.h.b16 %v212
      %v2956 = vunpack.c.l.b16 %v213
      %v2957 = vunpack.c.h.b16 %v213
      %v2958 = vunpack.c.l.b16 %v214
      %v2959 = vunpack.c.h.b16 %v214
      %v2960 = vunpack.c.l.b16 %v215
      %v2961 = vunpack.c.h.b16 %v215
      %v2962 = vunpack.c.l.b16 %v216
      %v2963 = vunpack.c.h.b16 %v216
      %v2964 = vunpack.c.l.b16 %v217
      %v2965 = vunpack.c.h.b16 %v217
      %v2966 = vunpack.c.l.b16 %v218
      %v2967 = vunpack.c.h.b16 %v218
      %v2968 = vunpack.c.l.b16 %v219
      %v2969 = vunpack.c.h.b16 %v219
      %v2970 = vunpack.c.l.b16 %v220
      %v2971 = vunpack.c.h.b16 %v220
      %v2972 = vunpack.c.l.b16 %v221
      %v2973 = vunpack.c.h.b16 %v221
      %v2974 = vunpack.c.l.b16 %v222
      %v2975 = vunpack.c.h.b16 %v222
      %v2976 = vunpack.c.l.b16 %v223
      %v2977 = vunpack.c.h.b16 %v223
      %v2978 = vunpack.c.l.b16 %v224
      %v2979 = vunpack.c.h.b16 %v224
      %v2980 = vunpack.c.l.b16 %v225
      %v2981 = vunpack.c.h.b16 %v225
      %v2982 = vunpack.c.l.b16 %v226
      %v2983 = vunpack.c.h.b16 %v226
      %v2984 = vunpack.c.l.b16 %v227
      %v2985 = vunpack.c.h.b16 %v227
      %v2986 = vpack.c.b16 %v2828, %v2826
      %v2987 = vpack.c.b16 %v2829, %v2827
      %v2988 = vpack.c.b16 %v2832, %v2830
      %v2989 = vpack.c.b16 %v2833, %v2831
      %v2990 = vpack.c.b16 %v2836, %v2834
      %v2991 = vpack.c.b16 %v2837, %v2835
      %v2992 = vpack.c.b16 %v2840, %v2838
      %v2993 = vpack.c.b16 %v2841, %v2839
      %v2994 = vpack.c.b16 %v2844, %v2842
      %v2995 = vpack.c.b16 %v2845, %v2843
      %v2996 = vpack.c.b16 %v2848, %v2846
      %v2997 = vpack.c.b16 %v2849, %v2847
      %v2998 = vpack.c.b16 %v2852, %v2850
      %v2999 = vpack.c.b16 %v2853, %v2851
      %v3000 = vpack.c.b16 %v2856, %v2854
      %v3001 = vpack.c.b16 %v2857, %v2855
      %v3002 = vpack.c.b16 %v2860, %v2858
      %v3003 = vpack.c.b16 %v2861, %v2859
      %v3004 = vpack.c.b16 %v2864, %v2862
      %v3005 = vpack.c.b16 %v2865, %v2863
      %v3006 = vpack.c.b16 %v2868, %v2866
      %v3007 = vpack.c.b16 %v2869, %v2867
      %v3008 = vpack.c.b16 %v2872, %v2870
      %v3009 = vpack.c.b16 %v2873, %v2871
      %v3010 = vpack.c.b16 %v2876, %v2874
      %v3011 = vpack.c.b16 %v2877, %v2875
      %v3012 = vpack.c.b16 %v2880, %v2878
      %v3013 = vpack.c.b16 %v2881, %v2879
      %v3014 = vpack.c.b16 %v2884, %v2882
      %v3015 = vpack.c.b16 %v2885, %v2883
      %v3016 = vpack.c.b16 %v2888, %v2886
      %v3017 = vpack.c.b16 %v2889, %v2887
      %v3018 = vpack.c.b16 %v2892, %v2890
      %v3019 = vpack.c.b16 %v2893, %v2891
      %v3020 = vpack.c.b16 %v2896, %v2894
      %v3021 = vpack.c.b16 %v2897, %v2895
      %v3022 = vpack.c.b16 %v2900, %v2898
      %v3023 = vpack.c.b16 %v2901, %v2899
      %v3024 = vpack.c.b16 %v2904, %v2902
      %v3025 = vpack.c.b16 %v2905, %v2903
      %v3026 = vpack.c.b16 %v2908, %v2906
      %v3027 = vpack.c.b16 %v2909, %v2907
      %v3028 = vpack.c.b16 %v2912, %v2910
      %v3029 = vpack.c.b16 %v2913, %v2911
      %v3030 = vpack.c.b16 %v2916, %v2914
      %v3031 = vpack.c.b16 %v2917, %v2915
      %v3032 = vpack.c.b16 %v2920, %v2918
      %v3033 = vpack.c.b16 %v2921, %v2919
      %v3034 = vpack.c.b16 %v2924, %v2922
      %v3035 = vpack.c.b16 %v2925, %v2923
      %v3036 = vpack.c.b16 %v2928, %v2926
      %v3037 = vpack.c.b16 %v2929, %v2927
      %v3038 = vpack.c.b16 %v2932, %v2930
      %v3039 = vpack.c.b16 %v2933, %v2931
      %v3040 = vpack.c.b16 %v2936, %v2934
      %v3041 = vpack.c.b16 %v2937, %v2935
      %v3042 = vpack.c.b16 %v2940, %v2938
      %v3043 = vpack.c.b16 %v2941, %v2939
      %v3044 = vpack.c.b16 %v2944, %v2942
      %v3045 = vpack.c.b16 %v2945, %v2943
      %v3046 = vpack.c.b16 %v2948, %v2946
      %v3047 = vpack.c.b16 %v2949, %v2947
      %v3048 = vpack.c.b16 %v2952, %v2950
      %v3049 = vpack.c.b16 %v2953, %v2951
      %v3050 = vpack.c.b16 %v2956, %v2954
      %v3051 = vpack.c.b16 %v2957, %v2955
      %v3052 = vpack.c.b16 %v2960, %v2958
      %v3053 = vpack.c.b16 %v2961, %v2959
      %v3054 = vpack.c.b16 %v2964, %v2962
      %v3055 = vpack.c.b16 %v2965, %v2963
      %v3056 = vpack.c.b16 %v2968, %v2966
      %v3057 = vpack.c.b16 %v2969, %v2967
      %v3058 = vpack.c.b16 %v2972, %v2970
      %v3059 = vpack.c.b16 %v2973, %v2971
      %v3060 = vpack.c.b16 %v2976, %v2974
      %v3061 = vpack.c.b16 %v2977, %v2975
      %v3062 = vpack.c.b16 %v2980, %v2978
      %v3063 = vpack.c.b16 %v2981, %v2979
      %v3064 = vpack.c.b16 %v2984, %v2982
      %v3065 = vpack.c.b16 %v2985, %v2983
      %v3145 = vsel %vm2244, %v2690, 0
      %v3148 = vsel %vm2244, %v2695, 0
      %v3151 = vsel %vm2244, %v2700, 0
      %v3154 = vsel %vm2244, %v2705, 0
      %vm3156 = vcmask 1046528
      %vm3157 = vcmask 1047552
      %v3158 = vsel %vm3156, 4294967295, 65535
      %v3159 = vsel %vm3157, %v3158, 0
      %v3161 = vand.u32 %v3064, %v3159
      %v3164 = vand.u32 %v3065, %v3159
      %3166 = vmatprep.subr.bf16.mxu0 %v2987
      %3167 = vmatpush1.bf16.msra.mxu0 %v2986
      %3168 = vmatprep.subr.bf16.mxu0 %v2989
      %3169 = vmatpush1.bf16.msra.mxu0 %v2988
      %3170 = vmatprep.subr.bf16.mxu0 %v2991
      %3171 = vmatpush1.bf16.msra.mxu0 %v2990
      %3172 = vmatprep.subr.bf16.mxu0 %v2993
      %3173 = vmatpush1.bf16.msra.mxu0 %v2992
      %3174 = vmatprep.subr.bf16.mxu0 %v2995
      %3175 = vmatpush1.bf16.msra.mxu0 %v2994
      %3176 = vmatprep.subr.bf16.mxu0 %v2997
      %3177 = vmatpush1.bf16.msra.mxu0 %v2996
      %3178 = vmatprep.subr.bf16.mxu0 %v2999
      %3179 = vmatpush1.bf16.msra.mxu0 %v2998
      %3180 = vmatprep.subr.bf16.mxu0 %v3001
      %3181 = vmatpush1.bf16.msra.mxu0 %v3000
      %3182 = vmatprep.subr.bf16.mxu0 %v3003
      %3183 = vmatpush1.bf16.msra.mxu0 %v3002
      %3184 = vmatprep.subr.bf16.mxu0 %v3005
      %3185 = vmatpush1.bf16.msra.mxu0 %v3004
      %3186 = vmatprep.subr.bf16.mxu0 %v3007
      %3187 = vmatpush1.bf16.msra.mxu0 %v3006
      %3188 = vmatprep.subr.bf16.mxu0 %v3009
      %3189 = vmatpush1.bf16.msra.mxu0 %v3008
      %3190 = vmatprep.subr.bf16.mxu0 %v3011
      %3191 = vmatpush1.bf16.msra.mxu0 %v3010
      %3192 = vmatprep.subr.bf16.mxu0 %v3013
      %3193 = vmatpush1.bf16.msra.mxu0 %v3012
      %3194 = vmatprep.subr.bf16.mxu0 %v3015
      %3195 = vmatpush1.bf16.msra.mxu0 %v3014
      %3196 = vmatprep.subr.bf16.mxu0 %v3017
      %3197 = vmatpush1.bf16.msra.mxu0 %v3016
      %3198 = vmatprep.mubr.bf16.mxu0 %v2687
      %3199 = vmatmul.mubr.bf16.gmra.mrb[0].mxu0 %v2686
      %v3200 = vpop.f32.mrb[0].mxu0
      %v3201 = vadd.f32 %v2709, %v3200
      %v3202 = vpop.f32.mrb[0].mxu0
      %v3203 = vadd.f32 %v2709, %v3202
      %v3204 = vpop.f32.mrb[0].mxu0
      %v3205 = vadd.f32 %v2714, %v3204
      %v3206 = vpop.f32.mrb[0].mxu0
      %v3207 = vadd.f32 %v2714, %v3206
      %3208 = vmatprep.mubr.bf16.mxu0 %v2692
      %3209 = vmatmul.mubr.bf16.gmra.mrb[0].mxu0 %v2691
      %v3210 = vpop.f32.mrb[0].mxu0
      %v3211 = vadd.f32 %v2719, %v3210
      %v3212 = vpop.f32.mrb[0].mxu0
      %v3213 = vadd.f32 %v2719, %v3212
      %v3214 = vpop.f32.mrb[0].mxu0
      %v3215 = vadd.f32 %v2724, %v3214
      %v3216 = vpop.f32.mrb[0].mxu0
      %v3217 = vadd.f32 %v2724, %v3216
      %3218 = vmatprep.mubr.bf16.mxu0 %v2697
      %3219 = vmatmul.mubr.bf16.gmra.mrb[0].mxu0 %v2696
      %v3220 = vpop.f32.mrb[0].mxu0
      %v3221 = vadd.f32 %v2729, %v3220
      %v3222 = vpop.f32.mrb[0].mxu0
      %v3223 = vadd.f32 %v2729, %v3222
      %v3224 = vpop.f32.mrb[0].mxu0
      %v3225 = vadd.f32 %v2734, %v3224
      %v3226 = vpop.f32.mrb[0].mxu0
      %v3227 = vadd.f32 %v2734, %v3226
      %3228 = vmatprep.mubr.bf16.mxu0 %v2702
      %3229 = vmatmul.mubr.bf16.gmra.mrb[0].mxu0 %v2701
      %v3230 = vpop.f32.mrb[0].mxu0
      %v3231 = vadd.f32 %v2739, %v3230
      %v3232 = vpop.f32.mrb[0].mxu0
      %v3233 = vadd.f32 %v2739, %v3232
      %v3234 = vpop.f32.mrb[0].mxu0
      %v3235 = vadd.f32 %v2744, %v3234
      %v3236 = vpop.f32.mrb[0].mxu0
      %v3237 = vadd.f32 %v2744, %v3236
      %3238 = vdwg.mxu0
      %3239 = vmatprep.subr.bf16.mxu0 %v3019
      %3240 = vmatpush1.bf16.msra.mxu0 %v3018
      %3241 = vmatprep.subr.bf16.mxu0 %v3021
      %3242 = vmatpush1.bf16.msra.mxu0 %v3020
      %3243 = vmatprep.subr.bf16.mxu0 %v3023
      %3244 = vmatpush1.bf16.msra.mxu0 %v3022
      %3245 = vmatprep.subr.bf16.mxu0 %v3025
      %3246 = vmatpush1.bf16.msra.mxu0 %v3024
      %3247 = vmatprep.subr.bf16.mxu0 %v3027
      %3248 = vmatpush1.bf16.msra.mxu0 %v3026
      %3249 = vmatprep.subr.bf16.mxu0 %v3029
      %3250 = vmatpush1.bf16.msra.mxu0 %v3028
      %3251 = vmatprep.subr.bf16.mxu0 %v3031
      %3252 = vmatpush1.bf16.msra.mxu0 %v3030
      %3253 = vmatprep.subr.bf16.mxu0 %v3033
      %3254 = vmatpush1.bf16.msra.mxu0 %v3032
      %3255 = vmatprep.subr.bf16.mxu0 %v3035
      %3256 = vmatpush1.bf16.msra.mxu0 %v3034
      %3257 = vmatprep.subr.bf16.mxu0 %v3037
      %3258 = vmatpush1.bf16.msra.mxu0 %v3036
      %3259 = vmatprep.subr.bf16.mxu0 %v3039
      %3260 = vmatpush1.bf16.msra.mxu0 %v3038
      %3261 = vmatprep.subr.bf16.mxu0 %v3041
      %3262 = vmatpush1.bf16.msra.mxu0 %v3040
      %3263 = vmatprep.subr.bf16.mxu0 %v3043
      %3264 = vmatpush1.bf16.msra.mxu0 %v3042
      %3265 = vmatprep.subr.bf16.mxu0 %v3045
      %3266 = vmatpush1.bf16.msra.mxu0 %v3044
      %3267 = vmatprep.subr.bf16.mxu0 %v3047
      %3268 = vmatpush1.bf16.msra.mxu0 %v3046
      %3269 = vmatprep.subr.bf16.mxu0 %v3049
      %3270 = vmatpush1.bf16.msra.mxu0 %v3048
      %3271 = vmatprep.mubr.bf16.mxu0 %v2689
      %3272 = vmatmul.mubr.bf16.gmra.mrb[0].mxu0 %v2688
      %v3273 = vpop.f32.mrb[0].mxu0
      %v3274 = vadd.f32 %v3201, %v3273
      %v3275 = vpop.f32.mrb[0].mxu0
      %v3276 = vadd.f32 %v3203, %v3275
      %v3277 = vpop.f32.mrb[0].mxu0
      %v3278 = vadd.f32 %v3205, %v3277
      %v3279 = vpop.f32.mrb[0].mxu0
      %v3280 = vadd.f32 %v3207, %v3279
      %3281 = vmatprep.mubr.bf16.mxu0 %v2694
      %3282 = vmatmul.mubr.bf16.gmra.mrb[0].mxu0 %v2693
      %v3283 = vpop.f32.mrb[0].mxu0
      %v3284 = vadd.f32 %v3211, %v3283
      %v3285 = vpop.f32.mrb[0].mxu0
      %v3286 = vadd.f32 %v3213, %v3285
      %v3287 = vpop.f32.mrb[0].mxu0
      %v3288 = vadd.f32 %v3215, %v3287
      %v3289 = vpop.f32.mrb[0].mxu0
      %v3290 = vadd.f32 %v3217, %v3289
      %3291 = vmatprep.mubr.bf16.mxu0 %v2699
      %3292 = vmatmul.mubr.bf16.gmra.mrb[0].mxu0 %v2698
      %v3293 = vpop.f32.mrb[0].mxu0
      %v3294 = vadd.f32 %v3221, %v3293
      %v3295 = vpop.f32.mrb[0].mxu0
      %v3296 = vadd.f32 %v3223, %v3295
      %v3297 = vpop.f32.mrb[0].mxu0
      %v3298 = vadd.f32 %v3225, %v3297
      %v3299 = vpop.f32.mrb[0].mxu0
      %v3300 = vadd.f32 %v3227, %v3299
      %3301 = vmatprep.mubr.bf16.mxu0 %v2704
      %3302 = vmatmul.mubr.bf16.gmra.mrb[0].mxu0 %v2703
      %v3303 = vpop.f32.mrb[0].mxu0
      %v3304 = vadd.f32 %v3231, %v3303
      %v3305 = vpop.f32.mrb[0].mxu0
      %v3306 = vadd.f32 %v3233, %v3305
      %v3307 = vpop.f32.mrb[0].mxu0
      %v3308 = vadd.f32 %v3235, %v3307
      %v3309 = vpop.f32.mrb[0].mxu0
      %v3310 = vadd.f32 %v3237, %v3309
      %3311 = vdwg.mxu0
      %3312 = vmatprep.subr.bf16.mxu0 %v3051
      %3313 = vmatpush1.bf16.msra.mxu0 %v3050
      %3314 = vmatprep.subr.bf16.mxu0 %v3053
      %3315 = vmatpush1.bf16.msra.mxu0 %v3052
      %3316 = vmatprep.subr.bf16.mxu0 %v3055
      %3317 = vmatpush1.bf16.msra.mxu0 %v3054
      %3318 = vmatprep.subr.bf16.mxu0 %v3057
      %3319 = vmatpush1.bf16.msra.mxu0 %v3056
      %3320 = vmatprep.subr.bf16.mxu0 %v3059
      %3321 = vmatpush1.bf16.msra.mxu0 %v3058
      %3322 = vmatprep.subr.bf16.mxu0 %v3061
      %3323 = vmatpush1.bf16.msra.mxu0 %v3060
      %3324 = vmatprep.subr.bf16.mxu0 %v3063
      %3325 = vmatpush1.bf16.msra.mxu0 %v3062
      %3326 = vmatprep.subr.bf16.mxu0 %v3164
      %3327 = vmatpush1.bf16.msra.mxu0 %v3161
      %3328 = vmatprep.subr.bf16.mxu0 0
      %3329 = vmatpush1.bf16.msra.mxu0 0
      %3330 = vmatprep.subr.bf16.mxu0 0
      %3331 = vmatpush1.bf16.msra.mxu0 0
      %3332 = vmatprep.subr.bf16.mxu0 0
      %3333 = vmatpush1.bf16.msra.mxu0 0
      %3334 = vmatprep.subr.bf16.mxu0 0
      %3335 = vmatpush1.bf16.msra.mxu0 0
      %3336 = vmatprep.subr.bf16.mxu0 0
      %3337 = vmatpush1.bf16.msra.mxu0 0
      %3338 = vmatprep.subr.bf16.mxu0 0
      %3339 = vmatpush1.bf16.msra.mxu0 0
      %3340 = vmatprep.subr.bf16.mxu0 0
      %3341 = vmatpush1.bf16.msra.mxu0 0
      %3342 = vmatprep.subr.bf16.mxu0 0
      %3343 = vmatpush1.bf16.msra.mxu0 0
      %3344 = vmatprep.mubr.bf16.mxu0 0
      %3345 = vmatmul.mubr.bf16.gmra.mrb[0].mxu0 %v3145
      %v3346 = vpop.f32.mrb[0].mxu0
      %v3347 = vadd.f32 %v3274, %v3346
      %v3348 = vpop.f32.mrb[0].mxu0
      %v3349 = vadd.f32 %v3276, %v3348
      %v3350 = vpop.f32.mrb[0].mxu0
      %v3351 = vadd.f32 %v3278, %v3350
      %v3352 = vpop.f32.mrb[0].mxu0
      %v3353 = vadd.f32 %v3280, %v3352
      %3354 = vmatprep.mubr.bf16.mxu0 0
      %3355 = vmatmul.mubr.bf16.gmra.mrb[0].mxu0 %v3148
      %v3356 = vpop.f32.mrb[0].mxu0
      %v3357 = vadd.f32 %v3284, %v3356
      %v3358 = vpop.f32.mrb[0].mxu0
      %v3359 = vadd.f32 %v3286, %v3358
      %v3360 = vpop.f32.mrb[0].mxu0
      %v3361 = vadd.f32 %v3288, %v3360
      %v3362 = vpop.f32.mrb[0].mxu0
      %v3363 = vadd.f32 %v3290, %v3362
      %3364 = vmatprep.mubr.bf16.mxu0 0
      %3365 = vmatmul.mubr.bf16.gmra.mrb[0].mxu0 %v3151
      %v3366 = vpop.f32.mrb[0].mxu0
      %v3367 = vadd.f32 %v3294, %v3366
      %v3368 = vpop.f32.mrb[0].mxu0
      %v3369 = vadd.f32 %v3296, %v3368
      %v3370 = vpop.f32.mrb[0].mxu0
      %v3371 = vadd.f32 %v3298, %v3370
      %v3372 = vpop.f32.mrb[0].mxu0
      %v3373 = vadd.f32 %v3300, %v3372
      %3374 = vmatprep.mubr.bf16.mxu0 0
      %3375 = vmatmul.mubr.bf16.gmra.mrb[0].mxu0 %v3154
      %v3376 = vpop.f32.mrb[0].mxu0
      %v3377 = vadd.f32 %v3304, %v3376
      %v3378 = vpop.f32.mrb[0].mxu0
      %v3379 = vadd.f32 %v3306, %v3378
      %v3380 = vpop.f32.mrb[0].mxu0
      %v3381 = vadd.f32 %v3308, %v3380
      %v3382 = vpop.f32.mrb[0].mxu0
      %v3383 = vadd.f32 %v3310, %v3382
      %3384 = vdwg.mxu0
      %v3385 = vpack.c.bf16 %v3351, %v3347
      %v3386 = vpack.c.bf16 %v3353, %v3349
      %v3387 = vpack.c.bf16 %v3361, %v3357
      %v3388 = vpack.c.bf16 %v3363, %v3359
      %v3389 = vpack.c.bf16 %v3371, %v3367
      %v3390 = vpack.c.bf16 %v3373, %v3369
      %v3391 = vpack.c.bf16 %v3381, %v3377
      %v3392 = vpack.c.bf16 %v3383, %v3379
      %v3401 = vunpack.c.l.b16 %v3385
      %v3402 = vunpack.c.l.b16 %v3386
      %v3403 = vunpack.c.h.b16 %v3385
      %v3404 = vunpack.c.h.b16 %v3386
      %v3405 = vunpack.c.l.b16 %v3387
      %v3406 = vunpack.c.l.b16 %v3388
      %v3407 = vunpack.c.h.b16 %v3387
      %v3408 = vunpack.c.h.b16 %v3388
      %v3409 = vunpack.c.l.b16 %v3389
      %v3410 = vunpack.c.l.b16 %v3390
      %v3411 = vunpack.c.h.b16 %v3389
      %v3412 = vunpack.c.h.b16 %v3390
      %v3413 = vunpack.c.l.b16 %v3391
      %v3414 = vunpack.c.l.b16 %v3392
      %v3415 = vunpack.c.h.b16 %v3391
      %v3416 = vunpack.c.h.b16 %v3392
      %v3417 = vpack.c.b16 %v3402, %v3401
      %v3418 = vpack.c.b16 %v3404, %v3403
      %v3419 = vpack.c.b16 %v3406, %v3405
      %v3420 = vpack.c.b16 %v3408, %v3407
      %v3421 = vpack.c.b16 %v3410, %v3409
      %v3422 = vpack.c.b16 %v3412, %v3411
      %v3423 = vpack.c.b16 %v3414, %v3413
      %v3424 = vpack.c.b16 %v3416, %v3415
      %s3433 = smul.u32 %s229, 16
      %s3434 = smul.addr %s3433, 4
      %s3435 = scalar_lea.vmem %s6, %s3434
      %vm3436 = vcmask 130052
      %vm3437 = vmor %vm3436, %vm628
      %3438 = vst.msk [vmem:[%s3435] sm:$0xff] %vm3437, %v3417
      %3439 = vst.msk [vmem:[%s3435 + $0x8] sm:$0xff] %vm3437, %v3418
      %3440 = vst.msk [vmem:[%s3435 + $0x10] sm:$0xff] %vm3437, %v3419
      %3441 = vst.msk [vmem:[%s3435 + $0x18] sm:$0xff] %vm3437, %v3420
      %3442 = vst.msk [vmem:[%s3435 + $0x20] sm:$0xff] %vm3437, %v3421
      %3443 = vst.msk [vmem:[%s3435 + $0x28] sm:$0xff] %vm3437, %v3422
      %3444 = vst.msk [vmem:[%s3435 + $0x30] sm:$0xff] %vm3437, %v3423
      %3445 = vst.msk [vmem:[%s3435 + $0x38] sm:$0xff] %vm3437, %v3424
    $region38: #{net_forward.2} parent=1 // loop_footer
      %s233 = sadd.s32 1, %s229
    $region39: #{net_forward.2} parent=1 // loop_footer_branch
      %228 = sbr.rel target = $region35
    $region40: #{net_forward.2} parent=1 // loop_exit
      _
    // Predicated region
    $region41: #{net_forward.2} parent=1 // pred_check
      _
    $region42: #{net_forward.2} parent=1 // pred_check_branch
      %3447 = sbr.rel (0) target = $region44
    $region43: #{net_forward.2} parent=1 // pred_region
      _
    $region44: #{net_forward.2} parent=1 // pred_fallthru
      _
    // Predicated region
    $region45: #{net_forward.2} parent=1 // pred_check
      _
    $region46: #{net_forward.2} parent=1 // pred_check_branch
      %3449 = sbr.rel (0) target = $region48
    $region47: #{net_forward.2} parent=1 // pred_region
      _
    $region48: #{net_forward.2} parent=1 // pred_fallthru
      _
    %3450 = vsyncpa [#allocation3], 1
    %3451 = vsyncpa [#allocation5], 1

</llo_original>
